<compile_context>
chip_gen: v6e
topology: v6e:2x2x1
jax: 0.10.0
libtpu: 0.0.40
codegen_flags: <defaults>
</compile_context>

<pallas_src>
import jax
import jax.numpy as jnp
from jax.experimental import pallas as pl
from jax.experimental.pallas import tpu as pltpu


# ------------------------------ Fused kernel ------------------------------- #

def _fused_view_kernel(x_ref, w1_ref, b1_ref, w2_ref, b2_ref, wfc_ref, bfc_ref,
                       o_ref, pad1_ref, pad2_ref):
    # Per grid step (one (batch, view) element):
    #   x_ref   : (1, Cin, H, W)   channel-major input view
    #   w1_ref  : (C, 9*Cin)       conv1 weights, row = cout, col = (kh, kw, ci)
    #   b1_ref  : (C, 1)
    #   w2_ref  : (C, 9*C)         conv2 weights
    #   b2_ref  : (C, 1)
    #   wfc_ref : (C, hidden)
    #   bfc_ref : (1, hidden)
    #   o_ref   : (1, 1, hidden)
    #   pad1_ref: (Cin, H+2, W+2)  VMEM scratch (zero-padded conv1 input)
    #   pad2_ref: (C,   H+2, W+2)  VMEM scratch (zero-padded conv2 input)
    cin, hp2, wp2 = pad1_ref.shape
    c = pad2_ref.shape[0]
    h, w = hp2 - 2, wp2 - 2
    hw = h * w

    # Re-zero the halo scratch every step (a few KiB of vreg stores). Doing it
    # every step (rather than under pl.when(program_id==0)) keeps it correct
    # when the "parallel" grid axis is sharded across v7x's two TensorCores.
    pad1_ref[...] = jnp.zeros((cin, hp2, wp2), jnp.float32)
    pad2_ref[...] = jnp.zeros((c, hp2, wp2), jnp.float32)

    # ---- conv1: 3x3 SAME (zero pad) + ReLU as a single im2col MXU matmul ----
    pad1_ref[:, 1:h + 1, 1:w + 1] = x_ref[0]
    xp = pad1_ref[...]                                           # (Cin, H+2, W+2)
    patches1 = jnp.concatenate(
        [xp[:, kh:kh + h, kw:kw + w].reshape(cin, hw)
         for kh in range(3) for kw in range(3)], axis=0)         # (9*Cin, H*W)
    h1 = jnp.dot(w1_ref[...], patches1,
                 preferred_element_type=jnp.float32)             # (C, H*W) lane-dense
    h1 = jnp.maximum(h1 + b1_ref[...], 0.0)

    # ---- conv2: 3x3 SAME + ReLU, feature map stays in VMEM ----
    pad2_ref[:, 1:h + 1, 1:w + 1] = h1.reshape(c, h, w)
    hp = pad2_ref[...]                                           # (C, H+2, W+2)
    patches2 = jnp.concatenate(
        [hp[:, kh:kh + h, kw:kw + w].reshape(c, hw)
         for kh in range(3) for kw in range(3)], axis=0)         # (9*C, H*W)
    h2 = jnp.dot(w2_ref[...], patches2,
                 preferred_element_type=jnp.float32)             # (C, H*W)
    h2 = jnp.maximum(h2 + b2_ref[...], 0.0)

    # ---- top_layer_block: global average pool -> Linear -> ReLU ----
    pooled = jnp.mean(h2, axis=1, keepdims=True)                 # (C, 1)
    y = jnp.sum(wfc_ref[...] * pooled, axis=0, keepdims=True) + bfc_ref[...]
    o_ref[0] = jnp.maximum(y, 0.0)                               # (1, hidden)


# ------------------------------- Model glue -------------------------------- #

def init_params(key, cin=3, c=8, hidden=32):
    ks = jax.random.split(key, 4)
    s = 0.1
    return {
        "conv1_w": s * jax.random.normal(ks[0], (3, 3, cin, c), jnp.float32),
        "conv1_b": 0.01 * jnp.arange(c, dtype=jnp.float32),
        "conv2_w": s * jax.random.normal(ks[1], (3, 3, c, c), jnp.float32),
        "conv2_b": 0.01 * jnp.arange(c, dtype=jnp.float32),
        "fc_w": s * jax.random.normal(ks[2], (c, hidden), jnp.float32),
        "fc_b": 0.01 * jnp.arange(hidden, dtype=jnp.float32),
    }


def _conv_to_mat(w):
    """(3, 3, Cin, Cout) HWIO -> (Cout, 9*Cin), columns ordered (kh, kw, ci)."""
    kh, kw, cin, cout = w.shape
    return jnp.transpose(w, (3, 0, 1, 2)).reshape(cout, kh * kw * cin)


def two_views_top_breast_classifier(params, x_nchw):
    """x_nchw: (B, 6, H, W) float32 -> (B, 2*hidden) float32."""
    B, six, H, W = x_nchw.shape
    assert six == 6, "expected a 6-channel two-view input"
    cin = 3
    # Stack the two 3-channel views along the batch axis (pure reshape, no
    # copy):  row 2b = x[b, 0:3, :, :],  row 2b+1 = x[b, 3:6, :, :].
    x_views = x_nchw.reshape(B * 2, cin, H, W)

    w1m = _conv_to_mat(params["conv1_w"])          # (C, 9*Cin)
    w2m = _conv_to_mat(params["conv2_w"])          # (C, 9*C)
    c = w1m.shape[0]
    hidden = params["fc_w"].shape[1]
    b1 = params["conv1_b"].reshape(c, 1)
    b2 = params["conv2_b"].reshape(c, 1)
    wfc = params["fc_w"]                           # (C, hidden)
    bfc = params["fc_b"].reshape(1, hidden)

    out = pl.pallas_call(
        _fused_view_kernel,
        out_shape=jax.ShapeDtypeStruct((2 * B, 1, hidden), jnp.float32),
        grid=(2 * B,),
        in_specs=[
            pl.BlockSpec((1, cin, H, W), lambda i: (i, 0, 0, 0)),
            pl.BlockSpec((c, 9 * cin), lambda i: (0, 0)),
            pl.BlockSpec((c, 1), lambda i: (0, 0)),
            pl.BlockSpec((c, 9 * c), lambda i: (0, 0)),
            pl.BlockSpec((c, 1), lambda i: (0, 0)),
            pl.BlockSpec((c, hidden), lambda i: (0, 0)),
            pl.BlockSpec((1, hidden), lambda i: (0, 0)),
        ],
        out_specs=pl.BlockSpec((1, 1, hidden), lambda i: (i, 0, 0)),
        scratch_shapes=[
            pltpu.VMEM((cin, H + 2, W + 2), jnp.float32),
            pltpu.VMEM((c, H + 2, W + 2), jnp.float32),
        ],
        compiler_params=pltpu.CompilerParams(
            dimension_semantics=("parallel",)),
    )(x_views, w1m, b1, w2m, b2, wfc, bfc)

    # out[2b] / out[2b+1] are the hidden vectors of view 1 / view 2 of batch b,
    # so reshaping gives exactly torch.cat([h1, h2], dim=1).
    return out.reshape(B, 2 * hidden)


if __name__ == "__main__":
    key = jax.random.PRNGKey(0)
    pkey, xkey = jax.random.split(key)
    params = init_params(pkey, cin=3, c=8, hidden=32)
    x = jax.random.normal(xkey, (2, 6, 16, 16), dtype=jnp.float32)

    fwd = jax.jit(two_views_top_breast_classifier)
    out = jax.block_until_ready(fwd(params, x))
    assert out.shape == (2, 64), out.shape
    assert out.dtype == jnp.float32
    print("KERNEL_OK")
</pallas_src>

<mosaic_0001>
module attributes {stable_mosaic.version = 11 : i64} {
  func.func @_fused_view_kernel(%arg0: i32, %arg1: memref<1x3x16x16xf32, #tpu.memory_space<vmem>>, %arg2: memref<8x27xf32, #tpu.memory_space<vmem>>, %arg3: memref<8x1xf32, #tpu.memory_space<vmem>>, %arg4: memref<8x72xf32, #tpu.memory_space<vmem>>, %arg5: memref<8x1xf32, #tpu.memory_space<vmem>>, %arg6: memref<8x32xf32, #tpu.memory_space<vmem>>, %arg7: memref<1x32xf32, #tpu.memory_space<vmem>>, %arg8: memref<1x1x32xf32, #tpu.memory_space<vmem>>, %arg9: memref<3x18x18xf32, #tpu.memory_space<vmem>>, %arg10: memref<8x18x18xf32, #tpu.memory_space<vmem>>) attributes {dimension_semantics = [#tpu.dimension_semantics<parallel>], iteration_bounds = array<i64: 4>, scalar_prefetch = 0 : i64, scratch_operands = 2 : i64, tpu.core_type = #tpu.core_type<tc>, window_params = [{transform_indices = @transform_0, window_bounds = array<i64: 1, 3, 16, 16>}, {pipeline_mode = #tpu.pipeline_mode<synchronous>, transform_indices = @transform_1, window_bounds = array<i64: 8, 27>}, {pipeline_mode = #tpu.pipeline_mode<synchronous>, transform_indices = @transform_2, window_bounds = array<i64: 8, 1>}, {pipeline_mode = #tpu.pipeline_mode<synchronous>, transform_indices = @transform_3, window_bounds = array<i64: 8, 72>}, {pipeline_mode = #tpu.pipeline_mode<synchronous>, transform_indices = @transform_4, window_bounds = array<i64: 8, 1>}, {pipeline_mode = #tpu.pipeline_mode<synchronous>, transform_indices = @transform_5, window_bounds = array<i64: 8, 32>}, {pipeline_mode = #tpu.pipeline_mode<synchronous>, transform_indices = @transform_6, window_bounds = array<i64: 1, 32>}, {transform_indices = @transform_7, window_bounds = array<i64: 1, 1, 32>}]} {
    %cst = arith.constant 0.000000e+00 : f32
    %0 = vector.broadcast %cst : f32 to vector<3x18x18xf32>
    %c0 = arith.constant 0 : index
    %c0_0 = arith.constant 0 : index
    %c0_1 = arith.constant 0 : index
    %1 = vector.load %arg9[%c0, %c0_0, %c0_1] : memref<3x18x18xf32, #tpu.memory_space<vmem>>, vector<3x18x18xf32>
    tpu.vector_store %arg9[%c0, %c0_0, %c0_1], %0 {strides = array<i32>} : memref<3x18x18xf32, #tpu.memory_space<vmem>>, vector<3x18x18xf32>,
    %cst_2 = arith.constant 0.000000e+00 : f32
    %2 = vector.broadcast %cst_2 : f32 to vector<8x18x18xf32>
    %c0_3 = arith.constant 0 : index
    %c0_4 = arith.constant 0 : index
    %c0_5 = arith.constant 0 : index
    %3 = vector.load %arg10[%c0_3, %c0_4, %c0_5] : memref<8x18x18xf32, #tpu.memory_space<vmem>>, vector<8x18x18xf32>
    tpu.vector_store %arg10[%c0_3, %c0_4, %c0_5], %2 {strides = array<i32>} : memref<8x18x18xf32, #tpu.memory_space<vmem>>, vector<8x18x18xf32>,
    %c0_6 = arith.constant 0 : index
    %c0_7 = arith.constant 0 : index
    %c0_8 = arith.constant 0 : index
    %c0_9 = arith.constant 0 : index
    %4 = vector.load %arg1[%c0_6, %c0_7, %c0_8, %c0_9] : memref<1x3x16x16xf32, #tpu.memory_space<vmem>>, vector<1x3x16x16xf32>
    %5 = vector.shape_cast %4 : vector<1x3x16x16xf32> to vector<3x16x16xf32>
    %c0_10 = arith.constant 0 : index
    %c1 = arith.constant 1 : index
    %c1_11 = arith.constant 1 : index
    %6 = vector.load %arg9[%c0_10, %c1, %c1_11] : memref<3x18x18xf32, #tpu.memory_space<vmem>>, vector<3x16x16xf32>
    tpu.vector_store %arg9[%c0_10, %c1, %c1_11], %5 {strides = array<i32>} : memref<3x18x18xf32, #tpu.memory_space<vmem>>, vector<3x16x16xf32>,
    %c0_12 = arith.constant 0 : index
    %c0_13 = arith.constant 0 : index
    %c0_14 = arith.constant 0 : index
    %7 = vector.load %arg9[%c0_12, %c0_13, %c0_14] : memref<3x18x18xf32, #tpu.memory_space<vmem>>, vector<3x18x18xf32>
    %8 = vector.extract_strided_slice %7 {offsets = [0, 0, 0], sizes = [3, 16, 16], strides = [1, 1, 1]} : vector<3x18x18xf32> to vector<3x16x16xf32>
    %9 = vector.shape_cast %8 : vector<3x16x16xf32> to vector<3x256xf32>
    %10 = vector.extract_strided_slice %7 {offsets = [0, 0, 1], sizes = [3, 16, 16], strides = [1, 1, 1]} : vector<3x18x18xf32> to vector<3x16x16xf32>
    %11 = vector.shape_cast %10 : vector<3x16x16xf32> to vector<3x256xf32>
    %12 = vector.extract_strided_slice %7 {offsets = [0, 0, 2], sizes = [3, 16, 16], strides = [1, 1, 1]} : vector<3x18x18xf32> to vector<3x16x16xf32>
    %13 = vector.shape_cast %12 : vector<3x16x16xf32> to vector<3x256xf32>
    %14 = vector.extract_strided_slice %7 {offsets = [0, 1, 0], sizes = [3, 16, 16], strides = [1, 1, 1]} : vector<3x18x18xf32> to vector<3x16x16xf32>
    %15 = vector.shape_cast %14 : vector<3x16x16xf32> to vector<3x256xf32>
    %16 = vector.extract_strided_slice %7 {offsets = [0, 1, 1], sizes = [3, 16, 16], strides = [1, 1, 1]} : vector<3x18x18xf32> to vector<3x16x16xf32>
    %17 = vector.shape_cast %16 : vector<3x16x16xf32> to vector<3x256xf32>
    %18 = vector.extract_strided_slice %7 {offsets = [0, 1, 2], sizes = [3, 16, 16], strides = [1, 1, 1]} : vector<3x18x18xf32> to vector<3x16x16xf32>
    %19 = vector.shape_cast %18 : vector<3x16x16xf32> to vector<3x256xf32>
    %20 = vector.extract_strided_slice %7 {offsets = [0, 2, 0], sizes = [3, 16, 16], strides = [1, 1, 1]} : vector<3x18x18xf32> to vector<3x16x16xf32>
    %21 = vector.shape_cast %20 : vector<3x16x16xf32> to vector<3x256xf32>
    %22 = vector.extract_strided_slice %7 {offsets = [0, 2, 1], sizes = [3, 16, 16], strides = [1, 1, 1]} : vector<3x18x18xf32> to vector<3x16x16xf32>
    %23 = vector.shape_cast %22 : vector<3x16x16xf32> to vector<3x256xf32>
    %24 = vector.extract_strided_slice %7 {offsets = [0, 2, 2], sizes = [3, 16, 16], strides = [1, 1, 1]} : vector<3x18x18xf32> to vector<3x16x16xf32>
    %25 = vector.shape_cast %24 : vector<3x16x16xf32> to vector<3x256xf32>
    %26 = tpu.concatenate %9, %11, %13, %15, %17, %19, %21, %23, %25 in 0 : vector<3x256xf32>, vector<3x256xf32>, vector<3x256xf32>, vector<3x256xf32>, vector<3x256xf32>, vector<3x256xf32>, vector<3x256xf32>, vector<3x256xf32>, vector<3x256xf32> -> vector<27x256xf32>
    %c0_15 = arith.constant 0 : index
    %c0_16 = arith.constant 0 : index
    %27 = vector.load %arg2[%c0_15, %c0_16] : memref<8x27xf32, #tpu.memory_space<vmem>>, vector<8x27xf32>
    %cst_17 = arith.constant dense<0.000000e+00> : vector<8x256xf32>
    %28 = tpu.matmul %27, %26, %cst_17 {dimension_numbers = #tpu.dot_dimension_numbers<[1], [0], [0], [1], [0, 0, 1, 1], [], []>} : vector<8x27xf32>, vector<27x256xf32>, vector<8x256xf32> -> vector<8x256xf32>
    %c0_18 = arith.constant 0 : index
    %c0_19 = arith.constant 0 : index
    %29 = vector.load %arg3[%c0_18, %c0_19] : memref<8x1xf32, #tpu.memory_space<vmem>>, vector<8x1xf32>
    %30 = vector.broadcast %29 : vector<8x1xf32> to vector<8x256xf32>
    %31 = arith.addf %28, %30 : vector<8x256xf32>
    %cst_20 = arith.constant 0.000000e+00 : f32
    %32 = vector.broadcast %cst_20 : f32 to vector<8x256xf32>
    %33 = arith.maximumf %31, %32 : vector<8x256xf32>
    %34 = vector.shape_cast %33 : vector<8x256xf32> to vector<8x16x16xf32>
    %c0_21 = arith.constant 0 : index
    %c1_22 = arith.constant 1 : index
    %c1_23 = arith.constant 1 : index
    %35 = vector.load %arg10[%c0_21, %c1_22, %c1_23] : memref<8x18x18xf32, #tpu.memory_space<vmem>>, vector<8x16x16xf32>
    tpu.vector_store %arg10[%c0_21, %c1_22, %c1_23], %34 {strides = array<i32>} : memref<8x18x18xf32, #tpu.memory_space<vmem>>, vector<8x16x16xf32>,
    %c0_24 = arith.constant 0 : index
    %c0_25 = arith.constant 0 : index
    %c0_26 = arith.constant 0 : index
    %36 = vector.load %arg10[%c0_24, %c0_25, %c0_26] : memref<8x18x18xf32, #tpu.memory_space<vmem>>, vector<8x18x18xf32>
    %37 = vector.extract_strided_slice %36 {offsets = [0, 0, 0], sizes = [8, 16, 16], strides = [1, 1, 1]} : vector<8x18x18xf32> to vector<8x16x16xf32>
    %38 = vector.shape_cast %37 : vector<8x16x16xf32> to vector<8x256xf32>
    %39 = vector.extract_strided_slice %36 {offsets = [0, 0, 1], sizes = [8, 16, 16], strides = [1, 1, 1]} : vector<8x18x18xf32> to vector<8x16x16xf32>
    %40 = vector.shape_cast %39 : vector<8x16x16xf32> to vector<8x256xf32>
    %41 = vector.extract_strided_slice %36 {offsets = [0, 0, 2], sizes = [8, 16, 16], strides = [1, 1, 1]} : vector<8x18x18xf32> to vector<8x16x16xf32>
    %42 = vector.shape_cast %41 : vector<8x16x16xf32> to vector<8x256xf32>
    %43 = vector.extract_strided_slice %36 {offsets = [0, 1, 0], sizes = [8, 16, 16], strides = [1, 1, 1]} : vector<8x18x18xf32> to vector<8x16x16xf32>
    %44 = vector.shape_cast %43 : vector<8x16x16xf32> to vector<8x256xf32>
    %45 = vector.extract_strided_slice %36 {offsets = [0, 1, 1], sizes = [8, 16, 16], strides = [1, 1, 1]} : vector<8x18x18xf32> to vector<8x16x16xf32>
    %46 = vector.shape_cast %45 : vector<8x16x16xf32> to vector<8x256xf32>
    %47 = vector.extract_strided_slice %36 {offsets = [0, 1, 2], sizes = [8, 16, 16], strides = [1, 1, 1]} : vector<8x18x18xf32> to vector<8x16x16xf32>
    %48 = vector.shape_cast %47 : vector<8x16x16xf32> to vector<8x256xf32>
    %49 = vector.extract_strided_slice %36 {offsets = [0, 2, 0], sizes = [8, 16, 16], strides = [1, 1, 1]} : vector<8x18x18xf32> to vector<8x16x16xf32>
    %50 = vector.shape_cast %49 : vector<8x16x16xf32> to vector<8x256xf32>
    %51 = vector.extract_strided_slice %36 {offsets = [0, 2, 1], sizes = [8, 16, 16], strides = [1, 1, 1]} : vector<8x18x18xf32> to vector<8x16x16xf32>
    %52 = vector.shape_cast %51 : vector<8x16x16xf32> to vector<8x256xf32>
    %53 = vector.extract_strided_slice %36 {offsets = [0, 2, 2], sizes = [8, 16, 16], strides = [1, 1, 1]} : vector<8x18x18xf32> to vector<8x16x16xf32>
    %54 = vector.shape_cast %53 : vector<8x16x16xf32> to vector<8x256xf32>
    %55 = tpu.concatenate %38, %40, %42, %44, %46, %48, %50, %52, %54 in 0 : vector<8x256xf32>, vector<8x256xf32>, vector<8x256xf32>, vector<8x256xf32>, vector<8x256xf32>, vector<8x256xf32>, vector<8x256xf32>, vector<8x256xf32>, vector<8x256xf32> -> vector<72x256xf32>
    %c0_27 = arith.constant 0 : index
    %c0_28 = arith.constant 0 : index
    %56 = vector.load %arg4[%c0_27, %c0_28] : memref<8x72xf32, #tpu.memory_space<vmem>>, vector<8x72xf32>
    %cst_29 = arith.constant dense<0.000000e+00> : vector<8x256xf32>
    %57 = tpu.matmul %56, %55, %cst_29 {dimension_numbers = #tpu.dot_dimension_numbers<[1], [0], [0], [1], [0, 0, 1, 1], [], []>} : vector<8x72xf32>, vector<72x256xf32>, vector<8x256xf32> -> vector<8x256xf32>
    %c0_30 = arith.constant 0 : index
    %c0_31 = arith.constant 0 : index
    %58 = vector.load %arg5[%c0_30, %c0_31] : memref<8x1xf32, #tpu.memory_space<vmem>>, vector<8x1xf32>
    %59 = vector.broadcast %58 : vector<8x1xf32> to vector<8x256xf32>
    %60 = arith.addf %57, %59 : vector<8x256xf32>
    %cst_32 = arith.constant 0.000000e+00 : f32
    %61 = vector.broadcast %cst_32 : f32 to vector<8x256xf32>
    %62 = arith.maximumf %60, %61 : vector<8x256xf32>
    %cst_33 = arith.constant dense<0.000000e+00> : vector<8xf32>
    %63 = vector.multi_reduction <add>, %62, %cst_33 [1] : vector<8x256xf32> to vector<8xf32>
    %64 = vector.shape_cast %63 : vector<8xf32> to vector<8x1xf32>
    %cst_34 = arith.constant 2.560000e+02 : f32
    %65 = vector.broadcast %cst_34 : f32 to vector<8x1xf32>
    %66 = arith.divf %64, %65 : vector<8x1xf32>
    %c0_35 = arith.constant 0 : index
    %c0_36 = arith.constant 0 : index
    %67 = vector.load %arg6[%c0_35, %c0_36] : memref<8x32xf32, #tpu.memory_space<vmem>>, vector<8x32xf32>
    %68 = vector.broadcast %66 : vector<8x1xf32> to vector<8x32xf32>
    %69 = arith.mulf %67, %68 : vector<8x32xf32>
    %cst_37 = arith.constant dense<0.000000e+00> : vector<32xf32>
    %70 = vector.multi_reduction <add>, %69, %cst_37 [0] : vector<8x32xf32> to vector<32xf32>
    %71 = vector.shape_cast %70 : vector<32xf32> to vector<1x32xf32>
    %c0_38 = arith.constant 0 : index
    %c0_39 = arith.constant 0 : index
    %72 = vector.load %arg7[%c0_38, %c0_39] : memref<1x32xf32, #tpu.memory_space<vmem>>, vector<1x32xf32>
    %73 = arith.addf %71, %72 : vector<1x32xf32>
    %cst_40 = arith.constant 0.000000e+00 : f32
    %74 = vector.broadcast %cst_40 : f32 to vector<1x32xf32>
    %75 = arith.maximumf %73, %74 : vector<1x32xf32>
    %c0_41 = arith.constant 0 : index
    %c0_42 = arith.constant 0 : index
    %c0_43 = arith.constant 0 : index
    %76 = vector.load %arg8[%c0_41, %c0_42, %c0_43] : memref<1x1x32xf32, #tpu.memory_space<vmem>>, vector<1x1x32xf32>
    %77 = vector.shape_cast %76 : vector<1x1x32xf32> to vector<1x32xf32>
    %78 = vector.shape_cast %75 : vector<1x32xf32> to vector<1x1x32xf32>
    tpu.vector_store %arg8[%c0_41, %c0_42, %c0_43], %78 {strides = array<i32>} : memref<1x1x32xf32, #tpu.memory_space<vmem>>, vector<1x1x32xf32>,
    return
  }
  func.func @transform_0(%arg0: i32) -> (i32, i32, i32, i32) {
    %c0_i32 = arith.constant 0 : i32
    %c0_i32_0 = arith.constant 0 : i32
    %c0_i32_1 = arith.constant 0 : i32
    %c0_i32_2 = arith.constant 0 : i32
    return %arg0, %c0_i32, %c0_i32_0, %c0_i32_1 : i32, i32, i32, i32
  }
  func.func @transform_1(%arg0: i32) -> (i32, i32) {
    %c0_i32 = arith.constant 0 : i32
    %c0_i32_0 = arith.constant 0 : i32
    %c0_i32_1 = arith.constant 0 : i32
    return %c0_i32, %c0_i32_0 : i32, i32
  }
  func.func @transform_2(%arg0: i32) -> (i32, i32) {
    %c0_i32 = arith.constant 0 : i32
    %c0_i32_0 = arith.constant 0 : i32
    %c0_i32_1 = arith.constant 0 : i32
    return %c0_i32, %c0_i32_0 : i32, i32
  }
  func.func @transform_3(%arg0: i32) -> (i32, i32) {
    %c0_i32 = arith.constant 0 : i32
    %c0_i32_0 = arith.constant 0 : i32
    %c0_i32_1 = arith.constant 0 : i32
    return %c0_i32, %c0_i32_0 : i32, i32
  }
  func.func @transform_4(%arg0: i32) -> (i32, i32) {
    %c0_i32 = arith.constant 0 : i32
    %c0_i32_0 = arith.constant 0 : i32
    %c0_i32_1 = arith.constant 0 : i32
    return %c0_i32, %c0_i32_0 : i32, i32
  }
  func.func @transform_5(%arg0: i32) -> (i32, i32) {
    %c0_i32 = arith.constant 0 : i32
    %c0_i32_0 = arith.constant 0 : i32
    %c0_i32_1 = arith.constant 0 : i32
    return %c0_i32, %c0_i32_0 : i32, i32
  }
  func.func @transform_6(%arg0: i32) -> (i32, i32) {
    %c0_i32 = arith.constant 0 : i32
    %c0_i32_0 = arith.constant 0 : i32
    %c0_i32_1 = arith.constant 0 : i32
    return %c0_i32, %c0_i32_0 : i32, i32
  }
  func.func @transform_7(%arg0: i32) -> (i32, i32, i32) {
    %c0_i32 = arith.constant 0 : i32
    %c0_i32_0 = arith.constant 0 : i32
    %c0_i32_1 = arith.constant 0 : i32
    return %arg0, %c0_i32, %c0_i32_0 : i32, i32, i32
  }
}

</mosaic_0001>

<llo_original>
// kernel: two_views_top_breast_classifier.1
$region0: #{two_views_top_breast_classifier.1}
  #allocation0 [shape = 'u32[]', space=smem, size = 0x4, offset = 0x4, fixed_abs, tag = 'smem constant byte address 0x4 - core index']
  #allocation1 [shape = 'u32[144,128]{1,0:T(1,128)}', space=vmem, size = 0x12000, scoped, tag = 'internal scratch']
  #allocation2 [shape = 'f32[3,18,18]{2,1,0:T(8,128)}', space=vmem, size = 0x9000, scoped, tag = 'scratch operand']
  #allocation3 [shape = 'f32[8,18,18]{2,1,0:T(8,128)}', space=vmem, size = 0x18000, scoped, tag = 'scratch operand']
  %s0 = inlined_call_operand.vmem [shape: f32[4,3,16,16], index: 0, kind: input, shape index: {}]
  %s1 = inlined_call_operand.vmem [shape: f32[8,27], index: 1, kind: input, shape index: {}]
  %s2 = inlined_call_operand.vmem [shape: f32[8,1], index: 2, kind: input, shape index: {}]
  %s3 = inlined_call_operand.vmem [shape: f32[8,72], index: 3, kind: input, shape index: {}]
  %s4 = inlined_call_operand.vmem [shape: f32[8,1], index: 4, kind: input, shape index: {}]
  %s5 = inlined_call_operand.vmem [shape: f32[8,32], index: 5, kind: input, shape index: {}]
  %s6 = inlined_call_operand.vmem [shape: f32[1,32], index: 6, kind: input, shape index: {}]
  %s7 = inlined_call_operand.vmem [shape: f32[4,1,32], index: 7, kind: output, shape index: {}]
  %s8 = sld [smem:[#allocation0]]
  $region61: #{two_views_top_breast_classifier.1} parent=0
    _
  %s10 = ssub.s32 1, %s8
  %s11 = scalar_select 0, %s10, %s8
  loop: start=0, step=1, limit=6
  $region2: #{two_views_top_breast_classifier.1} parent=0 // loop_pre_header
    _
  $region3: #{two_views_top_breast_classifier.1} parent=0 // loop_header
    %s13 = sphi 0, %s17
    %p14 = scmp.ge.s32.totalorder %s13, 6
    %s23 = sphi 0, %s25
    %s26 = sphi 0, %s23
    %s27 = sphi 0, %s26
    %s43 = sphi 0, %s27
    %s47 = sphi 0, %s47
    %s49 = sphi 0, %s47
    %s50 = sphi 0, %s49
    %s64 = sphi 0, %s50
    %s68 = sphi 0, %s68
    %s70 = sphi 0, %s68
    %s71 = sphi 0, %s70
    %s85 = sphi 0, %s71
    %s89 = sphi 0, %s89
    %s91 = sphi 0, %s89
    %s92 = sphi 0, %s91
    %s106 = sphi 0, %s92
    %s110 = sphi 0, %s110
    %s112 = sphi 0, %s110
    %s113 = sphi 0, %s112
    %s127 = sphi 0, %s113
    %s131 = sphi 0, %s131
    %s133 = sphi 0, %s131
    %s134 = sphi 0, %s133
    %s148 = sphi 0, %s134
    %s152 = sphi 0, %s152
    %s154 = sphi 0, %s152
    %s155 = sphi 0, %s154
    %s169 = sphi 0, %s155
    %s175 = sphi 0, %s177
    %s178 = sphi 0, %s175
    %s179 = sphi 0, %s178
    %s195 = sphi 0, %s179
  $region4: #{two_views_top_breast_classifier.1} parent=0 // loop_header_branch
    %16 = sbr.rel (%p14) target = $region8
  $region5: #{two_views_top_breast_classifier.1} parent=0 // loop_body
    %s18 = ssub.s32 %s13, 1
    %s19 = ssub.s32 %s13, 2
    %s20 = sadd.s32 %s13, 1
    %s21 = ssub.s32 %s13, %s20
    %p22 = scmp.eq.s32.totalorder %s21, 0
    %s24 = sadd.s32 %s23, 1
    %s25 = scalar_select %p22, %s23, %s24
    %p28 = pneg %p22
    %p29 = scmp.eq.s32.totalorder %s13, 3
    %p30 = por %p28, %p29
    %p31 = scmp.ne.s32.totalorder %s23, %s26
    %p32 = scmp.eq.s32.totalorder %s13, 0
    %p33 = por %p31, %p32
    %p34 = scmp.ne.s32.totalorder %s23, %s26
    %p35 = scmp.eq.s32.totalorder %s18, 3
    %p36 = por %p34, %p35
    %p37 = scmp.ne.s32.totalorder %s26, %s27
    %p38 = scmp.eq.s32.totalorder %s18, 0
    %p39 = por %p37, %p38
    %p40 = scmp.ne.s32.totalorder %s26, %s27
    %p41 = scmp.eq.s32.totalorder %s19, 3
    %p42 = por %p40, %p41
    %p44 = scmp.ne.s32.totalorder %s27, %s43
    %p45 = scmp.eq.s32.totalorder %s19, 0
    %p46 = por %p44, %p45
    %s48 = sadd.s32 %s47, 1
    %p51 = scmp.eq.s32.totalorder %s13, 3
    %p52 = scmp.ne.s32.totalorder %s47, %s49
    %p53 = scmp.eq.s32.totalorder %s13, 0
    %p54 = por %p52, %p53
    %p55 = scmp.ne.s32.totalorder %s47, %s49
    %p56 = scmp.eq.s32.totalorder %s18, 3
    %p57 = por %p55, %p56
    %p58 = scmp.ne.s32.totalorder %s49, %s50
    %p59 = scmp.eq.s32.totalorder %s18, 0
    %p60 = por %p58, %p59
    %p61 = scmp.ne.s32.totalorder %s49, %s50
    %p62 = scmp.eq.s32.totalorder %s19, 3
    %p63 = por %p61, %p62
    %p65 = scmp.ne.s32.totalorder %s50, %s64
    %p66 = scmp.eq.s32.totalorder %s19, 0
    %p67 = por %p65, %p66
    %s69 = sadd.s32 %s68, 1
    %p72 = scmp.eq.s32.totalorder %s13, 3
    %p73 = scmp.ne.s32.totalorder %s68, %s70
    %p74 = scmp.eq.s32.totalorder %s13, 0
    %p75 = por %p73, %p74
    %p76 = scmp.ne.s32.totalorder %s68, %s70
    %p77 = scmp.eq.s32.totalorder %s18, 3
    %p78 = por %p76, %p77
    %p79 = scmp.ne.s32.totalorder %s70, %s71
    %p80 = scmp.eq.s32.totalorder %s18, 0
    %p81 = por %p79, %p80
    %p82 = scmp.ne.s32.totalorder %s70, %s71
    %p83 = scmp.eq.s32.totalorder %s19, 3
    %p84 = por %p82, %p83
    %p86 = scmp.ne.s32.totalorder %s71, %s85
    %p87 = scmp.eq.s32.totalorder %s19, 0
    %p88 = por %p86, %p87
    %s90 = sadd.s32 %s89, 1
    %p93 = scmp.eq.s32.totalorder %s13, 3
    %p94 = scmp.ne.s32.totalorder %s89, %s91
    %p95 = scmp.eq.s32.totalorder %s13, 0
    %p96 = por %p94, %p95
    %p97 = scmp.ne.s32.totalorder %s89, %s91
    %p98 = scmp.eq.s32.totalorder %s18, 3
    %p99 = por %p97, %p98
    %p100 = scmp.ne.s32.totalorder %s91, %s92
    %p101 = scmp.eq.s32.totalorder %s18, 0
    %p102 = por %p100, %p101
    %p103 = scmp.ne.s32.totalorder %s91, %s92
    %p104 = scmp.eq.s32.totalorder %s19, 3
    %p105 = por %p103, %p104
    %p107 = scmp.ne.s32.totalorder %s92, %s106
    %p108 = scmp.eq.s32.totalorder %s19, 0
    %p109 = por %p107, %p108
    %s111 = sadd.s32 %s110, 1
    %p114 = scmp.eq.s32.totalorder %s13, 3
    %p115 = scmp.ne.s32.totalorder %s110, %s112
    %p116 = scmp.eq.s32.totalorder %s13, 0
    %p117 = por %p115, %p116
    %p118 = scmp.ne.s32.totalorder %s110, %s112
    %p119 = scmp.eq.s32.totalorder %s18, 3
    %p120 = por %p118, %p119
    %p121 = scmp.ne.s32.totalorder %s112, %s113
    %p122 = scmp.eq.s32.totalorder %s18, 0
    %p123 = por %p121, %p122
    %p124 = scmp.ne.s32.totalorder %s112, %s113
    %p125 = scmp.eq.s32.totalorder %s19, 3
    %p126 = por %p124, %p125
    %p128 = scmp.ne.s32.totalorder %s113, %s127
    %p129 = scmp.eq.s32.totalorder %s19, 0
    %p130 = por %p128, %p129
    %s132 = sadd.s32 %s131, 1
    %p135 = scmp.eq.s32.totalorder %s13, 3
    %p136 = scmp.ne.s32.totalorder %s131, %s133
    %p137 = scmp.eq.s32.totalorder %s13, 0
    %p138 = por %p136, %p137
    %p139 = scmp.ne.s32.totalorder %s131, %s133
    %p140 = scmp.eq.s32.totalorder %s18, 3
    %p141 = por %p139, %p140
    %p142 = scmp.ne.s32.totalorder %s133, %s134
    %p143 = scmp.eq.s32.totalorder %s18, 0
    %p144 = por %p142, %p143
    %p145 = scmp.ne.s32.totalorder %s133, %s134
    %p146 = scmp.eq.s32.totalorder %s19, 3
    %p147 = por %p145, %p146
    %p149 = scmp.ne.s32.totalorder %s134, %s148
    %p150 = scmp.eq.s32.totalorder %s19, 0
    %p151 = por %p149, %p150
    %s153 = sadd.s32 %s152, 1
    %p156 = scmp.eq.s32.totalorder %s13, 3
    %p157 = scmp.ne.s32.totalorder %s152, %s154
    %p158 = scmp.eq.s32.totalorder %s13, 0
    %p159 = por %p157, %p158
    %p160 = scmp.ne.s32.totalorder %s152, %s154
    %p161 = scmp.eq.s32.totalorder %s18, 3
    %p162 = por %p160, %p161
    %p163 = scmp.ne.s32.totalorder %s154, %s155
    %p164 = scmp.eq.s32.totalorder %s18, 0
    %p165 = por %p163, %p164
    %p166 = scmp.ne.s32.totalorder %s154, %s155
    %p167 = scmp.eq.s32.totalorder %s19, 3
    %p168 = por %p166, %p167
    %p170 = scmp.ne.s32.totalorder %s155, %s169
    %p171 = scmp.eq.s32.totalorder %s19, 0
    %p172 = por %p170, %p171
    %s173 = ssub.s32 %s13, %s20
    %p174 = scmp.eq.s32.totalorder %s173, 0
    %s176 = sadd.s32 %s175, 1
    %s177 = scalar_select %p174, %s175, %s176
    %p180 = pneg %p174
    %p181 = scmp.eq.s32.totalorder %s13, 3
    %p182 = por %p180, %p181
    %p183 = scmp.ne.s32.totalorder %s175, %s178
    %p184 = scmp.eq.s32.totalorder %s13, 0
    %p185 = por %p183, %p184
    %p186 = scmp.ne.s32.totalorder %s175, %s178
    %p187 = scmp.eq.s32.totalorder %s18, 3
    %p188 = por %p186, %p187
    %p189 = scmp.ne.s32.totalorder %s178, %s179
    %p190 = scmp.eq.s32.totalorder %s18, 0
    %p191 = por %p189, %p190
    %p192 = scmp.ne.s32.totalorder %s178, %s179
    %p193 = scmp.eq.s32.totalorder %s19, 3
    %p194 = por %p192, %p193
    %p196 = scmp.ne.s32.totalorder %s179, %s195
    %p197 = scmp.eq.s32.totalorder %s19, 0
    %p198 = por %p196, %p197
    %p199 = scmp.le.s32.totalorder 1, %s13
    %p200 = scmp.lt.s32.totalorder %s13, 5
    %p201 = pnand %p199, %p200
    %p202 = pneg %p201
    // Predicated region
    $region9: #{two_views_top_breast_classifier.1} parent=5 // pred_check
      _
    $region10: #{two_views_top_breast_classifier.1} parent=5 // pred_check_branch
      %204 = sbr.rel (%p201) target = $region12
    $region11: #{two_views_top_breast_classifier.1} parent=5 // pred_region
      %s205 = ssub.s32 %s13, 1
      // Predicated region
      $region13: #{two_views_top_breast_classifier.1} parent=11 // pred_check
        %p206 = pneg %p60
      $region14: #{two_views_top_breast_classifier.1} parent=11 // pred_check_branch
        %208 = sbr.rel (%p206) target = $region16
      $region15: #{two_views_top_breast_classifier.1} parent=11 // pred_region
        _
      $region16: #{two_views_top_breast_classifier.1} parent=11 // pred_fallthru
        _
      // Predicated region
      $region17: #{two_views_top_breast_classifier.1} parent=11 // pred_check
        %p209 = pneg %p81
      $region18: #{two_views_top_breast_classifier.1} parent=11 // pred_check_branch
        %211 = sbr.rel (%p209) target = $region20
      $region19: #{two_views_top_breast_classifier.1} parent=11 // pred_region
        _
      $region20: #{two_views_top_breast_classifier.1} parent=11 // pred_fallthru
        _
      // Predicated region
      $region21: #{two_views_top_breast_classifier.1} parent=11 // pred_check
        %p212 = pneg %p102
      $region22: #{two_views_top_breast_classifier.1} parent=11 // pred_check_branch
        %214 = sbr.rel (%p212) target = $region24
      $region23: #{two_views_top_breast_classifier.1} parent=11 // pred_region
        _
      $region24: #{two_views_top_breast_classifier.1} parent=11 // pred_fallthru
        _
      // Predicated region
      $region25: #{two_views_top_breast_classifier.1} parent=11 // pred_check
        %p215 = pneg %p123
      $region26: #{two_views_top_breast_classifier.1} parent=11 // pred_check_branch
        %217 = sbr.rel (%p215) target = $region28
      $region27: #{two_views_top_breast_classifier.1} parent=11 // pred_region
        _
      $region28: #{two_views_top_breast_classifier.1} parent=11 // pred_fallthru
        _
      // Predicated region
      $region29: #{two_views_top_breast_classifier.1} parent=11 // pred_check
        %p218 = pneg %p144
      $region30: #{two_views_top_breast_classifier.1} parent=11 // pred_check_branch
        %220 = sbr.rel (%p218) target = $region32
      $region31: #{two_views_top_breast_classifier.1} parent=11 // pred_region
        _
      $region32: #{two_views_top_breast_classifier.1} parent=11 // pred_fallthru
        _
      // Predicated region
      $region33: #{two_views_top_breast_classifier.1} parent=11 // pred_check
        %p221 = pneg %p165
      $region34: #{two_views_top_breast_classifier.1} parent=11 // pred_check_branch
        %223 = sbr.rel (%p221) target = $region36
      $region35: #{two_views_top_breast_classifier.1} parent=11 // pred_region
        _
      $region36: #{two_views_top_breast_classifier.1} parent=11 // pred_fallthru
        _
    $region12: #{two_views_top_breast_classifier.1} parent=5 // pred_fallthru
      _
    %p224 = scmp.lt.s32.totalorder %s13, 4
    // Predicated region
    $region37: #{two_views_top_breast_classifier.1} parent=5 // pred_check
      %p225 = pneg %p224
    $region38: #{two_views_top_breast_classifier.1} parent=5 // pred_check_branch
      %227 = sbr.rel (%p225) target = $region40
    $region39: #{two_views_top_breast_classifier.1} parent=5 // pred_region
      // Predicated region
      $region41: #{two_views_top_breast_classifier.1} parent=39 // pred_check
        %p228 = pneg %p33
      $region42: #{two_views_top_breast_classifier.1} parent=39 // pred_check_branch
        %230 = sbr.rel (%p228) target = $region44
      $region43: #{two_views_top_breast_classifier.1} parent=39 // pred_region
        %p231 = scmp.lt.s32.totalorder %s13, 3
        %s232 = scalar_select %p231, %s13, 3
        %s233 = smul.addr %s232, 6
        %s234 = smul.addr %s233, 8
        %s235 = scalar_lea.vmem %s0, %s234
      $region44: #{two_views_top_breast_classifier.1} parent=39 // pred_fallthru
        _
    $region40: #{two_views_top_breast_classifier.1} parent=5 // pred_fallthru
      _
    %p236 = scmp.le.s32.totalorder 1, %s13
    %p237 = scmp.lt.s32.totalorder %s13, 5
    %p238 = pnand %p236, %p237
    %p239 = pneg %p238
    // Predicated region
    $region45: #{two_views_top_breast_classifier.1} parent=5 // pred_check
      _
    $region46: #{two_views_top_breast_classifier.1} parent=5 // pred_check_branch
      %241 = sbr.rel (%p238) target = $region48
    $region47: #{two_views_top_breast_classifier.1} parent=5 // pred_region
      %s242 = ssub.s32 %s13, 1
      %p243 = scmp.lt.s32.totalorder %s18, 3
      %s244 = scalar_select %p243, %s18, 3
      %s245 = smul.addr %s244, 6
      %s246 = smul.addr %s245, 8
      %s247 = scalar_lea.vmem %s0, %s246
      %p248 = pneg %p39
      %p249 = pneg %p36
      %p250 = pneg %p60
      %p251 = pneg %p57
      %p252 = pneg %p81
      %p253 = pneg %p78
      %p254 = pneg %p102
      %p255 = pneg %p99
      %p256 = pneg %p123
      %p257 = pneg %p120
      %p258 = pneg %p144
      %p259 = pneg %p141
      %p260 = pneg %p165
      %p261 = pneg %p162
      %p262 = pneg %p191
      %p263 = pneg %p188
      %p264 = scmp.lt.s32.totalorder %s18, 3
      %s265 = scalar_select %p264, %s18, 3
      %s266 = scalar_lea.vmem %s7, %s265
      %p267 = scmp.lt.s32.totalorder %s18, 3
      %s268 = scalar_select %p267, %s18, 3
      %s269 = smul.addr %s268, 6
      %s270 = smul.addr %s269, 8
      %s271 = scalar_lea.vmem %s0, %s270
      %p272 = scmp.lt.s32.totalorder %s18, 3
      %s273 = scalar_select %p272, %s18, 3
      %s274 = scalar_lea.vmem %s7, %s273
      %vm275 = vcmask 146432
      %276 = vst.msk [vmem:[#allocation2] sm:$0xff] %vm275, 0.0
      %277 = vst.msk [vmem:[#allocation2 + $0x8] sm:$0xff] %vm275, 0.0
      %vm278 = vcmask 140288
      %279 = vst.msk [vmem:[#allocation2 + $0x10] sm:$0x3] %vm278, 0.0
      %280 = vst.msk [vmem:[#allocation2 + $0x18] sm:$0xff] %vm275, 0.0
      %281 = vst.msk [vmem:[#allocation2 + $0x20] sm:$0xff] %vm275, 0.0
      %282 = vst.msk [vmem:[#allocation2 + $0x28] sm:$0x3] %vm278, 0.0
      %283 = vst.msk [vmem:[#allocation2 + $0x30] sm:$0xff] %vm275, 0.0
      %284 = vst.msk [vmem:[#allocation2 + $0x38] sm:$0xff] %vm275, 0.0
      %285 = vst.msk [vmem:[#allocation2 + $0x40] sm:$0x3] %vm278, 0.0
      %286 = vst.msk [vmem:[#allocation3] sm:$0xff] %vm275, 0.0
      %287 = vst.msk [vmem:[#allocation3 + $0x8] sm:$0xff] %vm275, 0.0
      %288 = vst.msk [vmem:[#allocation3 + $0x10] sm:$0x3] %vm278, 0.0
      %289 = vst.msk [vmem:[#allocation3 + $0x18] sm:$0xff] %vm275, 0.0
      %290 = vst.msk [vmem:[#allocation3 + $0x20] sm:$0xff] %vm275, 0.0
      %291 = vst.msk [vmem:[#allocation3 + $0x28] sm:$0x3] %vm278, 0.0
      %292 = vst.msk [vmem:[#allocation3 + $0x30] sm:$0xff] %vm275, 0.0
      %293 = vst.msk [vmem:[#allocation3 + $0x38] sm:$0xff] %vm275, 0.0
      %294 = vst.msk [vmem:[#allocation3 + $0x40] sm:$0x3] %vm278, 0.0
      %295 = vst.msk [vmem:[#allocation3 + $0x48] sm:$0xff] %vm275, 0.0
      %296 = vst.msk [vmem:[#allocation3 + $0x50] sm:$0xff] %vm275, 0.0
      %297 = vst.msk [vmem:[#allocation3 + $0x58] sm:$0x3] %vm278, 0.0
      %298 = vst.msk [vmem:[#allocation3 + $0x60] sm:$0xff] %vm275, 0.0
      %299 = vst.msk [vmem:[#allocation3 + $0x68] sm:$0xff] %vm275, 0.0
      %300 = vst.msk [vmem:[#allocation3 + $0x70] sm:$0x3] %vm278, 0.0
      %301 = vst.msk [vmem:[#allocation3 + $0x78] sm:$0xff] %vm275, 0.0
      %302 = vst.msk [vmem:[#allocation3 + $0x80] sm:$0xff] %vm275, 0.0
      %303 = vst.msk [vmem:[#allocation3 + $0x88] sm:$0x3] %vm278, 0.0
      %304 = vst.msk [vmem:[#allocation3 + $0x90] sm:$0xff] %vm275, 0.0
      %305 = vst.msk [vmem:[#allocation3 + $0x98] sm:$0xff] %vm275, 0.0
      %306 = vst.msk [vmem:[#allocation3 + $0xa0] sm:$0x3] %vm278, 0.0
      %307 = vst.msk [vmem:[#allocation3 + $0xa8] sm:$0xff] %vm275, 0.0
      %308 = vst.msk [vmem:[#allocation3 + $0xb0] sm:$0xff] %vm275, 0.0
      %309 = vst.msk [vmem:[#allocation3 + $0xb8] sm:$0x3] %vm278, 0.0
      %v310 = vld [vmem:[%s271] sm:$0xff]
      %v311 = vld [vmem:[%s271 + $0x8] sm:$0xff]
      %v312 = vld [vmem:[%s271 + $0x10] sm:$0xff]
      %v313 = vld [vmem:[%s271 + $0x18] sm:$0xff]
      %v314 = vld [vmem:[%s271 + $0x20] sm:$0xff]
      %v315 = vld [vmem:[%s271 + $0x28] sm:$0xff]
      %322 = vrot.lane.b32.xlu0 %v310, 1
      %v323 = vpop.permute.xlu0 %322
      %324 = vrot.lane.b32.xlu0 %v311, 1
      %v325 = vpop.permute.xlu0 %324
      %326 = vrot.lane.b32.xlu0 %v312, 1
      %v327 = vpop.permute.xlu0 %326
      %328 = vrot.lane.b32.xlu0 %v313, 1
      %v329 = vpop.permute.xlu0 %328
      %330 = vrot.lane.b32.xlu0 %v314, 1
      %v331 = vpop.permute.xlu0 %330
      %332 = vrot.lane.b32.xlu0 %v315, 1
      %v333 = vpop.permute.xlu0 %332
      %vm340 = vcmask 138248
      %341 = vst.msk [vmem:[#allocation2 + $0x1] sm:$0xff] %vm340, %v323
      %342 = vst.msk [vmem:[#allocation2 + $0x9] sm:$0xff] %vm340, %v325
      %343 = vst.msk [vmem:[#allocation2 + $0x19] sm:$0xff] %vm340, %v327
      %344 = vst.msk [vmem:[#allocation2 + $0x21] sm:$0xff] %vm340, %v329
      %345 = vst.msk [vmem:[#allocation2 + $0x31] sm:$0xff] %vm340, %v331
      %346 = vst.msk [vmem:[#allocation2 + $0x39] sm:$0xff] %vm340, %v333
      %v347 = vld [vmem:[#allocation2] sm:$0xff]
      %v348 = vld [vmem:[#allocation2 + $0x8] sm:$0xff]
      %v349 = vld [vmem:[#allocation2 + $0x10] sm:$0x3]
      %v350 = vld [vmem:[#allocation2 + $0x18] sm:$0xff]
      %v351 = vld [vmem:[#allocation2 + $0x20] sm:$0xff]
      %v352 = vld [vmem:[#allocation2 + $0x28] sm:$0x3]
      %v353 = vld [vmem:[#allocation2 + $0x30] sm:$0xff]
      %v354 = vld [vmem:[#allocation2 + $0x38] sm:$0xff]
      %v355 = vld [vmem:[#allocation2 + $0x40] sm:$0x3]
      %v356 = vcombine.low %v347, %v353
      %v357 = vcombine.high %v347, %v353
      %v359 = vunpack.c.l.s4 1983009808
      %v360 = vunpack.c.0.s8 %v359
      %v361 = vlaneseq
      %v362 = vshrl.u32 %v361, 7
      %v363 = vsub.s32 %v360, %v362
      %v364 = vrot.slane %v356, %v363
      %v366 = vunpack.c.l.s4 1983009808
      %v367 = vunpack.c.0.s8 %v366
      %v368 = vlaneseq
      %v369 = vshrl.u32 %v368, 7
      %v370 = vsub.s32 %v367, %v369
      %v371 = vrot.slane %v357, %v370
      %v372 = vcombine.high %v350, 0.0
      %v374 = vunpack.c.l.s4 1983009808
      %v375 = vunpack.c.0.s8 %v374
      %v376 = vlaneseq
      %v377 = vshrl.u32 %v376, 7
      %v378 = vsub.s32 %v375, %v377
      %v379 = vrot.slane %v350, %v378
      %v381 = vunpack.c.l.s4 1983009808
      %v382 = vunpack.c.0.s8 %v381
      %v383 = vlaneseq
      %v384 = vshrl.u32 %v383, 7
      %v385 = vsub.s32 %v382, %v384
      %v386 = vrot.slane %v372, %v385
      %v387 = vcombine.low %v364, %v379
      %v388 = vcombine.high %v364, %v379
      %v390 = vunpack.c.l.s4 1934713408
      %v391 = vunpack.c.0.s8 %v390
      %v392 = vlaneseq
      %v393 = vshrl.u32 %v392, 7
      %v394 = vsub.s32 %v391, %v393
      %v395 = vrot.slane %v387, %v394
      %v397 = vunpack.c.l.s4 1934713408
      %v398 = vunpack.c.0.s8 %v397
      %v399 = vlaneseq
      %v400 = vshrl.u32 %v399, 7
      %v401 = vsub.s32 %v398, %v400
      %v402 = vrot.slane %v388, %v401
      %v403 = vcombine.low %v371, %v386
      %v404 = vcombine.high %v371, %v386
      %v406 = vunpack.c.l.s4 1934713408
      %v407 = vunpack.c.0.s8 %v406
      %v408 = vlaneseq
      %v409 = vshrl.u32 %v408, 7
      %v410 = vsub.s32 %v407, %v409
      %v411 = vrot.slane %v403, %v410
      %v413 = vunpack.c.l.s4 1934713408
      %v414 = vunpack.c.0.s8 %v413
      %v415 = vlaneseq
      %v416 = vshrl.u32 %v415, 7
      %v417 = vsub.s32 %v414, %v416
      %v418 = vrot.slane %v404, %v417
      %v419 = vcombine.high %v395, 0.0
      %v420 = vcombine.high %v402, 0.0
      %v421 = vcombine.high %v411, 0.0
      %v422 = vcombine.high %v418, 0.0
      %v423 = vcombine.low %v348, %v354
      %v424 = vcombine.high %v348, %v354
      %v426 = vunpack.c.l.s4 1983009808
      %v427 = vunpack.c.0.s8 %v426
      %v428 = vlaneseq
      %v429 = vshrl.u32 %v428, 7
      %v430 = vsub.s32 %v427, %v429
      %v431 = vrot.slane %v423, %v430
      %v433 = vunpack.c.l.s4 1983009808
      %v434 = vunpack.c.0.s8 %v433
      %v435 = vlaneseq
      %v436 = vshrl.u32 %v435, 7
      %v437 = vsub.s32 %v434, %v436
      %v438 = vrot.slane %v424, %v437
      %v439 = vcombine.high %v351, 0.0
      %v441 = vunpack.c.l.s4 1983009808
      %v442 = vunpack.c.0.s8 %v441
      %v443 = vlaneseq
      %v444 = vshrl.u32 %v443, 7
      %v445 = vsub.s32 %v442, %v444
      %v446 = vrot.slane %v351, %v445
      %v448 = vunpack.c.l.s4 1983009808
      %v449 = vunpack.c.0.s8 %v448
      %v450 = vlaneseq
      %v451 = vshrl.u32 %v450, 7
      %v452 = vsub.s32 %v449, %v451
      %v453 = vrot.slane %v439, %v452
      %v454 = vcombine.low %v431, %v446
      %v455 = vcombine.high %v431, %v446
      %v457 = vunpack.c.l.s4 1934713408
      %v458 = vunpack.c.0.s8 %v457
      %v459 = vlaneseq
      %v460 = vshrl.u32 %v459, 7
      %v461 = vsub.s32 %v458, %v460
      %v462 = vrot.slane %v454, %v461
      %v464 = vunpack.c.l.s4 1934713408
      %v465 = vunpack.c.0.s8 %v464
      %v466 = vlaneseq
      %v467 = vshrl.u32 %v466, 7
      %v468 = vsub.s32 %v465, %v467
      %v469 = vrot.slane %v455, %v468
      %v470 = vcombine.low %v438, %v453
      %v471 = vcombine.high %v438, %v453
      %v473 = vunpack.c.l.s4 1934713408
      %v474 = vunpack.c.0.s8 %v473
      %v475 = vlaneseq
      %v476 = vshrl.u32 %v475, 7
      %v477 = vsub.s32 %v474, %v476
      %v478 = vrot.slane %v470, %v477
      %v480 = vunpack.c.l.s4 1934713408
      %v481 = vunpack.c.0.s8 %v480
      %v482 = vlaneseq
      %v483 = vshrl.u32 %v482, 7
      %v484 = vsub.s32 %v481, %v483
      %v485 = vrot.slane %v471, %v484
      %v486 = vcombine.high %v462, 0.0
      %v487 = vcombine.high %v469, 0.0
      %v488 = vcombine.high %v478, 0.0
      %v489 = vcombine.high %v485, 0.0
      %491 = vrot.lane.b32.xlu0 %v419, 16
      %v492 = vpop.permute.xlu0 %491
      %495 = vrot.lane.b32.xlu0 %v402, 32
      %v496 = vpop.permute.xlu0 %495
      %499 = vrot.lane.b32.xlu0 %v420, 48
      %v500 = vpop.permute.xlu0 %499
      %503 = vrot.lane.b32.xlu0 %v411, 64
      %v504 = vpop.permute.xlu0 %503
      %507 = vrot.lane.b32.xlu0 %v421, 80
      %v508 = vpop.permute.xlu0 %507
      %511 = vrot.lane.b32.xlu0 %v418, 96
      %v512 = vpop.permute.xlu0 %511
      %515 = vrot.lane.b32.xlu0 %v422, 112
      %v516 = vpop.permute.xlu0 %515
      %519 = vrot.lane.b32.xlu0 %v486, 16
      %v520 = vpop.permute.xlu0 %519
      %523 = vrot.lane.b32.xlu0 %v469, 32
      %v524 = vpop.permute.xlu0 %523
      %527 = vrot.lane.b32.xlu0 %v487, 48
      %v528 = vpop.permute.xlu0 %527
      %531 = vrot.lane.b32.xlu0 %v478, 64
      %v532 = vpop.permute.xlu0 %531
      %535 = vrot.lane.b32.xlu0 %v488, 80
      %v536 = vpop.permute.xlu0 %535
      %539 = vrot.lane.b32.xlu0 %v485, 96
      %v540 = vpop.permute.xlu0 %539
      %543 = vrot.lane.b32.xlu0 %v489, 112
      %v544 = vpop.permute.xlu0 %543
      %vm546 = vcmask 130048
      %v547 = vsel %vm546, %v395, %v492
      %vm548 = vcmask 261120
      %v549 = vsel %vm548, %v547, %v496
      %vm550 = vcmask 392192
      %v551 = vsel %vm550, %v549, %v500
      %vm552 = vcmask 523264
      %v553 = vsel %vm552, %v551, %v504
      %vm554 = vcmask 654336
      %v555 = vsel %vm554, %v553, %v508
      %vm556 = vcmask 785408
      %v557 = vsel %vm556, %v555, %v512
      %vm558 = vcmask 916480
      %v559 = vsel %vm558, %v557, %v516
      %v560 = vsel %vm546, %v462, %v520
      %v561 = vsel %vm548, %v560, %v524
      %v562 = vsel %vm550, %v561, %v528
      %v563 = vsel %vm552, %v562, %v532
      %v564 = vsel %vm554, %v563, %v536
      %v565 = vsel %vm556, %v564, %v540
      %v566 = vsel %vm558, %v565, %v544
      %573 = vrot.lane.b32.xlu0 %v347, 127
      %v574 = vpop.permute.xlu0 %573
      %575 = vrot.lane.b32.xlu0 %v348, 127
      %v576 = vpop.permute.xlu0 %575
      %577 = vrot.lane.b32.xlu0 %v350, 127
      %v578 = vpop.permute.xlu0 %577
      %579 = vrot.lane.b32.xlu0 %v351, 127
      %v580 = vpop.permute.xlu0 %579
      %581 = vrot.lane.b32.xlu0 %v353, 127
      %v582 = vpop.permute.xlu0 %581
      %583 = vrot.lane.b32.xlu0 %v354, 127
      %v584 = vpop.permute.xlu0 %583
      %v591 = vcombine.low %v574, %v582
      %v592 = vcombine.high %v574, %v582
      %v594 = vunpack.c.l.s4 1983009808
      %v595 = vunpack.c.0.s8 %v594
      %v596 = vlaneseq
      %v597 = vshrl.u32 %v596, 7
      %v598 = vsub.s32 %v595, %v597
      %v599 = vrot.slane %v591, %v598
      %v601 = vunpack.c.l.s4 1983009808
      %v602 = vunpack.c.0.s8 %v601
      %v603 = vlaneseq
      %v604 = vshrl.u32 %v603, 7
      %v605 = vsub.s32 %v602, %v604
      %v606 = vrot.slane %v592, %v605
      %v607 = vcombine.high %v578, 0.0
      %v609 = vunpack.c.l.s4 1983009808
      %v610 = vunpack.c.0.s8 %v609
      %v611 = vlaneseq
      %v612 = vshrl.u32 %v611, 7
      %v613 = vsub.s32 %v610, %v612
      %v614 = vrot.slane %v578, %v613
      %v616 = vunpack.c.l.s4 1983009808
      %v617 = vunpack.c.0.s8 %v616
      %v618 = vlaneseq
      %v619 = vshrl.u32 %v618, 7
      %v620 = vsub.s32 %v617, %v619
      %v621 = vrot.slane %v607, %v620
      %v622 = vcombine.low %v599, %v614
      %v623 = vcombine.high %v599, %v614
      %v625 = vunpack.c.l.s4 1934713408
      %v626 = vunpack.c.0.s8 %v625
      %v627 = vlaneseq
      %v628 = vshrl.u32 %v627, 7
      %v629 = vsub.s32 %v626, %v628
      %v630 = vrot.slane %v622, %v629
      %v632 = vunpack.c.l.s4 1934713408
      %v633 = vunpack.c.0.s8 %v632
      %v634 = vlaneseq
      %v635 = vshrl.u32 %v634, 7
      %v636 = vsub.s32 %v633, %v635
      %v637 = vrot.slane %v623, %v636
      %v638 = vcombine.low %v606, %v621
      %v639 = vcombine.high %v606, %v621
      %v641 = vunpack.c.l.s4 1934713408
      %v642 = vunpack.c.0.s8 %v641
      %v643 = vlaneseq
      %v644 = vshrl.u32 %v643, 7
      %v645 = vsub.s32 %v642, %v644
      %v646 = vrot.slane %v638, %v645
      %v648 = vunpack.c.l.s4 1934713408
      %v649 = vunpack.c.0.s8 %v648
      %v650 = vlaneseq
      %v651 = vshrl.u32 %v650, 7
      %v652 = vsub.s32 %v649, %v651
      %v653 = vrot.slane %v639, %v652
      %v654 = vcombine.high %v630, 0.0
      %v655 = vcombine.high %v637, 0.0
      %v656 = vcombine.high %v646, 0.0
      %v657 = vcombine.high %v653, 0.0
      %v658 = vcombine.low %v576, %v584
      %v659 = vcombine.high %v576, %v584
      %v661 = vunpack.c.l.s4 1983009808
      %v662 = vunpack.c.0.s8 %v661
      %v663 = vlaneseq
      %v664 = vshrl.u32 %v663, 7
      %v665 = vsub.s32 %v662, %v664
      %v666 = vrot.slane %v658, %v665
      %v668 = vunpack.c.l.s4 1983009808
      %v669 = vunpack.c.0.s8 %v668
      %v670 = vlaneseq
      %v671 = vshrl.u32 %v670, 7
      %v672 = vsub.s32 %v669, %v671
      %v673 = vrot.slane %v659, %v672
      %v674 = vcombine.high %v580, 0.0
      %v676 = vunpack.c.l.s4 1983009808
      %v677 = vunpack.c.0.s8 %v676
      %v678 = vlaneseq
      %v679 = vshrl.u32 %v678, 7
      %v680 = vsub.s32 %v677, %v679
      %v681 = vrot.slane %v580, %v680
      %v683 = vunpack.c.l.s4 1983009808
      %v684 = vunpack.c.0.s8 %v683
      %v685 = vlaneseq
      %v686 = vshrl.u32 %v685, 7
      %v687 = vsub.s32 %v684, %v686
      %v688 = vrot.slane %v674, %v687
      %v689 = vcombine.low %v666, %v681
      %v690 = vcombine.high %v666, %v681
      %v692 = vunpack.c.l.s4 1934713408
      %v693 = vunpack.c.0.s8 %v692
      %v694 = vlaneseq
      %v695 = vshrl.u32 %v694, 7
      %v696 = vsub.s32 %v693, %v695
      %v697 = vrot.slane %v689, %v696
      %v699 = vunpack.c.l.s4 1934713408
      %v700 = vunpack.c.0.s8 %v699
      %v701 = vlaneseq
      %v702 = vshrl.u32 %v701, 7
      %v703 = vsub.s32 %v700, %v702
      %v704 = vrot.slane %v690, %v703
      %v705 = vcombine.low %v673, %v688
      %v706 = vcombine.high %v673, %v688
      %v708 = vunpack.c.l.s4 1934713408
      %v709 = vunpack.c.0.s8 %v708
      %v710 = vlaneseq
      %v711 = vshrl.u32 %v710, 7
      %v712 = vsub.s32 %v709, %v711
      %v713 = vrot.slane %v705, %v712
      %v715 = vunpack.c.l.s4 1934713408
      %v716 = vunpack.c.0.s8 %v715
      %v717 = vlaneseq
      %v718 = vshrl.u32 %v717, 7
      %v719 = vsub.s32 %v716, %v718
      %v720 = vrot.slane %v706, %v719
      %v721 = vcombine.high %v697, 0.0
      %v722 = vcombine.high %v704, 0.0
      %v723 = vcombine.high %v713, 0.0
      %v724 = vcombine.high %v720, 0.0
      %726 = vrot.lane.b32.xlu0 %v654, 16
      %v727 = vpop.permute.xlu0 %726
      %730 = vrot.lane.b32.xlu0 %v637, 32
      %v731 = vpop.permute.xlu0 %730
      %734 = vrot.lane.b32.xlu0 %v655, 48
      %v735 = vpop.permute.xlu0 %734
      %738 = vrot.lane.b32.xlu0 %v646, 64
      %v739 = vpop.permute.xlu0 %738
      %742 = vrot.lane.b32.xlu0 %v656, 80
      %v743 = vpop.permute.xlu0 %742
      %746 = vrot.lane.b32.xlu0 %v653, 96
      %v747 = vpop.permute.xlu0 %746
      %750 = vrot.lane.b32.xlu0 %v657, 112
      %v751 = vpop.permute.xlu0 %750
      %754 = vrot.lane.b32.xlu0 %v721, 16
      %v755 = vpop.permute.xlu0 %754
      %758 = vrot.lane.b32.xlu0 %v704, 32
      %v759 = vpop.permute.xlu0 %758
      %762 = vrot.lane.b32.xlu0 %v722, 48
      %v763 = vpop.permute.xlu0 %762
      %766 = vrot.lane.b32.xlu0 %v713, 64
      %v767 = vpop.permute.xlu0 %766
      %770 = vrot.lane.b32.xlu0 %v723, 80
      %v771 = vpop.permute.xlu0 %770
      %774 = vrot.lane.b32.xlu0 %v720, 96
      %v775 = vpop.permute.xlu0 %774
      %778 = vrot.lane.b32.xlu0 %v724, 112
      %v779 = vpop.permute.xlu0 %778
      %v781 = vsel %vm546, %v630, %v727
      %v782 = vsel %vm548, %v781, %v731
      %v783 = vsel %vm550, %v782, %v735
      %v784 = vsel %vm552, %v783, %v739
      %v785 = vsel %vm554, %v784, %v743
      %v786 = vsel %vm556, %v785, %v747
      %v787 = vsel %vm558, %v786, %v751
      %v788 = vsel %vm546, %v697, %v755
      %v789 = vsel %vm548, %v788, %v759
      %v790 = vsel %vm550, %v789, %v763
      %v791 = vsel %vm552, %v790, %v767
      %v792 = vsel %vm554, %v791, %v771
      %v793 = vsel %vm556, %v792, %v775
      %v794 = vsel %vm558, %v793, %v779
      %795 = vrot.lane.b32.xlu0 %v347, 126
      %v796 = vpop.permute.xlu0 %795
      %797 = vrot.lane.b32.xlu0 %v348, 126
      %v798 = vpop.permute.xlu0 %797
      %799 = vrot.lane.b32.xlu0 %v350, 126
      %v800 = vpop.permute.xlu0 %799
      %801 = vrot.lane.b32.xlu0 %v351, 126
      %v802 = vpop.permute.xlu0 %801
      %803 = vrot.lane.b32.xlu0 %v353, 126
      %v804 = vpop.permute.xlu0 %803
      %805 = vrot.lane.b32.xlu0 %v354, 126
      %v806 = vpop.permute.xlu0 %805
      %v813 = vcombine.low %v796, %v804
      %v814 = vcombine.high %v796, %v804
      %v816 = vunpack.c.l.s4 1983009808
      %v817 = vunpack.c.0.s8 %v816
      %v818 = vlaneseq
      %v819 = vshrl.u32 %v818, 7
      %v820 = vsub.s32 %v817, %v819
      %v821 = vrot.slane %v813, %v820
      %v823 = vunpack.c.l.s4 1983009808
      %v824 = vunpack.c.0.s8 %v823
      %v825 = vlaneseq
      %v826 = vshrl.u32 %v825, 7
      %v827 = vsub.s32 %v824, %v826
      %v828 = vrot.slane %v814, %v827
      %v829 = vcombine.high %v800, 0.0
      %v831 = vunpack.c.l.s4 1983009808
      %v832 = vunpack.c.0.s8 %v831
      %v833 = vlaneseq
      %v834 = vshrl.u32 %v833, 7
      %v835 = vsub.s32 %v832, %v834
      %v836 = vrot.slane %v800, %v835
      %v838 = vunpack.c.l.s4 1983009808
      %v839 = vunpack.c.0.s8 %v838
      %v840 = vlaneseq
      %v841 = vshrl.u32 %v840, 7
      %v842 = vsub.s32 %v839, %v841
      %v843 = vrot.slane %v829, %v842
      %v844 = vcombine.low %v821, %v836
      %v845 = vcombine.high %v821, %v836
      %v847 = vunpack.c.l.s4 1934713408
      %v848 = vunpack.c.0.s8 %v847
      %v849 = vlaneseq
      %v850 = vshrl.u32 %v849, 7
      %v851 = vsub.s32 %v848, %v850
      %v852 = vrot.slane %v844, %v851
      %v854 = vunpack.c.l.s4 1934713408
      %v855 = vunpack.c.0.s8 %v854
      %v856 = vlaneseq
      %v857 = vshrl.u32 %v856, 7
      %v858 = vsub.s32 %v855, %v857
      %v859 = vrot.slane %v845, %v858
      %v860 = vcombine.low %v828, %v843
      %v861 = vcombine.high %v828, %v843
      %v863 = vunpack.c.l.s4 1934713408
      %v864 = vunpack.c.0.s8 %v863
      %v865 = vlaneseq
      %v866 = vshrl.u32 %v865, 7
      %v867 = vsub.s32 %v864, %v866
      %v868 = vrot.slane %v860, %v867
      %v870 = vunpack.c.l.s4 1934713408
      %v871 = vunpack.c.0.s8 %v870
      %v872 = vlaneseq
      %v873 = vshrl.u32 %v872, 7
      %v874 = vsub.s32 %v871, %v873
      %v875 = vrot.slane %v861, %v874
      %v876 = vcombine.high %v852, 0.0
      %v877 = vcombine.high %v859, 0.0
      %v878 = vcombine.high %v868, 0.0
      %v879 = vcombine.high %v875, 0.0
      %v880 = vcombine.low %v798, %v806
      %v881 = vcombine.high %v798, %v806
      %v883 = vunpack.c.l.s4 1983009808
      %v884 = vunpack.c.0.s8 %v883
      %v885 = vlaneseq
      %v886 = vshrl.u32 %v885, 7
      %v887 = vsub.s32 %v884, %v886
      %v888 = vrot.slane %v880, %v887
      %v890 = vunpack.c.l.s4 1983009808
      %v891 = vunpack.c.0.s8 %v890
      %v892 = vlaneseq
      %v893 = vshrl.u32 %v892, 7
      %v894 = vsub.s32 %v891, %v893
      %v895 = vrot.slane %v881, %v894
      %v896 = vcombine.high %v802, 0.0
      %v898 = vunpack.c.l.s4 1983009808
      %v899 = vunpack.c.0.s8 %v898
      %v900 = vlaneseq
      %v901 = vshrl.u32 %v900, 7
      %v902 = vsub.s32 %v899, %v901
      %v903 = vrot.slane %v802, %v902
      %v905 = vunpack.c.l.s4 1983009808
      %v906 = vunpack.c.0.s8 %v905
      %v907 = vlaneseq
      %v908 = vshrl.u32 %v907, 7
      %v909 = vsub.s32 %v906, %v908
      %v910 = vrot.slane %v896, %v909
      %v911 = vcombine.low %v888, %v903
      %v912 = vcombine.high %v888, %v903
      %v914 = vunpack.c.l.s4 1934713408
      %v915 = vunpack.c.0.s8 %v914
      %v916 = vlaneseq
      %v917 = vshrl.u32 %v916, 7
      %v918 = vsub.s32 %v915, %v917
      %v919 = vrot.slane %v911, %v918
      %v921 = vunpack.c.l.s4 1934713408
      %v922 = vunpack.c.0.s8 %v921
      %v923 = vlaneseq
      %v924 = vshrl.u32 %v923, 7
      %v925 = vsub.s32 %v922, %v924
      %v926 = vrot.slane %v912, %v925
      %v927 = vcombine.low %v895, %v910
      %v928 = vcombine.high %v895, %v910
      %v930 = vunpack.c.l.s4 1934713408
      %v931 = vunpack.c.0.s8 %v930
      %v932 = vlaneseq
      %v933 = vshrl.u32 %v932, 7
      %v934 = vsub.s32 %v931, %v933
      %v935 = vrot.slane %v927, %v934
      %v937 = vunpack.c.l.s4 1934713408
      %v938 = vunpack.c.0.s8 %v937
      %v939 = vlaneseq
      %v940 = vshrl.u32 %v939, 7
      %v941 = vsub.s32 %v938, %v940
      %v942 = vrot.slane %v928, %v941
      %v943 = vcombine.high %v919, 0.0
      %v944 = vcombine.high %v926, 0.0
      %v945 = vcombine.high %v935, 0.0
      %v946 = vcombine.high %v942, 0.0
      %948 = vrot.lane.b32.xlu0 %v876, 16
      %v949 = vpop.permute.xlu0 %948
      %952 = vrot.lane.b32.xlu0 %v859, 32
      %v953 = vpop.permute.xlu0 %952
      %956 = vrot.lane.b32.xlu0 %v877, 48
      %v957 = vpop.permute.xlu0 %956
      %960 = vrot.lane.b32.xlu0 %v868, 64
      %v961 = vpop.permute.xlu0 %960
      %964 = vrot.lane.b32.xlu0 %v878, 80
      %v965 = vpop.permute.xlu0 %964
      %968 = vrot.lane.b32.xlu0 %v875, 96
      %v969 = vpop.permute.xlu0 %968
      %972 = vrot.lane.b32.xlu0 %v879, 112
      %v973 = vpop.permute.xlu0 %972
      %976 = vrot.lane.b32.xlu0 %v943, 16
      %v977 = vpop.permute.xlu0 %976
      %980 = vrot.lane.b32.xlu0 %v926, 32
      %v981 = vpop.permute.xlu0 %980
      %984 = vrot.lane.b32.xlu0 %v944, 48
      %v985 = vpop.permute.xlu0 %984
      %988 = vrot.lane.b32.xlu0 %v935, 64
      %v989 = vpop.permute.xlu0 %988
      %992 = vrot.lane.b32.xlu0 %v945, 80
      %v993 = vpop.permute.xlu0 %992
      %996 = vrot.lane.b32.xlu0 %v942, 96
      %v997 = vpop.permute.xlu0 %996
      %1000 = vrot.lane.b32.xlu0 %v946, 112
      %v1001 = vpop.permute.xlu0 %1000
      %v1003 = vsel %vm546, %v852, %v949
      %v1004 = vsel %vm548, %v1003, %v953
      %v1005 = vsel %vm550, %v1004, %v957
      %v1006 = vsel %vm552, %v1005, %v961
      %v1007 = vsel %vm554, %v1006, %v965
      %v1008 = vsel %vm556, %v1007, %v969
      %v1009 = vsel %vm558, %v1008, %v973
      %v1010 = vsel %vm546, %v919, %v977
      %v1011 = vsel %vm548, %v1010, %v981
      %v1012 = vsel %vm550, %v1011, %v985
      %v1013 = vsel %vm552, %v1012, %v989
      %v1014 = vsel %vm554, %v1013, %v993
      %v1015 = vsel %vm556, %v1014, %v997
      %v1016 = vsel %vm558, %v1015, %v1001
      %vm1020 = vcmask 1046528
      %v1021 = vrot.slane %v347, 1
      %v1022 = vrot.slane %v348, 1
      %v1023 = vsel %vm1020, %v1021, %v1022
      %v1024 = vrot.slane %v349, 1
      %v1025 = vsel %vm1020, %v1022, %v1024
      %v1026 = vrot.slane %v350, 1
      %v1027 = vrot.slane %v351, 1
      %v1028 = vsel %vm1020, %v1026, %v1027
      %v1029 = vrot.slane %v352, 1
      %v1030 = vsel %vm1020, %v1027, %v1029
      %v1031 = vrot.slane %v353, 1
      %v1032 = vrot.slane %v354, 1
      %v1033 = vsel %vm1020, %v1031, %v1032
      %v1034 = vrot.slane %v355, 1
      %v1035 = vsel %vm1020, %v1032, %v1034
      %v1042 = vcombine.low %v1023, %v1033
      %v1043 = vcombine.high %v1023, %v1033
      %v1045 = vunpack.c.l.s4 1983009808
      %v1046 = vunpack.c.0.s8 %v1045
      %v1047 = vlaneseq
      %v1048 = vshrl.u32 %v1047, 7
      %v1049 = vsub.s32 %v1046, %v1048
      %v1050 = vrot.slane %v1042, %v1049
      %v1052 = vunpack.c.l.s4 1983009808
      %v1053 = vunpack.c.0.s8 %v1052
      %v1054 = vlaneseq
      %v1055 = vshrl.u32 %v1054, 7
      %v1056 = vsub.s32 %v1053, %v1055
      %v1057 = vrot.slane %v1043, %v1056
      %v1058 = vcombine.high %v1028, 0.0
      %v1060 = vunpack.c.l.s4 1983009808
      %v1061 = vunpack.c.0.s8 %v1060
      %v1062 = vlaneseq
      %v1063 = vshrl.u32 %v1062, 7
      %v1064 = vsub.s32 %v1061, %v1063
      %v1065 = vrot.slane %v1028, %v1064
      %v1067 = vunpack.c.l.s4 1983009808
      %v1068 = vunpack.c.0.s8 %v1067
      %v1069 = vlaneseq
      %v1070 = vshrl.u32 %v1069, 7
      %v1071 = vsub.s32 %v1068, %v1070
      %v1072 = vrot.slane %v1058, %v1071
      %v1073 = vcombine.low %v1050, %v1065
      %v1074 = vcombine.high %v1050, %v1065
      %v1076 = vunpack.c.l.s4 1934713408
      %v1077 = vunpack.c.0.s8 %v1076
      %v1078 = vlaneseq
      %v1079 = vshrl.u32 %v1078, 7
      %v1080 = vsub.s32 %v1077, %v1079
      %v1081 = vrot.slane %v1073, %v1080
      %v1083 = vunpack.c.l.s4 1934713408
      %v1084 = vunpack.c.0.s8 %v1083
      %v1085 = vlaneseq
      %v1086 = vshrl.u32 %v1085, 7
      %v1087 = vsub.s32 %v1084, %v1086
      %v1088 = vrot.slane %v1074, %v1087
      %v1089 = vcombine.low %v1057, %v1072
      %v1090 = vcombine.high %v1057, %v1072
      %v1092 = vunpack.c.l.s4 1934713408
      %v1093 = vunpack.c.0.s8 %v1092
      %v1094 = vlaneseq
      %v1095 = vshrl.u32 %v1094, 7
      %v1096 = vsub.s32 %v1093, %v1095
      %v1097 = vrot.slane %v1089, %v1096
      %v1099 = vunpack.c.l.s4 1934713408
      %v1100 = vunpack.c.0.s8 %v1099
      %v1101 = vlaneseq
      %v1102 = vshrl.u32 %v1101, 7
      %v1103 = vsub.s32 %v1100, %v1102
      %v1104 = vrot.slane %v1090, %v1103
      %v1105 = vcombine.high %v1081, 0.0
      %v1106 = vcombine.high %v1088, 0.0
      %v1107 = vcombine.high %v1097, 0.0
      %v1108 = vcombine.high %v1104, 0.0
      %v1109 = vcombine.low %v1025, %v1035
      %v1110 = vcombine.high %v1025, %v1035
      %v1112 = vunpack.c.l.s4 1983009808
      %v1113 = vunpack.c.0.s8 %v1112
      %v1114 = vlaneseq
      %v1115 = vshrl.u32 %v1114, 7
      %v1116 = vsub.s32 %v1113, %v1115
      %v1117 = vrot.slane %v1109, %v1116
      %v1119 = vunpack.c.l.s4 1983009808
      %v1120 = vunpack.c.0.s8 %v1119
      %v1121 = vlaneseq
      %v1122 = vshrl.u32 %v1121, 7
      %v1123 = vsub.s32 %v1120, %v1122
      %v1124 = vrot.slane %v1110, %v1123
      %v1125 = vcombine.high %v1030, 0.0
      %v1127 = vunpack.c.l.s4 1983009808
      %v1128 = vunpack.c.0.s8 %v1127
      %v1129 = vlaneseq
      %v1130 = vshrl.u32 %v1129, 7
      %v1131 = vsub.s32 %v1128, %v1130
      %v1132 = vrot.slane %v1030, %v1131
      %v1134 = vunpack.c.l.s4 1983009808
      %v1135 = vunpack.c.0.s8 %v1134
      %v1136 = vlaneseq
      %v1137 = vshrl.u32 %v1136, 7
      %v1138 = vsub.s32 %v1135, %v1137
      %v1139 = vrot.slane %v1125, %v1138
      %v1140 = vcombine.low %v1117, %v1132
      %v1141 = vcombine.high %v1117, %v1132
      %v1143 = vunpack.c.l.s4 1934713408
      %v1144 = vunpack.c.0.s8 %v1143
      %v1145 = vlaneseq
      %v1146 = vshrl.u32 %v1145, 7
      %v1147 = vsub.s32 %v1144, %v1146
      %v1148 = vrot.slane %v1140, %v1147
      %v1150 = vunpack.c.l.s4 1934713408
      %v1151 = vunpack.c.0.s8 %v1150
      %v1152 = vlaneseq
      %v1153 = vshrl.u32 %v1152, 7
      %v1154 = vsub.s32 %v1151, %v1153
      %v1155 = vrot.slane %v1141, %v1154
      %v1156 = vcombine.low %v1124, %v1139
      %v1157 = vcombine.high %v1124, %v1139
      %v1159 = vunpack.c.l.s4 1934713408
      %v1160 = vunpack.c.0.s8 %v1159
      %v1161 = vlaneseq
      %v1162 = vshrl.u32 %v1161, 7
      %v1163 = vsub.s32 %v1160, %v1162
      %v1164 = vrot.slane %v1156, %v1163
      %v1166 = vunpack.c.l.s4 1934713408
      %v1167 = vunpack.c.0.s8 %v1166
      %v1168 = vlaneseq
      %v1169 = vshrl.u32 %v1168, 7
      %v1170 = vsub.s32 %v1167, %v1169
      %v1171 = vrot.slane %v1157, %v1170
      %v1172 = vcombine.high %v1148, 0.0
      %v1173 = vcombine.high %v1155, 0.0
      %v1174 = vcombine.high %v1164, 0.0
      %v1175 = vcombine.high %v1171, 0.0
      %1177 = vrot.lane.b32.xlu0 %v1105, 16
      %v1178 = vpop.permute.xlu0 %1177
      %1181 = vrot.lane.b32.xlu0 %v1088, 32
      %v1182 = vpop.permute.xlu0 %1181
      %1185 = vrot.lane.b32.xlu0 %v1106, 48
      %v1186 = vpop.permute.xlu0 %1185
      %1189 = vrot.lane.b32.xlu0 %v1097, 64
      %v1190 = vpop.permute.xlu0 %1189
      %1193 = vrot.lane.b32.xlu0 %v1107, 80
      %v1194 = vpop.permute.xlu0 %1193
      %1197 = vrot.lane.b32.xlu0 %v1104, 96
      %v1198 = vpop.permute.xlu0 %1197
      %1201 = vrot.lane.b32.xlu0 %v1108, 112
      %v1202 = vpop.permute.xlu0 %1201
      %1205 = vrot.lane.b32.xlu0 %v1172, 16
      %v1206 = vpop.permute.xlu0 %1205
      %1209 = vrot.lane.b32.xlu0 %v1155, 32
      %v1210 = vpop.permute.xlu0 %1209
      %1213 = vrot.lane.b32.xlu0 %v1173, 48
      %v1214 = vpop.permute.xlu0 %1213
      %1217 = vrot.lane.b32.xlu0 %v1164, 64
      %v1218 = vpop.permute.xlu0 %1217
      %1221 = vrot.lane.b32.xlu0 %v1174, 80
      %v1222 = vpop.permute.xlu0 %1221
      %1225 = vrot.lane.b32.xlu0 %v1171, 96
      %v1226 = vpop.permute.xlu0 %1225
      %1229 = vrot.lane.b32.xlu0 %v1175, 112
      %v1230 = vpop.permute.xlu0 %1229
      %v1232 = vsel %vm546, %v1081, %v1178
      %v1233 = vsel %vm548, %v1232, %v1182
      %v1234 = vsel %vm550, %v1233, %v1186
      %v1235 = vsel %vm552, %v1234, %v1190
      %v1236 = vsel %vm554, %v1235, %v1194
      %v1237 = vsel %vm556, %v1236, %v1198
      %v1238 = vsel %vm558, %v1237, %v1202
      %v1239 = vsel %vm546, %v1148, %v1206
      %v1240 = vsel %vm548, %v1239, %v1210
      %v1241 = vsel %vm550, %v1240, %v1214
      %v1242 = vsel %vm552, %v1241, %v1218
      %v1243 = vsel %vm554, %v1242, %v1222
      %v1244 = vsel %vm556, %v1243, %v1226
      %v1245 = vsel %vm558, %v1244, %v1230
      %1246 = vrot.lane.b32.xlu0 %v1023, 127
      %v1247 = vpop.permute.xlu0 %1246
      %1248 = vrot.lane.b32.xlu0 %v1025, 127
      %v1249 = vpop.permute.xlu0 %1248
      %1250 = vrot.lane.b32.xlu0 %v1028, 127
      %v1251 = vpop.permute.xlu0 %1250
      %1252 = vrot.lane.b32.xlu0 %v1030, 127
      %v1253 = vpop.permute.xlu0 %1252
      %1254 = vrot.lane.b32.xlu0 %v1033, 127
      %v1255 = vpop.permute.xlu0 %1254
      %1256 = vrot.lane.b32.xlu0 %v1035, 127
      %v1257 = vpop.permute.xlu0 %1256
      %v1264 = vcombine.low %v1247, %v1255
      %v1265 = vcombine.high %v1247, %v1255
      %v1267 = vunpack.c.l.s4 1983009808
      %v1268 = vunpack.c.0.s8 %v1267
      %v1269 = vlaneseq
      %v1270 = vshrl.u32 %v1269, 7
      %v1271 = vsub.s32 %v1268, %v1270
      %v1272 = vrot.slane %v1264, %v1271
      %v1274 = vunpack.c.l.s4 1983009808
      %v1275 = vunpack.c.0.s8 %v1274
      %v1276 = vlaneseq
      %v1277 = vshrl.u32 %v1276, 7
      %v1278 = vsub.s32 %v1275, %v1277
      %v1279 = vrot.slane %v1265, %v1278
      %v1280 = vcombine.high %v1251, 0.0
      %v1282 = vunpack.c.l.s4 1983009808
      %v1283 = vunpack.c.0.s8 %v1282
      %v1284 = vlaneseq
      %v1285 = vshrl.u32 %v1284, 7
      %v1286 = vsub.s32 %v1283, %v1285
      %v1287 = vrot.slane %v1251, %v1286
      %v1289 = vunpack.c.l.s4 1983009808
      %v1290 = vunpack.c.0.s8 %v1289
      %v1291 = vlaneseq
      %v1292 = vshrl.u32 %v1291, 7
      %v1293 = vsub.s32 %v1290, %v1292
      %v1294 = vrot.slane %v1280, %v1293
      %v1295 = vcombine.low %v1272, %v1287
      %v1296 = vcombine.high %v1272, %v1287
      %v1298 = vunpack.c.l.s4 1934713408
      %v1299 = vunpack.c.0.s8 %v1298
      %v1300 = vlaneseq
      %v1301 = vshrl.u32 %v1300, 7
      %v1302 = vsub.s32 %v1299, %v1301
      %v1303 = vrot.slane %v1295, %v1302
      %v1305 = vunpack.c.l.s4 1934713408
      %v1306 = vunpack.c.0.s8 %v1305
      %v1307 = vlaneseq
      %v1308 = vshrl.u32 %v1307, 7
      %v1309 = vsub.s32 %v1306, %v1308
      %v1310 = vrot.slane %v1296, %v1309
      %v1311 = vcombine.low %v1279, %v1294
      %v1312 = vcombine.high %v1279, %v1294
      %v1314 = vunpack.c.l.s4 1934713408
      %v1315 = vunpack.c.0.s8 %v1314
      %v1316 = vlaneseq
      %v1317 = vshrl.u32 %v1316, 7
      %v1318 = vsub.s32 %v1315, %v1317
      %v1319 = vrot.slane %v1311, %v1318
      %v1321 = vunpack.c.l.s4 1934713408
      %v1322 = vunpack.c.0.s8 %v1321
      %v1323 = vlaneseq
      %v1324 = vshrl.u32 %v1323, 7
      %v1325 = vsub.s32 %v1322, %v1324
      %v1326 = vrot.slane %v1312, %v1325
      %v1327 = vcombine.high %v1303, 0.0
      %v1328 = vcombine.high %v1310, 0.0
      %v1329 = vcombine.high %v1319, 0.0
      %v1330 = vcombine.high %v1326, 0.0
      %v1331 = vcombine.low %v1249, %v1257
      %v1332 = vcombine.high %v1249, %v1257
      %v1334 = vunpack.c.l.s4 1983009808
      %v1335 = vunpack.c.0.s8 %v1334
      %v1336 = vlaneseq
      %v1337 = vshrl.u32 %v1336, 7
      %v1338 = vsub.s32 %v1335, %v1337
      %v1339 = vrot.slane %v1331, %v1338
      %v1341 = vunpack.c.l.s4 1983009808
      %v1342 = vunpack.c.0.s8 %v1341
      %v1343 = vlaneseq
      %v1344 = vshrl.u32 %v1343, 7
      %v1345 = vsub.s32 %v1342, %v1344
      %v1346 = vrot.slane %v1332, %v1345
      %v1347 = vcombine.high %v1253, 0.0
      %v1349 = vunpack.c.l.s4 1983009808
      %v1350 = vunpack.c.0.s8 %v1349
      %v1351 = vlaneseq
      %v1352 = vshrl.u32 %v1351, 7
      %v1353 = vsub.s32 %v1350, %v1352
      %v1354 = vrot.slane %v1253, %v1353
      %v1356 = vunpack.c.l.s4 1983009808
      %v1357 = vunpack.c.0.s8 %v1356
      %v1358 = vlaneseq
      %v1359 = vshrl.u32 %v1358, 7
      %v1360 = vsub.s32 %v1357, %v1359
      %v1361 = vrot.slane %v1347, %v1360
      %v1362 = vcombine.low %v1339, %v1354
      %v1363 = vcombine.high %v1339, %v1354
      %v1365 = vunpack.c.l.s4 1934713408
      %v1366 = vunpack.c.0.s8 %v1365
      %v1367 = vlaneseq
      %v1368 = vshrl.u32 %v1367, 7
      %v1369 = vsub.s32 %v1366, %v1368
      %v1370 = vrot.slane %v1362, %v1369
      %v1372 = vunpack.c.l.s4 1934713408
      %v1373 = vunpack.c.0.s8 %v1372
      %v1374 = vlaneseq
      %v1375 = vshrl.u32 %v1374, 7
      %v1376 = vsub.s32 %v1373, %v1375
      %v1377 = vrot.slane %v1363, %v1376
      %v1378 = vcombine.low %v1346, %v1361
      %v1379 = vcombine.high %v1346, %v1361
      %v1381 = vunpack.c.l.s4 1934713408
      %v1382 = vunpack.c.0.s8 %v1381
      %v1383 = vlaneseq
      %v1384 = vshrl.u32 %v1383, 7
      %v1385 = vsub.s32 %v1382, %v1384
      %v1386 = vrot.slane %v1378, %v1385
      %v1388 = vunpack.c.l.s4 1934713408
      %v1389 = vunpack.c.0.s8 %v1388
      %v1390 = vlaneseq
      %v1391 = vshrl.u32 %v1390, 7
      %v1392 = vsub.s32 %v1389, %v1391
      %v1393 = vrot.slane %v1379, %v1392
      %v1394 = vcombine.high %v1370, 0.0
      %v1395 = vcombine.high %v1377, 0.0
      %v1396 = vcombine.high %v1386, 0.0
      %v1397 = vcombine.high %v1393, 0.0
      %1399 = vrot.lane.b32.xlu0 %v1327, 16
      %v1400 = vpop.permute.xlu0 %1399
      %1403 = vrot.lane.b32.xlu0 %v1310, 32
      %v1404 = vpop.permute.xlu0 %1403
      %1407 = vrot.lane.b32.xlu0 %v1328, 48
      %v1408 = vpop.permute.xlu0 %1407
      %1411 = vrot.lane.b32.xlu0 %v1319, 64
      %v1412 = vpop.permute.xlu0 %1411
      %1415 = vrot.lane.b32.xlu0 %v1329, 80
      %v1416 = vpop.permute.xlu0 %1415
      %1419 = vrot.lane.b32.xlu0 %v1326, 96
      %v1420 = vpop.permute.xlu0 %1419
      %1423 = vrot.lane.b32.xlu0 %v1330, 112
      %v1424 = vpop.permute.xlu0 %1423
      %1427 = vrot.lane.b32.xlu0 %v1394, 16
      %v1428 = vpop.permute.xlu0 %1427
      %1431 = vrot.lane.b32.xlu0 %v1377, 32
      %v1432 = vpop.permute.xlu0 %1431
      %1435 = vrot.lane.b32.xlu0 %v1395, 48
      %v1436 = vpop.permute.xlu0 %1435
      %1439 = vrot.lane.b32.xlu0 %v1386, 64
      %v1440 = vpop.permute.xlu0 %1439
      %1443 = vrot.lane.b32.xlu0 %v1396, 80
      %v1444 = vpop.permute.xlu0 %1443
      %1447 = vrot.lane.b32.xlu0 %v1393, 96
      %v1448 = vpop.permute.xlu0 %1447
      %1451 = vrot.lane.b32.xlu0 %v1397, 112
      %v1452 = vpop.permute.xlu0 %1451
      %v1454 = vsel %vm546, %v1303, %v1400
      %v1455 = vsel %vm548, %v1454, %v1404
      %v1456 = vsel %vm550, %v1455, %v1408
      %v1457 = vsel %vm552, %v1456, %v1412
      %v1458 = vsel %vm554, %v1457, %v1416
      %v1459 = vsel %vm556, %v1458, %v1420
      %v1460 = vsel %vm558, %v1459, %v1424
      %v1461 = vsel %vm546, %v1370, %v1428
      %v1462 = vsel %vm548, %v1461, %v1432
      %v1463 = vsel %vm550, %v1462, %v1436
      %v1464 = vsel %vm552, %v1463, %v1440
      %v1465 = vsel %vm554, %v1464, %v1444
      %v1466 = vsel %vm556, %v1465, %v1448
      %v1467 = vsel %vm558, %v1466, %v1452
      %1468 = vrot.lane.b32.xlu0 %v1023, 126
      %v1469 = vpop.permute.xlu0 %1468
      %1470 = vrot.lane.b32.xlu0 %v1025, 126
      %v1471 = vpop.permute.xlu0 %1470
      %1472 = vrot.lane.b32.xlu0 %v1028, 126
      %v1473 = vpop.permute.xlu0 %1472
      %1474 = vrot.lane.b32.xlu0 %v1030, 126
      %v1475 = vpop.permute.xlu0 %1474
      %1476 = vrot.lane.b32.xlu0 %v1033, 126
      %v1477 = vpop.permute.xlu0 %1476
      %1478 = vrot.lane.b32.xlu0 %v1035, 126
      %v1479 = vpop.permute.xlu0 %1478
      %v1486 = vcombine.low %v1469, %v1477
      %v1487 = vcombine.high %v1469, %v1477
      %v1489 = vunpack.c.l.s4 1983009808
      %v1490 = vunpack.c.0.s8 %v1489
      %v1491 = vlaneseq
      %v1492 = vshrl.u32 %v1491, 7
      %v1493 = vsub.s32 %v1490, %v1492
      %v1494 = vrot.slane %v1486, %v1493
      %v1496 = vunpack.c.l.s4 1983009808
      %v1497 = vunpack.c.0.s8 %v1496
      %v1498 = vlaneseq
      %v1499 = vshrl.u32 %v1498, 7
      %v1500 = vsub.s32 %v1497, %v1499
      %v1501 = vrot.slane %v1487, %v1500
      %v1502 = vcombine.high %v1473, 0.0
      %v1504 = vunpack.c.l.s4 1983009808
      %v1505 = vunpack.c.0.s8 %v1504
      %v1506 = vlaneseq
      %v1507 = vshrl.u32 %v1506, 7
      %v1508 = vsub.s32 %v1505, %v1507
      %v1509 = vrot.slane %v1473, %v1508
      %v1511 = vunpack.c.l.s4 1983009808
      %v1512 = vunpack.c.0.s8 %v1511
      %v1513 = vlaneseq
      %v1514 = vshrl.u32 %v1513, 7
      %v1515 = vsub.s32 %v1512, %v1514
      %v1516 = vrot.slane %v1502, %v1515
      %v1517 = vcombine.low %v1494, %v1509
      %v1518 = vcombine.high %v1494, %v1509
      %v1520 = vunpack.c.l.s4 1934713408
      %v1521 = vunpack.c.0.s8 %v1520
      %v1522 = vlaneseq
      %v1523 = vshrl.u32 %v1522, 7
      %v1524 = vsub.s32 %v1521, %v1523
      %v1525 = vrot.slane %v1517, %v1524
      %v1527 = vunpack.c.l.s4 1934713408
      %v1528 = vunpack.c.0.s8 %v1527
      %v1529 = vlaneseq
      %v1530 = vshrl.u32 %v1529, 7
      %v1531 = vsub.s32 %v1528, %v1530
      %v1532 = vrot.slane %v1518, %v1531
      %v1533 = vcombine.low %v1501, %v1516
      %v1534 = vcombine.high %v1501, %v1516
      %v1536 = vunpack.c.l.s4 1934713408
      %v1537 = vunpack.c.0.s8 %v1536
      %v1538 = vlaneseq
      %v1539 = vshrl.u32 %v1538, 7
      %v1540 = vsub.s32 %v1537, %v1539
      %v1541 = vrot.slane %v1533, %v1540
      %v1543 = vunpack.c.l.s4 1934713408
      %v1544 = vunpack.c.0.s8 %v1543
      %v1545 = vlaneseq
      %v1546 = vshrl.u32 %v1545, 7
      %v1547 = vsub.s32 %v1544, %v1546
      %v1548 = vrot.slane %v1534, %v1547
      %v1549 = vcombine.high %v1525, 0.0
      %v1550 = vcombine.high %v1532, 0.0
      %v1551 = vcombine.high %v1541, 0.0
      %v1552 = vcombine.high %v1548, 0.0
      %v1553 = vcombine.low %v1471, %v1479
      %v1554 = vcombine.high %v1471, %v1479
      %v1556 = vunpack.c.l.s4 1983009808
      %v1557 = vunpack.c.0.s8 %v1556
      %v1558 = vlaneseq
      %v1559 = vshrl.u32 %v1558, 7
      %v1560 = vsub.s32 %v1557, %v1559
      %v1561 = vrot.slane %v1553, %v1560
      %v1563 = vunpack.c.l.s4 1983009808
      %v1564 = vunpack.c.0.s8 %v1563
      %v1565 = vlaneseq
      %v1566 = vshrl.u32 %v1565, 7
      %v1567 = vsub.s32 %v1564, %v1566
      %v1568 = vrot.slane %v1554, %v1567
      %v1569 = vcombine.high %v1475, 0.0
      %v1571 = vunpack.c.l.s4 1983009808
      %v1572 = vunpack.c.0.s8 %v1571
      %v1573 = vlaneseq
      %v1574 = vshrl.u32 %v1573, 7
      %v1575 = vsub.s32 %v1572, %v1574
      %v1576 = vrot.slane %v1475, %v1575
      %v1578 = vunpack.c.l.s4 1983009808
      %v1579 = vunpack.c.0.s8 %v1578
      %v1580 = vlaneseq
      %v1581 = vshrl.u32 %v1580, 7
      %v1582 = vsub.s32 %v1579, %v1581
      %v1583 = vrot.slane %v1569, %v1582
      %v1584 = vcombine.low %v1561, %v1576
      %v1585 = vcombine.high %v1561, %v1576
      %v1587 = vunpack.c.l.s4 1934713408
      %v1588 = vunpack.c.0.s8 %v1587
      %v1589 = vlaneseq
      %v1590 = vshrl.u32 %v1589, 7
      %v1591 = vsub.s32 %v1588, %v1590
      %v1592 = vrot.slane %v1584, %v1591
      %v1594 = vunpack.c.l.s4 1934713408
      %v1595 = vunpack.c.0.s8 %v1594
      %v1596 = vlaneseq
      %v1597 = vshrl.u32 %v1596, 7
      %v1598 = vsub.s32 %v1595, %v1597
      %v1599 = vrot.slane %v1585, %v1598
      %v1600 = vcombine.low %v1568, %v1583
      %v1601 = vcombine.high %v1568, %v1583
      %v1603 = vunpack.c.l.s4 1934713408
      %v1604 = vunpack.c.0.s8 %v1603
      %v1605 = vlaneseq
      %v1606 = vshrl.u32 %v1605, 7
      %v1607 = vsub.s32 %v1604, %v1606
      %v1608 = vrot.slane %v1600, %v1607
      %v1610 = vunpack.c.l.s4 1934713408
      %v1611 = vunpack.c.0.s8 %v1610
      %v1612 = vlaneseq
      %v1613 = vshrl.u32 %v1612, 7
      %v1614 = vsub.s32 %v1611, %v1613
      %v1615 = vrot.slane %v1601, %v1614
      %v1616 = vcombine.high %v1592, 0.0
      %v1617 = vcombine.high %v1599, 0.0
      %v1618 = vcombine.high %v1608, 0.0
      %v1619 = vcombine.high %v1615, 0.0
      %1621 = vrot.lane.b32.xlu0 %v1549, 16
      %v1622 = vpop.permute.xlu0 %1621
      %1625 = vrot.lane.b32.xlu0 %v1532, 32
      %v1626 = vpop.permute.xlu0 %1625
      %1629 = vrot.lane.b32.xlu0 %v1550, 48
      %v1630 = vpop.permute.xlu0 %1629
      %1633 = vrot.lane.b32.xlu0 %v1541, 64
      %v1634 = vpop.permute.xlu0 %1633
      %1637 = vrot.lane.b32.xlu0 %v1551, 80
      %v1638 = vpop.permute.xlu0 %1637
      %1641 = vrot.lane.b32.xlu0 %v1548, 96
      %v1642 = vpop.permute.xlu0 %1641
      %1645 = vrot.lane.b32.xlu0 %v1552, 112
      %v1646 = vpop.permute.xlu0 %1645
      %1649 = vrot.lane.b32.xlu0 %v1616, 16
      %v1650 = vpop.permute.xlu0 %1649
      %1653 = vrot.lane.b32.xlu0 %v1599, 32
      %v1654 = vpop.permute.xlu0 %1653
      %1657 = vrot.lane.b32.xlu0 %v1617, 48
      %v1658 = vpop.permute.xlu0 %1657
      %1661 = vrot.lane.b32.xlu0 %v1608, 64
      %v1662 = vpop.permute.xlu0 %1661
      %1665 = vrot.lane.b32.xlu0 %v1618, 80
      %v1666 = vpop.permute.xlu0 %1665
      %1669 = vrot.lane.b32.xlu0 %v1615, 96
      %v1670 = vpop.permute.xlu0 %1669
      %1673 = vrot.lane.b32.xlu0 %v1619, 112
      %v1674 = vpop.permute.xlu0 %1673
      %v1676 = vsel %vm546, %v1525, %v1622
      %v1677 = vsel %vm548, %v1676, %v1626
      %v1678 = vsel %vm550, %v1677, %v1630
      %v1679 = vsel %vm552, %v1678, %v1634
      %v1680 = vsel %vm554, %v1679, %v1638
      %v1681 = vsel %vm556, %v1680, %v1642
      %v1682 = vsel %vm558, %v1681, %v1646
      %v1683 = vsel %vm546, %v1592, %v1650
      %v1684 = vsel %vm548, %v1683, %v1654
      %v1685 = vsel %vm550, %v1684, %v1658
      %v1686 = vsel %vm552, %v1685, %v1662
      %v1687 = vsel %vm554, %v1686, %v1666
      %v1688 = vsel %vm556, %v1687, %v1670
      %v1689 = vsel %vm558, %v1688, %v1674
      %vm1690 = vcmask 1045504
      %v1691 = vrot.slane %v347, 2
      %v1692 = vrot.slane %v348, 2
      %v1693 = vsel %vm1690, %v1691, %v1692
      %v1694 = vrot.slane %v349, 2
      %v1695 = vsel %vm1690, %v1692, %v1694
      %v1696 = vrot.slane %v350, 2
      %v1697 = vrot.slane %v351, 2
      %v1698 = vsel %vm1690, %v1696, %v1697
      %v1699 = vrot.slane %v352, 2
      %v1700 = vsel %vm1690, %v1697, %v1699
      %v1701 = vrot.slane %v353, 2
      %v1702 = vrot.slane %v354, 2
      %v1703 = vsel %vm1690, %v1701, %v1702
      %v1704 = vrot.slane %v355, 2
      %v1705 = vsel %vm1690, %v1702, %v1704
      %v1712 = vcombine.low %v1693, %v1703
      %v1713 = vcombine.high %v1693, %v1703
      %v1715 = vunpack.c.l.s4 1983009808
      %v1716 = vunpack.c.0.s8 %v1715
      %v1717 = vlaneseq
      %v1718 = vshrl.u32 %v1717, 7
      %v1719 = vsub.s32 %v1716, %v1718
      %v1720 = vrot.slane %v1712, %v1719
      %v1722 = vunpack.c.l.s4 1983009808
      %v1723 = vunpack.c.0.s8 %v1722
      %v1724 = vlaneseq
      %v1725 = vshrl.u32 %v1724, 7
      %v1726 = vsub.s32 %v1723, %v1725
      %v1727 = vrot.slane %v1713, %v1726
      %v1728 = vcombine.high %v1698, 0.0
      %v1730 = vunpack.c.l.s4 1983009808
      %v1731 = vunpack.c.0.s8 %v1730
      %v1732 = vlaneseq
      %v1733 = vshrl.u32 %v1732, 7
      %v1734 = vsub.s32 %v1731, %v1733
      %v1735 = vrot.slane %v1698, %v1734
      %v1737 = vunpack.c.l.s4 1983009808
      %v1738 = vunpack.c.0.s8 %v1737
      %v1739 = vlaneseq
      %v1740 = vshrl.u32 %v1739, 7
      %v1741 = vsub.s32 %v1738, %v1740
      %v1742 = vrot.slane %v1728, %v1741
      %v1743 = vcombine.low %v1720, %v1735
      %v1744 = vcombine.high %v1720, %v1735
      %v1746 = vunpack.c.l.s4 1934713408
      %v1747 = vunpack.c.0.s8 %v1746
      %v1748 = vlaneseq
      %v1749 = vshrl.u32 %v1748, 7
      %v1750 = vsub.s32 %v1747, %v1749
      %v1751 = vrot.slane %v1743, %v1750
      %v1753 = vunpack.c.l.s4 1934713408
      %v1754 = vunpack.c.0.s8 %v1753
      %v1755 = vlaneseq
      %v1756 = vshrl.u32 %v1755, 7
      %v1757 = vsub.s32 %v1754, %v1756
      %v1758 = vrot.slane %v1744, %v1757
      %v1759 = vcombine.low %v1727, %v1742
      %v1760 = vcombine.high %v1727, %v1742
      %v1762 = vunpack.c.l.s4 1934713408
      %v1763 = vunpack.c.0.s8 %v1762
      %v1764 = vlaneseq
      %v1765 = vshrl.u32 %v1764, 7
      %v1766 = vsub.s32 %v1763, %v1765
      %v1767 = vrot.slane %v1759, %v1766
      %v1769 = vunpack.c.l.s4 1934713408
      %v1770 = vunpack.c.0.s8 %v1769
      %v1771 = vlaneseq
      %v1772 = vshrl.u32 %v1771, 7
      %v1773 = vsub.s32 %v1770, %v1772
      %v1774 = vrot.slane %v1760, %v1773
      %v1775 = vcombine.high %v1751, 0.0
      %v1776 = vcombine.high %v1758, 0.0
      %v1777 = vcombine.high %v1767, 0.0
      %v1778 = vcombine.high %v1774, 0.0
      %v1779 = vcombine.low %v1695, %v1705
      %v1780 = vcombine.high %v1695, %v1705
      %v1782 = vunpack.c.l.s4 1983009808
      %v1783 = vunpack.c.0.s8 %v1782
      %v1784 = vlaneseq
      %v1785 = vshrl.u32 %v1784, 7
      %v1786 = vsub.s32 %v1783, %v1785
      %v1787 = vrot.slane %v1779, %v1786
      %v1789 = vunpack.c.l.s4 1983009808
      %v1790 = vunpack.c.0.s8 %v1789
      %v1791 = vlaneseq
      %v1792 = vshrl.u32 %v1791, 7
      %v1793 = vsub.s32 %v1790, %v1792
      %v1794 = vrot.slane %v1780, %v1793
      %v1795 = vcombine.high %v1700, 0.0
      %v1797 = vunpack.c.l.s4 1983009808
      %v1798 = vunpack.c.0.s8 %v1797
      %v1799 = vlaneseq
      %v1800 = vshrl.u32 %v1799, 7
      %v1801 = vsub.s32 %v1798, %v1800
      %v1802 = vrot.slane %v1700, %v1801
      %v1804 = vunpack.c.l.s4 1983009808
      %v1805 = vunpack.c.0.s8 %v1804
      %v1806 = vlaneseq
      %v1807 = vshrl.u32 %v1806, 7
      %v1808 = vsub.s32 %v1805, %v1807
      %v1809 = vrot.slane %v1795, %v1808
      %v1810 = vcombine.low %v1787, %v1802
      %v1811 = vcombine.high %v1787, %v1802
      %v1813 = vunpack.c.l.s4 1934713408
      %v1814 = vunpack.c.0.s8 %v1813
      %v1815 = vlaneseq
      %v1816 = vshrl.u32 %v1815, 7
      %v1817 = vsub.s32 %v1814, %v1816
      %v1818 = vrot.slane %v1810, %v1817
      %v1820 = vunpack.c.l.s4 1934713408
      %v1821 = vunpack.c.0.s8 %v1820
      %v1822 = vlaneseq
      %v1823 = vshrl.u32 %v1822, 7
      %v1824 = vsub.s32 %v1821, %v1823
      %v1825 = vrot.slane %v1811, %v1824
      %v1826 = vcombine.low %v1794, %v1809
      %v1827 = vcombine.high %v1794, %v1809
      %v1829 = vunpack.c.l.s4 1934713408
      %v1830 = vunpack.c.0.s8 %v1829
      %v1831 = vlaneseq
      %v1832 = vshrl.u32 %v1831, 7
      %v1833 = vsub.s32 %v1830, %v1832
      %v1834 = vrot.slane %v1826, %v1833
      %v1836 = vunpack.c.l.s4 1934713408
      %v1837 = vunpack.c.0.s8 %v1836
      %v1838 = vlaneseq
      %v1839 = vshrl.u32 %v1838, 7
      %v1840 = vsub.s32 %v1837, %v1839
      %v1841 = vrot.slane %v1827, %v1840
      %v1842 = vcombine.high %v1818, 0.0
      %v1843 = vcombine.high %v1825, 0.0
      %v1844 = vcombine.high %v1834, 0.0
      %v1845 = vcombine.high %v1841, 0.0
      %1847 = vrot.lane.b32.xlu0 %v1775, 16
      %v1848 = vpop.permute.xlu0 %1847
      %1851 = vrot.lane.b32.xlu0 %v1758, 32
      %v1852 = vpop.permute.xlu0 %1851
      %1855 = vrot.lane.b32.xlu0 %v1776, 48
      %v1856 = vpop.permute.xlu0 %1855
      %1859 = vrot.lane.b32.xlu0 %v1767, 64
      %v1860 = vpop.permute.xlu0 %1859
      %1863 = vrot.lane.b32.xlu0 %v1777, 80
      %v1864 = vpop.permute.xlu0 %1863
      %1867 = vrot.lane.b32.xlu0 %v1774, 96
      %v1868 = vpop.permute.xlu0 %1867
      %1871 = vrot.lane.b32.xlu0 %v1778, 112
      %v1872 = vpop.permute.xlu0 %1871
      %1875 = vrot.lane.b32.xlu0 %v1842, 16
      %v1876 = vpop.permute.xlu0 %1875
      %1879 = vrot.lane.b32.xlu0 %v1825, 32
      %v1880 = vpop.permute.xlu0 %1879
      %1883 = vrot.lane.b32.xlu0 %v1843, 48
      %v1884 = vpop.permute.xlu0 %1883
      %1887 = vrot.lane.b32.xlu0 %v1834, 64
      %v1888 = vpop.permute.xlu0 %1887
      %1891 = vrot.lane.b32.xlu0 %v1844, 80
      %v1892 = vpop.permute.xlu0 %1891
      %1895 = vrot.lane.b32.xlu0 %v1841, 96
      %v1896 = vpop.permute.xlu0 %1895
      %1899 = vrot.lane.b32.xlu0 %v1845, 112
      %v1900 = vpop.permute.xlu0 %1899
      %v1902 = vsel %vm546, %v1751, %v1848
      %v1903 = vsel %vm548, %v1902, %v1852
      %v1904 = vsel %vm550, %v1903, %v1856
      %v1905 = vsel %vm552, %v1904, %v1860
      %v1906 = vsel %vm554, %v1905, %v1864
      %v1907 = vsel %vm556, %v1906, %v1868
      %v1908 = vsel %vm558, %v1907, %v1872
      %v1909 = vsel %vm546, %v1818, %v1876
      %v1910 = vsel %vm548, %v1909, %v1880
      %v1911 = vsel %vm550, %v1910, %v1884
      %v1912 = vsel %vm552, %v1911, %v1888
      %v1913 = vsel %vm554, %v1912, %v1892
      %v1914 = vsel %vm556, %v1913, %v1896
      %v1915 = vsel %vm558, %v1914, %v1900
      %1916 = vrot.lane.b32.xlu0 %v1693, 127
      %v1917 = vpop.permute.xlu0 %1916
      %1918 = vrot.lane.b32.xlu0 %v1695, 127
      %v1919 = vpop.permute.xlu0 %1918
      %1920 = vrot.lane.b32.xlu0 %v1698, 127
      %v1921 = vpop.permute.xlu0 %1920
      %1922 = vrot.lane.b32.xlu0 %v1700, 127
      %v1923 = vpop.permute.xlu0 %1922
      %1924 = vrot.lane.b32.xlu0 %v1703, 127
      %v1925 = vpop.permute.xlu0 %1924
      %1926 = vrot.lane.b32.xlu0 %v1705, 127
      %v1927 = vpop.permute.xlu0 %1926
      %v1934 = vcombine.low %v1917, %v1925
      %v1935 = vcombine.high %v1917, %v1925
      %v1937 = vunpack.c.l.s4 1983009808
      %v1938 = vunpack.c.0.s8 %v1937
      %v1939 = vlaneseq
      %v1940 = vshrl.u32 %v1939, 7
      %v1941 = vsub.s32 %v1938, %v1940
      %v1942 = vrot.slane %v1934, %v1941
      %v1944 = vunpack.c.l.s4 1983009808
      %v1945 = vunpack.c.0.s8 %v1944
      %v1946 = vlaneseq
      %v1947 = vshrl.u32 %v1946, 7
      %v1948 = vsub.s32 %v1945, %v1947
      %v1949 = vrot.slane %v1935, %v1948
      %v1950 = vcombine.high %v1921, 0.0
      %v1952 = vunpack.c.l.s4 1983009808
      %v1953 = vunpack.c.0.s8 %v1952
      %v1954 = vlaneseq
      %v1955 = vshrl.u32 %v1954, 7
      %v1956 = vsub.s32 %v1953, %v1955
      %v1957 = vrot.slane %v1921, %v1956
      %v1959 = vunpack.c.l.s4 1983009808
      %v1960 = vunpack.c.0.s8 %v1959
      %v1961 = vlaneseq
      %v1962 = vshrl.u32 %v1961, 7
      %v1963 = vsub.s32 %v1960, %v1962
      %v1964 = vrot.slane %v1950, %v1963
      %v1965 = vcombine.low %v1942, %v1957
      %v1966 = vcombine.high %v1942, %v1957
      %v1968 = vunpack.c.l.s4 1934713408
      %v1969 = vunpack.c.0.s8 %v1968
      %v1970 = vlaneseq
      %v1971 = vshrl.u32 %v1970, 7
      %v1972 = vsub.s32 %v1969, %v1971
      %v1973 = vrot.slane %v1965, %v1972
      %v1975 = vunpack.c.l.s4 1934713408
      %v1976 = vunpack.c.0.s8 %v1975
      %v1977 = vlaneseq
      %v1978 = vshrl.u32 %v1977, 7
      %v1979 = vsub.s32 %v1976, %v1978
      %v1980 = vrot.slane %v1966, %v1979
      %v1981 = vcombine.low %v1949, %v1964
      %v1982 = vcombine.high %v1949, %v1964
      %v1984 = vunpack.c.l.s4 1934713408
      %v1985 = vunpack.c.0.s8 %v1984
      %v1986 = vlaneseq
      %v1987 = vshrl.u32 %v1986, 7
      %v1988 = vsub.s32 %v1985, %v1987
      %v1989 = vrot.slane %v1981, %v1988
      %v1991 = vunpack.c.l.s4 1934713408
      %v1992 = vunpack.c.0.s8 %v1991
      %v1993 = vlaneseq
      %v1994 = vshrl.u32 %v1993, 7
      %v1995 = vsub.s32 %v1992, %v1994
      %v1996 = vrot.slane %v1982, %v1995
      %v1997 = vcombine.high %v1973, 0.0
      %v1998 = vcombine.high %v1980, 0.0
      %v1999 = vcombine.high %v1989, 0.0
      %v2000 = vcombine.high %v1996, 0.0
      %v2001 = vcombine.low %v1919, %v1927
      %v2002 = vcombine.high %v1919, %v1927
      %v2004 = vunpack.c.l.s4 1983009808
      %v2005 = vunpack.c.0.s8 %v2004
      %v2006 = vlaneseq
      %v2007 = vshrl.u32 %v2006, 7
      %v2008 = vsub.s32 %v2005, %v2007
      %v2009 = vrot.slane %v2001, %v2008
      %v2011 = vunpack.c.l.s4 1983009808
      %v2012 = vunpack.c.0.s8 %v2011
      %v2013 = vlaneseq
      %v2014 = vshrl.u32 %v2013, 7
      %v2015 = vsub.s32 %v2012, %v2014
      %v2016 = vrot.slane %v2002, %v2015
      %v2017 = vcombine.high %v1923, 0.0
      %v2019 = vunpack.c.l.s4 1983009808
      %v2020 = vunpack.c.0.s8 %v2019
      %v2021 = vlaneseq
      %v2022 = vshrl.u32 %v2021, 7
      %v2023 = vsub.s32 %v2020, %v2022
      %v2024 = vrot.slane %v1923, %v2023
      %v2026 = vunpack.c.l.s4 1983009808
      %v2027 = vunpack.c.0.s8 %v2026
      %v2028 = vlaneseq
      %v2029 = vshrl.u32 %v2028, 7
      %v2030 = vsub.s32 %v2027, %v2029
      %v2031 = vrot.slane %v2017, %v2030
      %v2032 = vcombine.low %v2009, %v2024
      %v2033 = vcombine.high %v2009, %v2024
      %v2035 = vunpack.c.l.s4 1934713408
      %v2036 = vunpack.c.0.s8 %v2035
      %v2037 = vlaneseq
      %v2038 = vshrl.u32 %v2037, 7
      %v2039 = vsub.s32 %v2036, %v2038
      %v2040 = vrot.slane %v2032, %v2039
      %v2042 = vunpack.c.l.s4 1934713408
      %v2043 = vunpack.c.0.s8 %v2042
      %v2044 = vlaneseq
      %v2045 = vshrl.u32 %v2044, 7
      %v2046 = vsub.s32 %v2043, %v2045
      %v2047 = vrot.slane %v2033, %v2046
      %v2048 = vcombine.low %v2016, %v2031
      %v2049 = vcombine.high %v2016, %v2031
      %v2051 = vunpack.c.l.s4 1934713408
      %v2052 = vunpack.c.0.s8 %v2051
      %v2053 = vlaneseq
      %v2054 = vshrl.u32 %v2053, 7
      %v2055 = vsub.s32 %v2052, %v2054
      %v2056 = vrot.slane %v2048, %v2055
      %v2058 = vunpack.c.l.s4 1934713408
      %v2059 = vunpack.c.0.s8 %v2058
      %v2060 = vlaneseq
      %v2061 = vshrl.u32 %v2060, 7
      %v2062 = vsub.s32 %v2059, %v2061
      %v2063 = vrot.slane %v2049, %v2062
      %v2064 = vcombine.high %v2040, 0.0
      %v2065 = vcombine.high %v2047, 0.0
      %v2066 = vcombine.high %v2056, 0.0
      %v2067 = vcombine.high %v2063, 0.0
      %2069 = vrot.lane.b32.xlu0 %v1997, 16
      %v2070 = vpop.permute.xlu0 %2069
      %2073 = vrot.lane.b32.xlu0 %v1980, 32
      %v2074 = vpop.permute.xlu0 %2073
      %2077 = vrot.lane.b32.xlu0 %v1998, 48
      %v2078 = vpop.permute.xlu0 %2077
      %2081 = vrot.lane.b32.xlu0 %v1989, 64
      %v2082 = vpop.permute.xlu0 %2081
      %2085 = vrot.lane.b32.xlu0 %v1999, 80
      %v2086 = vpop.permute.xlu0 %2085
      %2089 = vrot.lane.b32.xlu0 %v1996, 96
      %v2090 = vpop.permute.xlu0 %2089
      %2093 = vrot.lane.b32.xlu0 %v2000, 112
      %v2094 = vpop.permute.xlu0 %2093
      %2097 = vrot.lane.b32.xlu0 %v2064, 16
      %v2098 = vpop.permute.xlu0 %2097
      %2101 = vrot.lane.b32.xlu0 %v2047, 32
      %v2102 = vpop.permute.xlu0 %2101
      %2105 = vrot.lane.b32.xlu0 %v2065, 48
      %v2106 = vpop.permute.xlu0 %2105
      %2109 = vrot.lane.b32.xlu0 %v2056, 64
      %v2110 = vpop.permute.xlu0 %2109
      %2113 = vrot.lane.b32.xlu0 %v2066, 80
      %v2114 = vpop.permute.xlu0 %2113
      %2117 = vrot.lane.b32.xlu0 %v2063, 96
      %v2118 = vpop.permute.xlu0 %2117
      %2121 = vrot.lane.b32.xlu0 %v2067, 112
      %v2122 = vpop.permute.xlu0 %2121
      %v2124 = vsel %vm546, %v1973, %v2070
      %v2125 = vsel %vm548, %v2124, %v2074
      %v2126 = vsel %vm550, %v2125, %v2078
      %v2127 = vsel %vm552, %v2126, %v2082
      %v2128 = vsel %vm554, %v2127, %v2086
      %v2129 = vsel %vm556, %v2128, %v2090
      %v2130 = vsel %vm558, %v2129, %v2094
      %v2131 = vsel %vm546, %v2040, %v2098
      %v2132 = vsel %vm548, %v2131, %v2102
      %v2133 = vsel %vm550, %v2132, %v2106
      %v2134 = vsel %vm552, %v2133, %v2110
      %v2135 = vsel %vm554, %v2134, %v2114
      %v2136 = vsel %vm556, %v2135, %v2118
      %v2137 = vsel %vm558, %v2136, %v2122
      %2138 = vrot.lane.b32.xlu0 %v1693, 126
      %v2139 = vpop.permute.xlu0 %2138
      %2140 = vrot.lane.b32.xlu0 %v1695, 126
      %v2141 = vpop.permute.xlu0 %2140
      %2142 = vrot.lane.b32.xlu0 %v1698, 126
      %v2143 = vpop.permute.xlu0 %2142
      %2144 = vrot.lane.b32.xlu0 %v1700, 126
      %v2145 = vpop.permute.xlu0 %2144
      %2146 = vrot.lane.b32.xlu0 %v1703, 126
      %v2147 = vpop.permute.xlu0 %2146
      %2148 = vrot.lane.b32.xlu0 %v1705, 126
      %v2149 = vpop.permute.xlu0 %2148
      %v2156 = vcombine.low %v2139, %v2147
      %v2157 = vcombine.high %v2139, %v2147
      %v2159 = vunpack.c.l.s4 1983009808
      %v2160 = vunpack.c.0.s8 %v2159
      %v2161 = vlaneseq
      %v2162 = vshrl.u32 %v2161, 7
      %v2163 = vsub.s32 %v2160, %v2162
      %v2164 = vrot.slane %v2156, %v2163
      %v2166 = vunpack.c.l.s4 1983009808
      %v2167 = vunpack.c.0.s8 %v2166
      %v2168 = vlaneseq
      %v2169 = vshrl.u32 %v2168, 7
      %v2170 = vsub.s32 %v2167, %v2169
      %v2171 = vrot.slane %v2157, %v2170
      %v2172 = vcombine.high %v2143, 0.0
      %v2174 = vunpack.c.l.s4 1983009808
      %v2175 = vunpack.c.0.s8 %v2174
      %v2176 = vlaneseq
      %v2177 = vshrl.u32 %v2176, 7
      %v2178 = vsub.s32 %v2175, %v2177
      %v2179 = vrot.slane %v2143, %v2178
      %v2181 = vunpack.c.l.s4 1983009808
      %v2182 = vunpack.c.0.s8 %v2181
      %v2183 = vlaneseq
      %v2184 = vshrl.u32 %v2183, 7
      %v2185 = vsub.s32 %v2182, %v2184
      %v2186 = vrot.slane %v2172, %v2185
      %v2187 = vcombine.low %v2164, %v2179
      %v2188 = vcombine.high %v2164, %v2179
      %v2190 = vunpack.c.l.s4 1934713408
      %v2191 = vunpack.c.0.s8 %v2190
      %v2192 = vlaneseq
      %v2193 = vshrl.u32 %v2192, 7
      %v2194 = vsub.s32 %v2191, %v2193
      %v2195 = vrot.slane %v2187, %v2194
      %v2197 = vunpack.c.l.s4 1934713408
      %v2198 = vunpack.c.0.s8 %v2197
      %v2199 = vlaneseq
      %v2200 = vshrl.u32 %v2199, 7
      %v2201 = vsub.s32 %v2198, %v2200
      %v2202 = vrot.slane %v2188, %v2201
      %v2203 = vcombine.low %v2171, %v2186
      %v2204 = vcombine.high %v2171, %v2186
      %v2206 = vunpack.c.l.s4 1934713408
      %v2207 = vunpack.c.0.s8 %v2206
      %v2208 = vlaneseq
      %v2209 = vshrl.u32 %v2208, 7
      %v2210 = vsub.s32 %v2207, %v2209
      %v2211 = vrot.slane %v2203, %v2210
      %v2213 = vunpack.c.l.s4 1934713408
      %v2214 = vunpack.c.0.s8 %v2213
      %v2215 = vlaneseq
      %v2216 = vshrl.u32 %v2215, 7
      %v2217 = vsub.s32 %v2214, %v2216
      %v2218 = vrot.slane %v2204, %v2217
      %v2219 = vcombine.high %v2195, 0.0
      %v2220 = vcombine.high %v2202, 0.0
      %v2221 = vcombine.high %v2211, 0.0
      %v2222 = vcombine.high %v2218, 0.0
      %v2223 = vcombine.low %v2141, %v2149
      %v2224 = vcombine.high %v2141, %v2149
      %v2226 = vunpack.c.l.s4 1983009808
      %v2227 = vunpack.c.0.s8 %v2226
      %v2228 = vlaneseq
      %v2229 = vshrl.u32 %v2228, 7
      %v2230 = vsub.s32 %v2227, %v2229
      %v2231 = vrot.slane %v2223, %v2230
      %v2233 = vunpack.c.l.s4 1983009808
      %v2234 = vunpack.c.0.s8 %v2233
      %v2235 = vlaneseq
      %v2236 = vshrl.u32 %v2235, 7
      %v2237 = vsub.s32 %v2234, %v2236
      %v2238 = vrot.slane %v2224, %v2237
      %v2239 = vcombine.high %v2145, 0.0
      %v2241 = vunpack.c.l.s4 1983009808
      %v2242 = vunpack.c.0.s8 %v2241
      %v2243 = vlaneseq
      %v2244 = vshrl.u32 %v2243, 7
      %v2245 = vsub.s32 %v2242, %v2244
      %v2246 = vrot.slane %v2145, %v2245
      %v2248 = vunpack.c.l.s4 1983009808
      %v2249 = vunpack.c.0.s8 %v2248
      %v2250 = vlaneseq
      %v2251 = vshrl.u32 %v2250, 7
      %v2252 = vsub.s32 %v2249, %v2251
      %v2253 = vrot.slane %v2239, %v2252
      %v2254 = vcombine.low %v2231, %v2246
      %v2255 = vcombine.high %v2231, %v2246
      %v2257 = vunpack.c.l.s4 1934713408
      %v2258 = vunpack.c.0.s8 %v2257
      %v2259 = vlaneseq
      %v2260 = vshrl.u32 %v2259, 7
      %v2261 = vsub.s32 %v2258, %v2260
      %v2262 = vrot.slane %v2254, %v2261
      %v2264 = vunpack.c.l.s4 1934713408
      %v2265 = vunpack.c.0.s8 %v2264
      %v2266 = vlaneseq
      %v2267 = vshrl.u32 %v2266, 7
      %v2268 = vsub.s32 %v2265, %v2267
      %v2269 = vrot.slane %v2255, %v2268
      %v2270 = vcombine.low %v2238, %v2253
      %v2271 = vcombine.high %v2238, %v2253
      %v2273 = vunpack.c.l.s4 1934713408
      %v2274 = vunpack.c.0.s8 %v2273
      %v2275 = vlaneseq
      %v2276 = vshrl.u32 %v2275, 7
      %v2277 = vsub.s32 %v2274, %v2276
      %v2278 = vrot.slane %v2270, %v2277
      %v2280 = vunpack.c.l.s4 1934713408
      %v2281 = vunpack.c.0.s8 %v2280
      %v2282 = vlaneseq
      %v2283 = vshrl.u32 %v2282, 7
      %v2284 = vsub.s32 %v2281, %v2283
      %v2285 = vrot.slane %v2271, %v2284
      %v2286 = vcombine.high %v2262, 0.0
      %v2287 = vcombine.high %v2269, 0.0
      %v2288 = vcombine.high %v2278, 0.0
      %v2289 = vcombine.high %v2285, 0.0
      %2291 = vrot.lane.b32.xlu0 %v2219, 16
      %v2292 = vpop.permute.xlu0 %2291
      %2295 = vrot.lane.b32.xlu0 %v2202, 32
      %v2296 = vpop.permute.xlu0 %2295
      %2299 = vrot.lane.b32.xlu0 %v2220, 48
      %v2300 = vpop.permute.xlu0 %2299
      %2303 = vrot.lane.b32.xlu0 %v2211, 64
      %v2304 = vpop.permute.xlu0 %2303
      %2307 = vrot.lane.b32.xlu0 %v2221, 80
      %v2308 = vpop.permute.xlu0 %2307
      %2311 = vrot.lane.b32.xlu0 %v2218, 96
      %v2312 = vpop.permute.xlu0 %2311
      %2315 = vrot.lane.b32.xlu0 %v2222, 112
      %v2316 = vpop.permute.xlu0 %2315
      %2319 = vrot.lane.b32.xlu0 %v2286, 16
      %v2320 = vpop.permute.xlu0 %2319
      %2323 = vrot.lane.b32.xlu0 %v2269, 32
      %v2324 = vpop.permute.xlu0 %2323
      %2327 = vrot.lane.b32.xlu0 %v2287, 48
      %v2328 = vpop.permute.xlu0 %2327
      %2331 = vrot.lane.b32.xlu0 %v2278, 64
      %v2332 = vpop.permute.xlu0 %2331
      %2335 = vrot.lane.b32.xlu0 %v2288, 80
      %v2336 = vpop.permute.xlu0 %2335
      %2339 = vrot.lane.b32.xlu0 %v2285, 96
      %v2340 = vpop.permute.xlu0 %2339
      %2343 = vrot.lane.b32.xlu0 %v2289, 112
      %v2344 = vpop.permute.xlu0 %2343
      %v2346 = vsel %vm546, %v2195, %v2292
      %v2347 = vsel %vm548, %v2346, %v2296
      %v2348 = vsel %vm550, %v2347, %v2300
      %v2349 = vsel %vm552, %v2348, %v2304
      %v2350 = vsel %vm554, %v2349, %v2308
      %v2351 = vsel %vm556, %v2350, %v2312
      %v2352 = vsel %vm558, %v2351, %v2316
      %v2353 = vsel %vm546, %v2262, %v2320
      %v2354 = vsel %vm548, %v2353, %v2324
      %v2355 = vsel %vm550, %v2354, %v2328
      %v2356 = vsel %vm552, %v2355, %v2332
      %v2357 = vsel %vm554, %v2356, %v2336
      %v2358 = vsel %vm556, %v2357, %v2340
      %v2359 = vsel %vm558, %v2358, %v2344
      %v2362 = vrot.slane %v787, 5
      %v2363 = vrot.slane %v794, 5
      %v2368 = vrot.slane %v1009, 2
      %v2369 = vrot.slane %v1016, 2
      %v2374 = vrot.slane %v1238, 7
      %v2375 = vrot.slane %v1245, 7
      %v2380 = vrot.slane %v1460, 4
      %v2381 = vrot.slane %v1467, 4
      %v2386 = vrot.slane %v1682, 1
      %v2387 = vrot.slane %v1689, 1
      %v2392 = vrot.slane %v1908, 6
      %v2393 = vrot.slane %v1915, 6
      %v2398 = vrot.slane %v2130, 3
      %v2399 = vrot.slane %v2137, 3
      %vm2402 = vcmask 1042432
      %v2403 = vsel %vm2402, %v559, %v2362
      %v2404 = vsel %vm2402, %v566, %v2363
      %v2405 = vsel %vm1690, %v2403, %v2368
      %v2406 = vsel %vm1690, %v2404, %v2369
      %vm2407 = vcmask 1040384
      %v2408 = vsel %vm2407, %v2368, %v2374
      %v2409 = vsel %vm2407, %v2369, %v2375
      %vm2410 = vcmask 1043456
      %v2411 = vsel %vm2410, %v2408, %v2380
      %v2412 = vsel %vm2410, %v2409, %v2381
      %v2413 = vsel %vm1020, %v2411, %v2386
      %v2414 = vsel %vm1020, %v2412, %v2387
      %vm2415 = vcmask 1041408
      %v2416 = vsel %vm2415, %v2386, %v2392
      %v2417 = vsel %vm2415, %v2387, %v2393
      %vm2418 = vcmask 1044480
      %v2419 = vsel %vm2418, %v2416, %v2398
      %v2420 = vsel %vm2418, %v2417, %v2399
      %v2421 = vld [vmem:[%s1] sm:$0xff]
      %v2422 = vld [vmem:[%s2] sm:$0xff]
      %2424 = vset.pattern.permute.xlu0 0
      %2425 = vperm.xlu0 %2424, %v2422
      %v2426 = vpop.permute.xlu0 %2425
      %vm2428 = vcmask 220160
      %v2430 = vsel %vm2428, %v2421, 0
      %v2433 = vsel %vm2402, %v2352, 0
      %v2436 = vsel %vm2402, %v2359, 0
      %2438 = vmatprep.subr.mxu0 0.0
      %2439 = vmatpush1.msra.mxu0 0.0
      %2440 = vmatprep.subr.mxu0 0.0
      %2441 = vmatpush1.msra.mxu0 0.0
      %2442 = vmatprep.subr.mxu0 0.0
      %2443 = vmatpush1.msra.mxu0 0.0
      %2444 = vmatprep.subr.mxu0 0.0
      %2445 = vmatpush1.msra.mxu0 0.0
      %2446 = vmatprep.subr.mxu0 0.0
      %2447 = vmatpush1.msra.mxu0 0.0
      %2448 = vmatprep.subr.mxu0 0.0
      %2449 = vmatpush1.msra.mxu0 0.0
      %2450 = vmatprep.subr.mxu0 0.0
      %2451 = vmatpush1.msra.mxu0 0.0
      %2452 = vmatprep.subr.mxu0 0.0
      %2453 = vmatpush1.msra.mxu0 0.0
      %2454 = vmatprep.subr.mxu0 0.0
      %2455 = vmatpush1.msra.mxu0 0.0
      %2456 = vmatprep.subr.mxu0 0.0
      %2457 = vmatpush1.msra.mxu0 0.0
      %2458 = vmatprep.subr.mxu0 0.0
      %2459 = vmatpush1.msra.mxu0 0.0
      %2460 = vmatprep.subr.mxu0 0.0
      %2461 = vmatpush1.msra.mxu0 0.0
      %2462 = vmatprep.subr.mxu0 %v2436
      %2463 = vmatpush1.msra.mxu0 %v2433
      %2464 = vmatprep.subr.mxu0 %v2420
      %2465 = vmatpush1.msra.mxu0 %v2419
      %2466 = vmatprep.subr.mxu0 %v2414
      %2467 = vmatpush1.msra.mxu0 %v2413
      %2468 = vmatprep.subr.mxu0 %v2406
      %2469 = vmatpush1.msra.mxu0 %v2405
      %2470 = vmatprep.subr.mxu0 0.0
      %2471 = vmatpush2.msra.mxu0 0.0
      %2472 = vmatprep.subr.mxu0 0.0
      %2473 = vmatpush2.msra.mxu0 0.0
      %2474 = vmatprep.subr.mxu0 0.0
      %2475 = vmatpush2.msra.mxu0 0.0
      %2476 = vmatprep.subr.mxu0 0.0
      %2477 = vmatpush2.msra.mxu0 0.0
      %2478 = vmatprep.subr.mxu0 0.0
      %2479 = vmatpush2.msra.mxu0 0.0
      %2480 = vmatprep.subr.mxu0 0.0
      %2481 = vmatpush2.msra.mxu0 0.0
      %2482 = vmatprep.subr.mxu0 0.0
      %2483 = vmatpush2.msra.mxu0 0.0
      %2484 = vmatprep.subr.mxu0 0.0
      %2485 = vmatpush2.msra.mxu0 0.0
      %2486 = vmatprep.subr.mxu0 0.0
      %2487 = vmatpush2.msra.mxu0 0.0
      %2488 = vmatprep.subr.mxu0 0.0
      %2489 = vmatpush2.msra.mxu0 0.0
      %2490 = vmatprep.subr.mxu0 0.0
      %2491 = vmatpush2.msra.mxu0 0.0
      %2492 = vmatprep.subr.mxu0 0.0
      %2493 = vmatpush2.msra.mxu0 0.0
      %2494 = vmatprep.subr.mxu0 0.0
      %2495 = vmatpush2.msra.mxu0 0.0
      %2496 = vmatprep.subr.mxu0 0.0
      %2497 = vmatpush2.msra.mxu0 0.0
      %2498 = vmatprep.subr.mxu0 0.0
      %2499 = vmatpush2.msra.mxu0 0.0
      %2500 = vmatprep.subr.mxu0 0.0
      %2501 = vmatpush2.msra.mxu0 0.0
      %2502 = vmatprep.mubr.f32.mxu0 0.0
      %2503 = vmatmul.mubr.f32.gmra.mxu0 %v2430
      %v2504 = vpop.f32.mrf.mxu0
      %v2505 = vadd.f32 %v2426, %v2504
      %v2506 = vpop.f32.mrf.mxu0
      %v2507 = vadd.f32 %v2426, %v2506
      %2508 = vdwg.mxu0
      %v2509 = vmax.f32 %v2505, 0.0
      %v2510 = vmax.f32 %v2507, 0.0
      %2512 = vrot.lane.b32.xlu0 %v2509, 112
      %v2513 = vpop.permute.xlu0 %2512
      %2515 = vrot.lane.b32.xlu0 %v2509, 96
      %v2516 = vpop.permute.xlu0 %2515
      %2518 = vrot.lane.b32.xlu0 %v2509, 80
      %v2519 = vpop.permute.xlu0 %2518
      %2521 = vrot.lane.b32.xlu0 %v2509, 64
      %v2522 = vpop.permute.xlu0 %2521
      %2524 = vrot.lane.b32.xlu0 %v2509, 48
      %v2525 = vpop.permute.xlu0 %2524
      %2527 = vrot.lane.b32.xlu0 %v2509, 32
      %v2528 = vpop.permute.xlu0 %2527
      %2530 = vrot.lane.b32.xlu0 %v2509, 16
      %v2531 = vpop.permute.xlu0 %2530
      %2534 = vrot.lane.b32.xlu0 %v2510, 112
      %v2535 = vpop.permute.xlu0 %2534
      %2537 = vrot.lane.b32.xlu0 %v2510, 96
      %v2538 = vpop.permute.xlu0 %2537
      %2540 = vrot.lane.b32.xlu0 %v2510, 80
      %v2541 = vpop.permute.xlu0 %2540
      %2543 = vrot.lane.b32.xlu0 %v2510, 64
      %v2544 = vpop.permute.xlu0 %2543
      %2546 = vrot.lane.b32.xlu0 %v2510, 48
      %v2547 = vpop.permute.xlu0 %2546
      %2549 = vrot.lane.b32.xlu0 %v2510, 32
      %v2550 = vpop.permute.xlu0 %2549
      %2552 = vrot.lane.b32.xlu0 %v2510, 16
      %v2553 = vpop.permute.xlu0 %2552
      %v2555 = vcombine.low %v2509, %v2516
      %v2556 = vcombine.high %v2509, %v2516
      %v2558 = vunpack.c.l.s4 1983009808
      %v2559 = vunpack.c.0.s8 %v2558
      %v2560 = vlaneseq
      %v2561 = vshrl.u32 %v2560, 7
      %v2562 = vsub.s32 %v2559, %v2561
      %v2563 = vrot.slane %v2555, %v2562
      %v2565 = vunpack.c.l.s4 1983009808
      %v2566 = vunpack.c.0.s8 %v2565
      %v2567 = vlaneseq
      %v2568 = vshrl.u32 %v2567, 7
      %v2569 = vsub.s32 %v2566, %v2568
      %v2570 = vrot.slane %v2556, %v2569
      %v2571 = vcombine.low %v2513, %v2519
      %v2572 = vcombine.high %v2513, %v2519
      %v2574 = vunpack.c.l.s4 1983009808
      %v2575 = vunpack.c.0.s8 %v2574
      %v2576 = vlaneseq
      %v2577 = vshrl.u32 %v2576, 7
      %v2578 = vsub.s32 %v2575, %v2577
      %v2579 = vrot.slane %v2571, %v2578
      %v2581 = vunpack.c.l.s4 1983009808
      %v2582 = vunpack.c.0.s8 %v2581
      %v2583 = vlaneseq
      %v2584 = vshrl.u32 %v2583, 7
      %v2585 = vsub.s32 %v2582, %v2584
      %v2586 = vrot.slane %v2572, %v2585
      %v2587 = vcombine.low %v2522, %v2528
      %v2588 = vcombine.high %v2522, %v2528
      %v2590 = vunpack.c.l.s4 1983009808
      %v2591 = vunpack.c.0.s8 %v2590
      %v2592 = vlaneseq
      %v2593 = vshrl.u32 %v2592, 7
      %v2594 = vsub.s32 %v2591, %v2593
      %v2595 = vrot.slane %v2587, %v2594
      %v2597 = vunpack.c.l.s4 1983009808
      %v2598 = vunpack.c.0.s8 %v2597
      %v2599 = vlaneseq
      %v2600 = vshrl.u32 %v2599, 7
      %v2601 = vsub.s32 %v2598, %v2600
      %v2602 = vrot.slane %v2588, %v2601
      %v2603 = vcombine.low %v2525, %v2531
      %v2604 = vcombine.high %v2525, %v2531
      %v2606 = vunpack.c.l.s4 1983009808
      %v2607 = vunpack.c.0.s8 %v2606
      %v2608 = vlaneseq
      %v2609 = vshrl.u32 %v2608, 7
      %v2610 = vsub.s32 %v2607, %v2609
      %v2611 = vrot.slane %v2603, %v2610
      %v2613 = vunpack.c.l.s4 1983009808
      %v2614 = vunpack.c.0.s8 %v2613
      %v2615 = vlaneseq
      %v2616 = vshrl.u32 %v2615, 7
      %v2617 = vsub.s32 %v2614, %v2616
      %v2618 = vrot.slane %v2604, %v2617
      %v2619 = vcombine.low %v2563, %v2579
      %v2620 = vcombine.high %v2563, %v2579
      %v2622 = vunpack.c.l.s4 1934713408
      %v2623 = vunpack.c.0.s8 %v2622
      %v2624 = vlaneseq
      %v2625 = vshrl.u32 %v2624, 7
      %v2626 = vsub.s32 %v2623, %v2625
      %v2627 = vrot.slane %v2619, %v2626
      %v2629 = vunpack.c.l.s4 1934713408
      %v2630 = vunpack.c.0.s8 %v2629
      %v2631 = vlaneseq
      %v2632 = vshrl.u32 %v2631, 7
      %v2633 = vsub.s32 %v2630, %v2632
      %v2634 = vrot.slane %v2620, %v2633
      %v2635 = vcombine.low %v2570, %v2586
      %v2636 = vcombine.high %v2570, %v2586
      %v2638 = vunpack.c.l.s4 1934713408
      %v2639 = vunpack.c.0.s8 %v2638
      %v2640 = vlaneseq
      %v2641 = vshrl.u32 %v2640, 7
      %v2642 = vsub.s32 %v2639, %v2641
      %v2643 = vrot.slane %v2635, %v2642
      %v2645 = vunpack.c.l.s4 1934713408
      %v2646 = vunpack.c.0.s8 %v2645
      %v2647 = vlaneseq
      %v2648 = vshrl.u32 %v2647, 7
      %v2649 = vsub.s32 %v2646, %v2648
      %v2650 = vrot.slane %v2636, %v2649
      %v2651 = vcombine.low %v2595, %v2611
      %v2652 = vcombine.high %v2595, %v2611
      %v2654 = vunpack.c.l.s4 1934713408
      %v2655 = vunpack.c.0.s8 %v2654
      %v2656 = vlaneseq
      %v2657 = vshrl.u32 %v2656, 7
      %v2658 = vsub.s32 %v2655, %v2657
      %v2659 = vrot.slane %v2651, %v2658
      %v2661 = vunpack.c.l.s4 1934713408
      %v2662 = vunpack.c.0.s8 %v2661
      %v2663 = vlaneseq
      %v2664 = vshrl.u32 %v2663, 7
      %v2665 = vsub.s32 %v2662, %v2664
      %v2666 = vrot.slane %v2652, %v2665
      %v2667 = vcombine.low %v2602, %v2618
      %v2668 = vcombine.high %v2602, %v2618
      %v2670 = vunpack.c.l.s4 1934713408
      %v2671 = vunpack.c.0.s8 %v2670
      %v2672 = vlaneseq
      %v2673 = vshrl.u32 %v2672, 7
      %v2674 = vsub.s32 %v2671, %v2673
      %v2675 = vrot.slane %v2667, %v2674
      %v2677 = vunpack.c.l.s4 1934713408
      %v2678 = vunpack.c.0.s8 %v2677
      %v2679 = vlaneseq
      %v2680 = vshrl.u32 %v2679, 7
      %v2681 = vsub.s32 %v2678, %v2680
      %v2682 = vrot.slane %v2668, %v2681
      %v2683 = vcombine.low %v2627, %v2659
      %v2684 = vcombine.high %v2627, %v2659
      %v2685 = vcombine.low %v2634, %v2666
      %v2686 = vcombine.high %v2634, %v2666
      %v2687 = vcombine.low %v2643, %v2675
      %v2688 = vcombine.high %v2643, %v2675
      %v2689 = vcombine.low %v2650, %v2682
      %v2690 = vcombine.high %v2650, %v2682
      %v2691 = vcombine.low %v2510, %v2538
      %v2692 = vcombine.high %v2510, %v2538
      %v2694 = vunpack.c.l.s4 1983009808
      %v2695 = vunpack.c.0.s8 %v2694
      %v2696 = vlaneseq
      %v2697 = vshrl.u32 %v2696, 7
      %v2698 = vsub.s32 %v2695, %v2697
      %v2699 = vrot.slane %v2691, %v2698
      %v2701 = vunpack.c.l.s4 1983009808
      %v2702 = vunpack.c.0.s8 %v2701
      %v2703 = vlaneseq
      %v2704 = vshrl.u32 %v2703, 7
      %v2705 = vsub.s32 %v2702, %v2704
      %v2706 = vrot.slane %v2692, %v2705
      %v2707 = vcombine.low %v2535, %v2541
      %v2708 = vcombine.high %v2535, %v2541
      %v2710 = vunpack.c.l.s4 1983009808
      %v2711 = vunpack.c.0.s8 %v2710
      %v2712 = vlaneseq
      %v2713 = vshrl.u32 %v2712, 7
      %v2714 = vsub.s32 %v2711, %v2713
      %v2715 = vrot.slane %v2707, %v2714
      %v2717 = vunpack.c.l.s4 1983009808
      %v2718 = vunpack.c.0.s8 %v2717
      %v2719 = vlaneseq
      %v2720 = vshrl.u32 %v2719, 7
      %v2721 = vsub.s32 %v2718, %v2720
      %v2722 = vrot.slane %v2708, %v2721
      %v2723 = vcombine.low %v2544, %v2550
      %v2724 = vcombine.high %v2544, %v2550
      %v2726 = vunpack.c.l.s4 1983009808
      %v2727 = vunpack.c.0.s8 %v2726
      %v2728 = vlaneseq
      %v2729 = vshrl.u32 %v2728, 7
      %v2730 = vsub.s32 %v2727, %v2729
      %v2731 = vrot.slane %v2723, %v2730
      %v2733 = vunpack.c.l.s4 1983009808
      %v2734 = vunpack.c.0.s8 %v2733
      %v2735 = vlaneseq
      %v2736 = vshrl.u32 %v2735, 7
      %v2737 = vsub.s32 %v2734, %v2736
      %v2738 = vrot.slane %v2724, %v2737
      %v2739 = vcombine.low %v2547, %v2553
      %v2740 = vcombine.high %v2547, %v2553
      %v2742 = vunpack.c.l.s4 1983009808
      %v2743 = vunpack.c.0.s8 %v2742
      %v2744 = vlaneseq
      %v2745 = vshrl.u32 %v2744, 7
      %v2746 = vsub.s32 %v2743, %v2745
      %v2747 = vrot.slane %v2739, %v2746
      %v2749 = vunpack.c.l.s4 1983009808
      %v2750 = vunpack.c.0.s8 %v2749
      %v2751 = vlaneseq
      %v2752 = vshrl.u32 %v2751, 7
      %v2753 = vsub.s32 %v2750, %v2752
      %v2754 = vrot.slane %v2740, %v2753
      %v2755 = vcombine.low %v2699, %v2715
      %v2756 = vcombine.high %v2699, %v2715
      %v2758 = vunpack.c.l.s4 1934713408
      %v2759 = vunpack.c.0.s8 %v2758
      %v2760 = vlaneseq
      %v2761 = vshrl.u32 %v2760, 7
      %v2762 = vsub.s32 %v2759, %v2761
      %v2763 = vrot.slane %v2755, %v2762
      %v2765 = vunpack.c.l.s4 1934713408
      %v2766 = vunpack.c.0.s8 %v2765
      %v2767 = vlaneseq
      %v2768 = vshrl.u32 %v2767, 7
      %v2769 = vsub.s32 %v2766, %v2768
      %v2770 = vrot.slane %v2756, %v2769
      %v2771 = vcombine.low %v2706, %v2722
      %v2772 = vcombine.high %v2706, %v2722
      %v2774 = vunpack.c.l.s4 1934713408
      %v2775 = vunpack.c.0.s8 %v2774
      %v2776 = vlaneseq
      %v2777 = vshrl.u32 %v2776, 7
      %v2778 = vsub.s32 %v2775, %v2777
      %v2779 = vrot.slane %v2771, %v2778
      %v2781 = vunpack.c.l.s4 1934713408
      %v2782 = vunpack.c.0.s8 %v2781
      %v2783 = vlaneseq
      %v2784 = vshrl.u32 %v2783, 7
      %v2785 = vsub.s32 %v2782, %v2784
      %v2786 = vrot.slane %v2772, %v2785
      %v2787 = vcombine.low %v2731, %v2747
      %v2788 = vcombine.high %v2731, %v2747
      %v2790 = vunpack.c.l.s4 1934713408
      %v2791 = vunpack.c.0.s8 %v2790
      %v2792 = vlaneseq
      %v2793 = vshrl.u32 %v2792, 7
      %v2794 = vsub.s32 %v2791, %v2793
      %v2795 = vrot.slane %v2787, %v2794
      %v2797 = vunpack.c.l.s4 1934713408
      %v2798 = vunpack.c.0.s8 %v2797
      %v2799 = vlaneseq
      %v2800 = vshrl.u32 %v2799, 7
      %v2801 = vsub.s32 %v2798, %v2800
      %v2802 = vrot.slane %v2788, %v2801
      %v2803 = vcombine.low %v2738, %v2754
      %v2804 = vcombine.high %v2738, %v2754
      %v2806 = vunpack.c.l.s4 1934713408
      %v2807 = vunpack.c.0.s8 %v2806
      %v2808 = vlaneseq
      %v2809 = vshrl.u32 %v2808, 7
      %v2810 = vsub.s32 %v2807, %v2809
      %v2811 = vrot.slane %v2803, %v2810
      %v2813 = vunpack.c.l.s4 1934713408
      %v2814 = vunpack.c.0.s8 %v2813
      %v2815 = vlaneseq
      %v2816 = vshrl.u32 %v2815, 7
      %v2817 = vsub.s32 %v2814, %v2816
      %v2818 = vrot.slane %v2804, %v2817
      %v2819 = vcombine.low %v2763, %v2795
      %v2820 = vcombine.high %v2763, %v2795
      %v2821 = vcombine.low %v2770, %v2802
      %v2822 = vcombine.high %v2770, %v2802
      %v2823 = vcombine.low %v2779, %v2811
      %v2824 = vcombine.high %v2779, %v2811
      %v2825 = vcombine.low %v2786, %v2818
      %v2826 = vcombine.high %v2786, %v2818
      %2843 = vrot.lane.b32.xlu0 %v2683, 1
      %v2844 = vpop.permute.xlu0 %2843
      %2845 = vrot.lane.b32.xlu0 %v2819, 1
      %v2846 = vpop.permute.xlu0 %2845
      %2847 = vrot.lane.b32.xlu0 %v2684, 1
      %v2848 = vpop.permute.xlu0 %2847
      %2849 = vrot.lane.b32.xlu0 %v2820, 1
      %v2850 = vpop.permute.xlu0 %2849
      %2851 = vrot.lane.b32.xlu0 %v2685, 1
      %v2852 = vpop.permute.xlu0 %2851
      %2853 = vrot.lane.b32.xlu0 %v2821, 1
      %v2854 = vpop.permute.xlu0 %2853
      %2855 = vrot.lane.b32.xlu0 %v2686, 1
      %v2856 = vpop.permute.xlu0 %2855
      %2857 = vrot.lane.b32.xlu0 %v2822, 1
      %v2858 = vpop.permute.xlu0 %2857
      %2859 = vrot.lane.b32.xlu0 %v2687, 1
      %v2860 = vpop.permute.xlu0 %2859
      %2861 = vrot.lane.b32.xlu0 %v2823, 1
      %v2862 = vpop.permute.xlu0 %2861
      %2863 = vrot.lane.b32.xlu0 %v2688, 1
      %v2864 = vpop.permute.xlu0 %2863
      %2865 = vrot.lane.b32.xlu0 %v2824, 1
      %v2866 = vpop.permute.xlu0 %2865
      %2867 = vrot.lane.b32.xlu0 %v2689, 1
      %v2868 = vpop.permute.xlu0 %2867
      %2869 = vrot.lane.b32.xlu0 %v2825, 1
      %v2870 = vpop.permute.xlu0 %2869
      %2871 = vrot.lane.b32.xlu0 %v2690, 1
      %v2872 = vpop.permute.xlu0 %2871
      %2873 = vrot.lane.b32.xlu0 %v2826, 1
      %v2874 = vpop.permute.xlu0 %2873
      %2891 = vst.msk [vmem:[#allocation3 + $0x1] sm:$0xff] %vm340, %v2844
      %2892 = vst.msk [vmem:[#allocation3 + $0x9] sm:$0xff] %vm340, %v2846
      %2893 = vst.msk [vmem:[#allocation3 + $0x19] sm:$0xff] %vm340, %v2848
      %2894 = vst.msk [vmem:[#allocation3 + $0x21] sm:$0xff] %vm340, %v2850
      %2895 = vst.msk [vmem:[#allocation3 + $0x31] sm:$0xff] %vm340, %v2852
      %2896 = vst.msk [vmem:[#allocation3 + $0x39] sm:$0xff] %vm340, %v2854
      %2897 = vst.msk [vmem:[#allocation3 + $0x49] sm:$0xff] %vm340, %v2856
      %2898 = vst.msk [vmem:[#allocation3 + $0x51] sm:$0xff] %vm340, %v2858
      %2899 = vst.msk [vmem:[#allocation3 + $0x61] sm:$0xff] %vm340, %v2860
      %2900 = vst.msk [vmem:[#allocation3 + $0x69] sm:$0xff] %vm340, %v2862
      %2901 = vst.msk [vmem:[#allocation3 + $0x79] sm:$0xff] %vm340, %v2864
      %2902 = vst.msk [vmem:[#allocation3 + $0x81] sm:$0xff] %vm340, %v2866
      %2903 = vst.msk [vmem:[#allocation3 + $0x91] sm:$0xff] %vm340, %v2868
      %2904 = vst.msk [vmem:[#allocation3 + $0x99] sm:$0xff] %vm340, %v2870
      %2905 = vst.msk [vmem:[#allocation3 + $0xa9] sm:$0xff] %vm340, %v2872
      %2906 = vst.msk [vmem:[#allocation3 + $0xb1] sm:$0xff] %vm340, %v2874
      %v2907 = vld [vmem:[#allocation3] sm:$0xff]
      %v2908 = vld [vmem:[#allocation3 + $0x8] sm:$0xff]
      %v2909 = vld [vmem:[#allocation3 + $0x10] sm:$0x3]
      %v2910 = vld [vmem:[#allocation3 + $0x18] sm:$0xff]
      %v2911 = vld [vmem:[#allocation3 + $0x20] sm:$0xff]
      %v2912 = vld [vmem:[#allocation3 + $0x28] sm:$0x3]
      %v2913 = vld [vmem:[#allocation3 + $0x30] sm:$0xff]
      %v2914 = vld [vmem:[#allocation3 + $0x38] sm:$0xff]
      %v2915 = vld [vmem:[#allocation3 + $0x40] sm:$0x3]
      %v2916 = vld [vmem:[#allocation3 + $0x48] sm:$0xff]
      %v2917 = vld [vmem:[#allocation3 + $0x50] sm:$0xff]
      %v2918 = vld [vmem:[#allocation3 + $0x58] sm:$0x3]
      %v2919 = vld [vmem:[#allocation3 + $0x60] sm:$0xff]
      %v2920 = vld [vmem:[#allocation3 + $0x68] sm:$0xff]
      %v2921 = vld [vmem:[#allocation3 + $0x70] sm:$0x3]
      %v2922 = vld [vmem:[#allocation3 + $0x78] sm:$0xff]
      %v2923 = vld [vmem:[#allocation3 + $0x80] sm:$0xff]
      %v2924 = vld [vmem:[#allocation3 + $0x88] sm:$0x3]
      %v2925 = vld [vmem:[#allocation3 + $0x90] sm:$0xff]
      %v2926 = vld [vmem:[#allocation3 + $0x98] sm:$0xff]
      %v2927 = vld [vmem:[#allocation3 + $0xa0] sm:$0x3]
      %v2928 = vld [vmem:[#allocation3 + $0xa8] sm:$0xff]
      %v2929 = vld [vmem:[#allocation3 + $0xb0] sm:$0xff]
      %v2930 = vld [vmem:[#allocation3 + $0xb8] sm:$0x3]
      %v2931 = vcombine.low %v2907, %v2913
      %v2932 = vcombine.high %v2907, %v2913
      %v2934 = vunpack.c.l.s4 1983009808
      %v2935 = vunpack.c.0.s8 %v2934
      %v2936 = vlaneseq
      %v2937 = vshrl.u32 %v2936, 7
      %v2938 = vsub.s32 %v2935, %v2937
      %v2939 = vrot.slane %v2931, %v2938
      %v2941 = vunpack.c.l.s4 1983009808
      %v2942 = vunpack.c.0.s8 %v2941
      %v2943 = vlaneseq
      %v2944 = vshrl.u32 %v2943, 7
      %v2945 = vsub.s32 %v2942, %v2944
      %v2946 = vrot.slane %v2932, %v2945
      %v2947 = vcombine.low %v2910, %v2916
      %v2948 = vcombine.high %v2910, %v2916
      %v2950 = vunpack.c.l.s4 1983009808
      %v2951 = vunpack.c.0.s8 %v2950
      %v2952 = vlaneseq
      %v2953 = vshrl.u32 %v2952, 7
      %v2954 = vsub.s32 %v2951, %v2953
      %v2955 = vrot.slane %v2947, %v2954
      %v2957 = vunpack.c.l.s4 1983009808
      %v2958 = vunpack.c.0.s8 %v2957
      %v2959 = vlaneseq
      %v2960 = vshrl.u32 %v2959, 7
      %v2961 = vsub.s32 %v2958, %v2960
      %v2962 = vrot.slane %v2948, %v2961
      %v2963 = vcombine.low %v2919, %v2925
      %v2964 = vcombine.high %v2919, %v2925
      %v2966 = vunpack.c.l.s4 1983009808
      %v2967 = vunpack.c.0.s8 %v2966
      %v2968 = vlaneseq
      %v2969 = vshrl.u32 %v2968, 7
      %v2970 = vsub.s32 %v2967, %v2969
      %v2971 = vrot.slane %v2963, %v2970
      %v2973 = vunpack.c.l.s4 1983009808
      %v2974 = vunpack.c.0.s8 %v2973
      %v2975 = vlaneseq
      %v2976 = vshrl.u32 %v2975, 7
      %v2977 = vsub.s32 %v2974, %v2976
      %v2978 = vrot.slane %v2964, %v2977
      %v2979 = vcombine.low %v2922, %v2928
      %v2980 = vcombine.high %v2922, %v2928
      %v2982 = vunpack.c.l.s4 1983009808
      %v2983 = vunpack.c.0.s8 %v2982
      %v2984 = vlaneseq
      %v2985 = vshrl.u32 %v2984, 7
      %v2986 = vsub.s32 %v2983, %v2985
      %v2987 = vrot.slane %v2979, %v2986
      %v2989 = vunpack.c.l.s4 1983009808
      %v2990 = vunpack.c.0.s8 %v2989
      %v2991 = vlaneseq
      %v2992 = vshrl.u32 %v2991, 7
      %v2993 = vsub.s32 %v2990, %v2992
      %v2994 = vrot.slane %v2980, %v2993
      %v2995 = vcombine.low %v2939, %v2955
      %v2996 = vcombine.high %v2939, %v2955
      %v2998 = vunpack.c.l.s4 1934713408
      %v2999 = vunpack.c.0.s8 %v2998
      %v3000 = vlaneseq
      %v3001 = vshrl.u32 %v3000, 7
      %v3002 = vsub.s32 %v2999, %v3001
      %v3003 = vrot.slane %v2995, %v3002
      %v3005 = vunpack.c.l.s4 1934713408
      %v3006 = vunpack.c.0.s8 %v3005
      %v3007 = vlaneseq
      %v3008 = vshrl.u32 %v3007, 7
      %v3009 = vsub.s32 %v3006, %v3008
      %v3010 = vrot.slane %v2996, %v3009
      %v3011 = vcombine.low %v2946, %v2962
      %v3012 = vcombine.high %v2946, %v2962
      %v3014 = vunpack.c.l.s4 1934713408
      %v3015 = vunpack.c.0.s8 %v3014
      %v3016 = vlaneseq
      %v3017 = vshrl.u32 %v3016, 7
      %v3018 = vsub.s32 %v3015, %v3017
      %v3019 = vrot.slane %v3011, %v3018
      %v3021 = vunpack.c.l.s4 1934713408
      %v3022 = vunpack.c.0.s8 %v3021
      %v3023 = vlaneseq
      %v3024 = vshrl.u32 %v3023, 7
      %v3025 = vsub.s32 %v3022, %v3024
      %v3026 = vrot.slane %v3012, %v3025
      %v3027 = vcombine.low %v2971, %v2987
      %v3028 = vcombine.high %v2971, %v2987
      %v3030 = vunpack.c.l.s4 1934713408
      %v3031 = vunpack.c.0.s8 %v3030
      %v3032 = vlaneseq
      %v3033 = vshrl.u32 %v3032, 7
      %v3034 = vsub.s32 %v3031, %v3033
      %v3035 = vrot.slane %v3027, %v3034
      %v3037 = vunpack.c.l.s4 1934713408
      %v3038 = vunpack.c.0.s8 %v3037
      %v3039 = vlaneseq
      %v3040 = vshrl.u32 %v3039, 7
      %v3041 = vsub.s32 %v3038, %v3040
      %v3042 = vrot.slane %v3028, %v3041
      %v3043 = vcombine.low %v2978, %v2994
      %v3044 = vcombine.high %v2978, %v2994
      %v3046 = vunpack.c.l.s4 1934713408
      %v3047 = vunpack.c.0.s8 %v3046
      %v3048 = vlaneseq
      %v3049 = vshrl.u32 %v3048, 7
      %v3050 = vsub.s32 %v3047, %v3049
      %v3051 = vrot.slane %v3043, %v3050
      %v3053 = vunpack.c.l.s4 1934713408
      %v3054 = vunpack.c.0.s8 %v3053
      %v3055 = vlaneseq
      %v3056 = vshrl.u32 %v3055, 7
      %v3057 = vsub.s32 %v3054, %v3056
      %v3058 = vrot.slane %v3044, %v3057
      %v3059 = vcombine.low %v3003, %v3035
      %v3060 = vcombine.high %v3003, %v3035
      %v3061 = vcombine.low %v3010, %v3042
      %v3062 = vcombine.high %v3010, %v3042
      %v3063 = vcombine.low %v3019, %v3051
      %v3064 = vcombine.high %v3019, %v3051
      %v3065 = vcombine.low %v3026, %v3058
      %v3066 = vcombine.high %v3026, %v3058
      %v3067 = vcombine.low %v2908, %v2914
      %v3068 = vcombine.high %v2908, %v2914
      %v3070 = vunpack.c.l.s4 1983009808
      %v3071 = vunpack.c.0.s8 %v3070
      %v3072 = vlaneseq
      %v3073 = vshrl.u32 %v3072, 7
      %v3074 = vsub.s32 %v3071, %v3073
      %v3075 = vrot.slane %v3067, %v3074
      %v3077 = vunpack.c.l.s4 1983009808
      %v3078 = vunpack.c.0.s8 %v3077
      %v3079 = vlaneseq
      %v3080 = vshrl.u32 %v3079, 7
      %v3081 = vsub.s32 %v3078, %v3080
      %v3082 = vrot.slane %v3068, %v3081
      %v3083 = vcombine.low %v2911, %v2917
      %v3084 = vcombine.high %v2911, %v2917
      %v3086 = vunpack.c.l.s4 1983009808
      %v3087 = vunpack.c.0.s8 %v3086
      %v3088 = vlaneseq
      %v3089 = vshrl.u32 %v3088, 7
      %v3090 = vsub.s32 %v3087, %v3089
      %v3091 = vrot.slane %v3083, %v3090
      %v3093 = vunpack.c.l.s4 1983009808
      %v3094 = vunpack.c.0.s8 %v3093
      %v3095 = vlaneseq
      %v3096 = vshrl.u32 %v3095, 7
      %v3097 = vsub.s32 %v3094, %v3096
      %v3098 = vrot.slane %v3084, %v3097
      %v3099 = vcombine.low %v2920, %v2926
      %v3100 = vcombine.high %v2920, %v2926
      %v3102 = vunpack.c.l.s4 1983009808
      %v3103 = vunpack.c.0.s8 %v3102
      %v3104 = vlaneseq
      %v3105 = vshrl.u32 %v3104, 7
      %v3106 = vsub.s32 %v3103, %v3105
      %v3107 = vrot.slane %v3099, %v3106
      %v3109 = vunpack.c.l.s4 1983009808
      %v3110 = vunpack.c.0.s8 %v3109
      %v3111 = vlaneseq
      %v3112 = vshrl.u32 %v3111, 7
      %v3113 = vsub.s32 %v3110, %v3112
      %v3114 = vrot.slane %v3100, %v3113
      %v3115 = vcombine.low %v2923, %v2929
      %v3116 = vcombine.high %v2923, %v2929
      %v3118 = vunpack.c.l.s4 1983009808
      %v3119 = vunpack.c.0.s8 %v3118
      %v3120 = vlaneseq
      %v3121 = vshrl.u32 %v3120, 7
      %v3122 = vsub.s32 %v3119, %v3121
      %v3123 = vrot.slane %v3115, %v3122
      %v3125 = vunpack.c.l.s4 1983009808
      %v3126 = vunpack.c.0.s8 %v3125
      %v3127 = vlaneseq
      %v3128 = vshrl.u32 %v3127, 7
      %v3129 = vsub.s32 %v3126, %v3128
      %v3130 = vrot.slane %v3116, %v3129
      %v3131 = vcombine.low %v3075, %v3091
      %v3132 = vcombine.high %v3075, %v3091
      %v3134 = vunpack.c.l.s4 1934713408
      %v3135 = vunpack.c.0.s8 %v3134
      %v3136 = vlaneseq
      %v3137 = vshrl.u32 %v3136, 7
      %v3138 = vsub.s32 %v3135, %v3137
      %v3139 = vrot.slane %v3131, %v3138
      %v3141 = vunpack.c.l.s4 1934713408
      %v3142 = vunpack.c.0.s8 %v3141
      %v3143 = vlaneseq
      %v3144 = vshrl.u32 %v3143, 7
      %v3145 = vsub.s32 %v3142, %v3144
      %v3146 = vrot.slane %v3132, %v3145
      %v3147 = vcombine.low %v3082, %v3098
      %v3148 = vcombine.high %v3082, %v3098
      %v3150 = vunpack.c.l.s4 1934713408
      %v3151 = vunpack.c.0.s8 %v3150
      %v3152 = vlaneseq
      %v3153 = vshrl.u32 %v3152, 7
      %v3154 = vsub.s32 %v3151, %v3153
      %v3155 = vrot.slane %v3147, %v3154
      %v3157 = vunpack.c.l.s4 1934713408
      %v3158 = vunpack.c.0.s8 %v3157
      %v3159 = vlaneseq
      %v3160 = vshrl.u32 %v3159, 7
      %v3161 = vsub.s32 %v3158, %v3160
      %v3162 = vrot.slane %v3148, %v3161
      %v3163 = vcombine.low %v3107, %v3123
      %v3164 = vcombine.high %v3107, %v3123
      %v3166 = vunpack.c.l.s4 1934713408
      %v3167 = vunpack.c.0.s8 %v3166
      %v3168 = vlaneseq
      %v3169 = vshrl.u32 %v3168, 7
      %v3170 = vsub.s32 %v3167, %v3169
      %v3171 = vrot.slane %v3163, %v3170
      %v3173 = vunpack.c.l.s4 1934713408
      %v3174 = vunpack.c.0.s8 %v3173
      %v3175 = vlaneseq
      %v3176 = vshrl.u32 %v3175, 7
      %v3177 = vsub.s32 %v3174, %v3176
      %v3178 = vrot.slane %v3164, %v3177
      %v3179 = vcombine.low %v3114, %v3130
      %v3180 = vcombine.high %v3114, %v3130
      %v3182 = vunpack.c.l.s4 1934713408
      %v3183 = vunpack.c.0.s8 %v3182
      %v3184 = vlaneseq
      %v3185 = vshrl.u32 %v3184, 7
      %v3186 = vsub.s32 %v3183, %v3185
      %v3187 = vrot.slane %v3179, %v3186
      %v3189 = vunpack.c.l.s4 1934713408
      %v3190 = vunpack.c.0.s8 %v3189
      %v3191 = vlaneseq
      %v3192 = vshrl.u32 %v3191, 7
      %v3193 = vsub.s32 %v3190, %v3192
      %v3194 = vrot.slane %v3180, %v3193
      %v3195 = vcombine.low %v3139, %v3171
      %v3196 = vcombine.high %v3139, %v3171
      %v3197 = vcombine.low %v3146, %v3178
      %v3198 = vcombine.high %v3146, %v3178
      %v3199 = vcombine.low %v3155, %v3187
      %v3200 = vcombine.high %v3155, %v3187
      %v3201 = vcombine.low %v3162, %v3194
      %v3202 = vcombine.high %v3162, %v3194
      %3204 = vrot.lane.b32.xlu0 %v3060, 16
      %v3205 = vpop.permute.xlu0 %3204
      %3208 = vrot.lane.b32.xlu0 %v3061, 32
      %v3209 = vpop.permute.xlu0 %3208
      %3212 = vrot.lane.b32.xlu0 %v3062, 48
      %v3213 = vpop.permute.xlu0 %3212
      %3216 = vrot.lane.b32.xlu0 %v3063, 64
      %v3217 = vpop.permute.xlu0 %3216
      %3220 = vrot.lane.b32.xlu0 %v3064, 80
      %v3221 = vpop.permute.xlu0 %3220
      %3224 = vrot.lane.b32.xlu0 %v3065, 96
      %v3225 = vpop.permute.xlu0 %3224
      %3228 = vrot.lane.b32.xlu0 %v3066, 112
      %v3229 = vpop.permute.xlu0 %3228
      %3232 = vrot.lane.b32.xlu0 %v3196, 16
      %v3233 = vpop.permute.xlu0 %3232
      %3236 = vrot.lane.b32.xlu0 %v3197, 32
      %v3237 = vpop.permute.xlu0 %3236
      %3240 = vrot.lane.b32.xlu0 %v3198, 48
      %v3241 = vpop.permute.xlu0 %3240
      %3244 = vrot.lane.b32.xlu0 %v3199, 64
      %v3245 = vpop.permute.xlu0 %3244
      %3248 = vrot.lane.b32.xlu0 %v3200, 80
      %v3249 = vpop.permute.xlu0 %3248
      %3252 = vrot.lane.b32.xlu0 %v3201, 96
      %v3253 = vpop.permute.xlu0 %3252
      %3256 = vrot.lane.b32.xlu0 %v3202, 112
      %v3257 = vpop.permute.xlu0 %3256
      %v3259 = vsel %vm546, %v3059, %v3205
      %v3260 = vsel %vm548, %v3259, %v3209
      %v3261 = vsel %vm550, %v3260, %v3213
      %v3262 = vsel %vm552, %v3261, %v3217
      %v3263 = vsel %vm554, %v3262, %v3221
      %v3264 = vsel %vm556, %v3263, %v3225
      %v3265 = vsel %vm558, %v3264, %v3229
      %v3266 = vsel %vm546, %v3195, %v3233
      %v3267 = vsel %vm548, %v3266, %v3237
      %v3268 = vsel %vm550, %v3267, %v3241
      %v3269 = vsel %vm552, %v3268, %v3245
      %v3270 = vsel %vm554, %v3269, %v3249
      %v3271 = vsel %vm556, %v3270, %v3253
      %v3272 = vsel %vm558, %v3271, %v3257
      %3289 = vrot.lane.b32.xlu0 %v2907, 127
      %v3290 = vpop.permute.xlu0 %3289
      %3291 = vrot.lane.b32.xlu0 %v2908, 127
      %v3292 = vpop.permute.xlu0 %3291
      %3293 = vrot.lane.b32.xlu0 %v2910, 127
      %v3294 = vpop.permute.xlu0 %3293
      %3295 = vrot.lane.b32.xlu0 %v2911, 127
      %v3296 = vpop.permute.xlu0 %3295
      %3297 = vrot.lane.b32.xlu0 %v2913, 127
      %v3298 = vpop.permute.xlu0 %3297
      %3299 = vrot.lane.b32.xlu0 %v2914, 127
      %v3300 = vpop.permute.xlu0 %3299
      %3301 = vrot.lane.b32.xlu0 %v2916, 127
      %v3302 = vpop.permute.xlu0 %3301
      %3303 = vrot.lane.b32.xlu0 %v2917, 127
      %v3304 = vpop.permute.xlu0 %3303
      %3305 = vrot.lane.b32.xlu0 %v2919, 127
      %v3306 = vpop.permute.xlu0 %3305
      %3307 = vrot.lane.b32.xlu0 %v2920, 127
      %v3308 = vpop.permute.xlu0 %3307
      %3309 = vrot.lane.b32.xlu0 %v2922, 127
      %v3310 = vpop.permute.xlu0 %3309
      %3311 = vrot.lane.b32.xlu0 %v2923, 127
      %v3312 = vpop.permute.xlu0 %3311
      %3313 = vrot.lane.b32.xlu0 %v2925, 127
      %v3314 = vpop.permute.xlu0 %3313
      %3315 = vrot.lane.b32.xlu0 %v2926, 127
      %v3316 = vpop.permute.xlu0 %3315
      %3317 = vrot.lane.b32.xlu0 %v2928, 127
      %v3318 = vpop.permute.xlu0 %3317
      %3319 = vrot.lane.b32.xlu0 %v2929, 127
      %v3320 = vpop.permute.xlu0 %3319
      %v3337 = vcombine.low %v3290, %v3298
      %v3338 = vcombine.high %v3290, %v3298
      %v3340 = vunpack.c.l.s4 1983009808
      %v3341 = vunpack.c.0.s8 %v3340
      %v3342 = vlaneseq
      %v3343 = vshrl.u32 %v3342, 7
      %v3344 = vsub.s32 %v3341, %v3343
      %v3345 = vrot.slane %v3337, %v3344
      %v3347 = vunpack.c.l.s4 1983009808
      %v3348 = vunpack.c.0.s8 %v3347
      %v3349 = vlaneseq
      %v3350 = vshrl.u32 %v3349, 7
      %v3351 = vsub.s32 %v3348, %v3350
      %v3352 = vrot.slane %v3338, %v3351
      %v3353 = vcombine.low %v3294, %v3302
      %v3354 = vcombine.high %v3294, %v3302
      %v3356 = vunpack.c.l.s4 1983009808
      %v3357 = vunpack.c.0.s8 %v3356
      %v3358 = vlaneseq
      %v3359 = vshrl.u32 %v3358, 7
      %v3360 = vsub.s32 %v3357, %v3359
      %v3361 = vrot.slane %v3353, %v3360
      %v3363 = vunpack.c.l.s4 1983009808
      %v3364 = vunpack.c.0.s8 %v3363
      %v3365 = vlaneseq
      %v3366 = vshrl.u32 %v3365, 7
      %v3367 = vsub.s32 %v3364, %v3366
      %v3368 = vrot.slane %v3354, %v3367
      %v3369 = vcombine.low %v3306, %v3314
      %v3370 = vcombine.high %v3306, %v3314
      %v3372 = vunpack.c.l.s4 1983009808
      %v3373 = vunpack.c.0.s8 %v3372
      %v3374 = vlaneseq
      %v3375 = vshrl.u32 %v3374, 7
      %v3376 = vsub.s32 %v3373, %v3375
      %v3377 = vrot.slane %v3369, %v3376
      %v3379 = vunpack.c.l.s4 1983009808
      %v3380 = vunpack.c.0.s8 %v3379
      %v3381 = vlaneseq
      %v3382 = vshrl.u32 %v3381, 7
      %v3383 = vsub.s32 %v3380, %v3382
      %v3384 = vrot.slane %v3370, %v3383
      %v3385 = vcombine.low %v3310, %v3318
      %v3386 = vcombine.high %v3310, %v3318
      %v3388 = vunpack.c.l.s4 1983009808
      %v3389 = vunpack.c.0.s8 %v3388
      %v3390 = vlaneseq
      %v3391 = vshrl.u32 %v3390, 7
      %v3392 = vsub.s32 %v3389, %v3391
      %v3393 = vrot.slane %v3385, %v3392
      %v3395 = vunpack.c.l.s4 1983009808
      %v3396 = vunpack.c.0.s8 %v3395
      %v3397 = vlaneseq
      %v3398 = vshrl.u32 %v3397, 7
      %v3399 = vsub.s32 %v3396, %v3398
      %v3400 = vrot.slane %v3386, %v3399
      %v3401 = vcombine.low %v3345, %v3361
      %v3402 = vcombine.high %v3345, %v3361
      %v3404 = vunpack.c.l.s4 1934713408
      %v3405 = vunpack.c.0.s8 %v3404
      %v3406 = vlaneseq
      %v3407 = vshrl.u32 %v3406, 7
      %v3408 = vsub.s32 %v3405, %v3407
      %v3409 = vrot.slane %v3401, %v3408
      %v3411 = vunpack.c.l.s4 1934713408
      %v3412 = vunpack.c.0.s8 %v3411
      %v3413 = vlaneseq
      %v3414 = vshrl.u32 %v3413, 7
      %v3415 = vsub.s32 %v3412, %v3414
      %v3416 = vrot.slane %v3402, %v3415
      %v3417 = vcombine.low %v3352, %v3368
      %v3418 = vcombine.high %v3352, %v3368
      %v3420 = vunpack.c.l.s4 1934713408
      %v3421 = vunpack.c.0.s8 %v3420
      %v3422 = vlaneseq
      %v3423 = vshrl.u32 %v3422, 7
      %v3424 = vsub.s32 %v3421, %v3423
      %v3425 = vrot.slane %v3417, %v3424
      %v3427 = vunpack.c.l.s4 1934713408
      %v3428 = vunpack.c.0.s8 %v3427
      %v3429 = vlaneseq
      %v3430 = vshrl.u32 %v3429, 7
      %v3431 = vsub.s32 %v3428, %v3430
      %v3432 = vrot.slane %v3418, %v3431
      %v3433 = vcombine.low %v3377, %v3393
      %v3434 = vcombine.high %v3377, %v3393
      %v3436 = vunpack.c.l.s4 1934713408
      %v3437 = vunpack.c.0.s8 %v3436
      %v3438 = vlaneseq
      %v3439 = vshrl.u32 %v3438, 7
      %v3440 = vsub.s32 %v3437, %v3439
      %v3441 = vrot.slane %v3433, %v3440
      %v3443 = vunpack.c.l.s4 1934713408
      %v3444 = vunpack.c.0.s8 %v3443
      %v3445 = vlaneseq
      %v3446 = vshrl.u32 %v3445, 7
      %v3447 = vsub.s32 %v3444, %v3446
      %v3448 = vrot.slane %v3434, %v3447
      %v3449 = vcombine.low %v3384, %v3400
      %v3450 = vcombine.high %v3384, %v3400
      %v3452 = vunpack.c.l.s4 1934713408
      %v3453 = vunpack.c.0.s8 %v3452
      %v3454 = vlaneseq
      %v3455 = vshrl.u32 %v3454, 7
      %v3456 = vsub.s32 %v3453, %v3455
      %v3457 = vrot.slane %v3449, %v3456
      %v3459 = vunpack.c.l.s4 1934713408
      %v3460 = vunpack.c.0.s8 %v3459
      %v3461 = vlaneseq
      %v3462 = vshrl.u32 %v3461, 7
      %v3463 = vsub.s32 %v3460, %v3462
      %v3464 = vrot.slane %v3450, %v3463
      %v3465 = vcombine.low %v3409, %v3441
      %v3466 = vcombine.high %v3409, %v3441
      %v3467 = vcombine.low %v3416, %v3448
      %v3468 = vcombine.high %v3416, %v3448
      %v3469 = vcombine.low %v3425, %v3457
      %v3470 = vcombine.high %v3425, %v3457
      %v3471 = vcombine.low %v3432, %v3464
      %v3472 = vcombine.high %v3432, %v3464
      %v3473 = vcombine.low %v3292, %v3300
      %v3474 = vcombine.high %v3292, %v3300
      %v3476 = vunpack.c.l.s4 1983009808
      %v3477 = vunpack.c.0.s8 %v3476
      %v3478 = vlaneseq
      %v3479 = vshrl.u32 %v3478, 7
      %v3480 = vsub.s32 %v3477, %v3479
      %v3481 = vrot.slane %v3473, %v3480
      %v3483 = vunpack.c.l.s4 1983009808
      %v3484 = vunpack.c.0.s8 %v3483
      %v3485 = vlaneseq
      %v3486 = vshrl.u32 %v3485, 7
      %v3487 = vsub.s32 %v3484, %v3486
      %v3488 = vrot.slane %v3474, %v3487
      %v3489 = vcombine.low %v3296, %v3304
      %v3490 = vcombine.high %v3296, %v3304
      %v3492 = vunpack.c.l.s4 1983009808
      %v3493 = vunpack.c.0.s8 %v3492
      %v3494 = vlaneseq
      %v3495 = vshrl.u32 %v3494, 7
      %v3496 = vsub.s32 %v3493, %v3495
      %v3497 = vrot.slane %v3489, %v3496
      %v3499 = vunpack.c.l.s4 1983009808
      %v3500 = vunpack.c.0.s8 %v3499
      %v3501 = vlaneseq
      %v3502 = vshrl.u32 %v3501, 7
      %v3503 = vsub.s32 %v3500, %v3502
      %v3504 = vrot.slane %v3490, %v3503
      %v3505 = vcombine.low %v3308, %v3316
      %v3506 = vcombine.high %v3308, %v3316
      %v3508 = vunpack.c.l.s4 1983009808
      %v3509 = vunpack.c.0.s8 %v3508
      %v3510 = vlaneseq
      %v3511 = vshrl.u32 %v3510, 7
      %v3512 = vsub.s32 %v3509, %v3511
      %v3513 = vrot.slane %v3505, %v3512
      %v3515 = vunpack.c.l.s4 1983009808
      %v3516 = vunpack.c.0.s8 %v3515
      %v3517 = vlaneseq
      %v3518 = vshrl.u32 %v3517, 7
      %v3519 = vsub.s32 %v3516, %v3518
      %v3520 = vrot.slane %v3506, %v3519
      %v3521 = vcombine.low %v3312, %v3320
      %v3522 = vcombine.high %v3312, %v3320
      %v3524 = vunpack.c.l.s4 1983009808
      %v3525 = vunpack.c.0.s8 %v3524
      %v3526 = vlaneseq
      %v3527 = vshrl.u32 %v3526, 7
      %v3528 = vsub.s32 %v3525, %v3527
      %v3529 = vrot.slane %v3521, %v3528
      %v3531 = vunpack.c.l.s4 1983009808
      %v3532 = vunpack.c.0.s8 %v3531
      %v3533 = vlaneseq
      %v3534 = vshrl.u32 %v3533, 7
      %v3535 = vsub.s32 %v3532, %v3534
      %v3536 = vrot.slane %v3522, %v3535
      %v3537 = vcombine.low %v3481, %v3497
      %v3538 = vcombine.high %v3481, %v3497
      %v3540 = vunpack.c.l.s4 1934713408
      %v3541 = vunpack.c.0.s8 %v3540
      %v3542 = vlaneseq
      %v3543 = vshrl.u32 %v3542, 7
      %v3544 = vsub.s32 %v3541, %v3543
      %v3545 = vrot.slane %v3537, %v3544
      %v3547 = vunpack.c.l.s4 1934713408
      %v3548 = vunpack.c.0.s8 %v3547
      %v3549 = vlaneseq
      %v3550 = vshrl.u32 %v3549, 7
      %v3551 = vsub.s32 %v3548, %v3550
      %v3552 = vrot.slane %v3538, %v3551
      %v3553 = vcombine.low %v3488, %v3504
      %v3554 = vcombine.high %v3488, %v3504
      %v3556 = vunpack.c.l.s4 1934713408
      %v3557 = vunpack.c.0.s8 %v3556
      %v3558 = vlaneseq
      %v3559 = vshrl.u32 %v3558, 7
      %v3560 = vsub.s32 %v3557, %v3559
      %v3561 = vrot.slane %v3553, %v3560
      %v3563 = vunpack.c.l.s4 1934713408
      %v3564 = vunpack.c.0.s8 %v3563
      %v3565 = vlaneseq
      %v3566 = vshrl.u32 %v3565, 7
      %v3567 = vsub.s32 %v3564, %v3566
      %v3568 = vrot.slane %v3554, %v3567
      %v3569 = vcombine.low %v3513, %v3529
      %v3570 = vcombine.high %v3513, %v3529
      %v3572 = vunpack.c.l.s4 1934713408
      %v3573 = vunpack.c.0.s8 %v3572
      %v3574 = vlaneseq
      %v3575 = vshrl.u32 %v3574, 7
      %v3576 = vsub.s32 %v3573, %v3575
      %v3577 = vrot.slane %v3569, %v3576
      %v3579 = vunpack.c.l.s4 1934713408
      %v3580 = vunpack.c.0.s8 %v3579
      %v3581 = vlaneseq
      %v3582 = vshrl.u32 %v3581, 7
      %v3583 = vsub.s32 %v3580, %v3582
      %v3584 = vrot.slane %v3570, %v3583
      %v3585 = vcombine.low %v3520, %v3536
      %v3586 = vcombine.high %v3520, %v3536
      %v3588 = vunpack.c.l.s4 1934713408
      %v3589 = vunpack.c.0.s8 %v3588
      %v3590 = vlaneseq
      %v3591 = vshrl.u32 %v3590, 7
      %v3592 = vsub.s32 %v3589, %v3591
      %v3593 = vrot.slane %v3585, %v3592
      %v3595 = vunpack.c.l.s4 1934713408
      %v3596 = vunpack.c.0.s8 %v3595
      %v3597 = vlaneseq
      %v3598 = vshrl.u32 %v3597, 7
      %v3599 = vsub.s32 %v3596, %v3598
      %v3600 = vrot.slane %v3586, %v3599
      %v3601 = vcombine.low %v3545, %v3577
      %v3602 = vcombine.high %v3545, %v3577
      %v3603 = vcombine.low %v3552, %v3584
      %v3604 = vcombine.high %v3552, %v3584
      %v3605 = vcombine.low %v3561, %v3593
      %v3606 = vcombine.high %v3561, %v3593
      %v3607 = vcombine.low %v3568, %v3600
      %v3608 = vcombine.high %v3568, %v3600
      %3610 = vrot.lane.b32.xlu0 %v3466, 16
      %v3611 = vpop.permute.xlu0 %3610
      %3614 = vrot.lane.b32.xlu0 %v3467, 32
      %v3615 = vpop.permute.xlu0 %3614
      %3618 = vrot.lane.b32.xlu0 %v3468, 48
      %v3619 = vpop.permute.xlu0 %3618
      %3622 = vrot.lane.b32.xlu0 %v3469, 64
      %v3623 = vpop.permute.xlu0 %3622
      %3626 = vrot.lane.b32.xlu0 %v3470, 80
      %v3627 = vpop.permute.xlu0 %3626
      %3630 = vrot.lane.b32.xlu0 %v3471, 96
      %v3631 = vpop.permute.xlu0 %3630
      %3634 = vrot.lane.b32.xlu0 %v3472, 112
      %v3635 = vpop.permute.xlu0 %3634
      %3638 = vrot.lane.b32.xlu0 %v3602, 16
      %v3639 = vpop.permute.xlu0 %3638
      %3642 = vrot.lane.b32.xlu0 %v3603, 32
      %v3643 = vpop.permute.xlu0 %3642
      %3646 = vrot.lane.b32.xlu0 %v3604, 48
      %v3647 = vpop.permute.xlu0 %3646
      %3650 = vrot.lane.b32.xlu0 %v3605, 64
      %v3651 = vpop.permute.xlu0 %3650
      %3654 = vrot.lane.b32.xlu0 %v3606, 80
      %v3655 = vpop.permute.xlu0 %3654
      %3658 = vrot.lane.b32.xlu0 %v3607, 96
      %v3659 = vpop.permute.xlu0 %3658
      %3662 = vrot.lane.b32.xlu0 %v3608, 112
      %v3663 = vpop.permute.xlu0 %3662
      %v3665 = vsel %vm546, %v3465, %v3611
      %v3666 = vsel %vm548, %v3665, %v3615
      %v3667 = vsel %vm550, %v3666, %v3619
      %v3668 = vsel %vm552, %v3667, %v3623
      %v3669 = vsel %vm554, %v3668, %v3627
      %v3670 = vsel %vm556, %v3669, %v3631
      %v3671 = vsel %vm558, %v3670, %v3635
      %v3672 = vsel %vm546, %v3601, %v3639
      %v3673 = vsel %vm548, %v3672, %v3643
      %v3674 = vsel %vm550, %v3673, %v3647
      %v3675 = vsel %vm552, %v3674, %v3651
      %v3676 = vsel %vm554, %v3675, %v3655
      %v3677 = vsel %vm556, %v3676, %v3659
      %v3678 = vsel %vm558, %v3677, %v3663
      %3679 = vrot.lane.b32.xlu0 %v2907, 126
      %v3680 = vpop.permute.xlu0 %3679
      %3681 = vrot.lane.b32.xlu0 %v2908, 126
      %v3682 = vpop.permute.xlu0 %3681
      %3683 = vrot.lane.b32.xlu0 %v2910, 126
      %v3684 = vpop.permute.xlu0 %3683
      %3685 = vrot.lane.b32.xlu0 %v2911, 126
      %v3686 = vpop.permute.xlu0 %3685
      %3687 = vrot.lane.b32.xlu0 %v2913, 126
      %v3688 = vpop.permute.xlu0 %3687
      %3689 = vrot.lane.b32.xlu0 %v2914, 126
      %v3690 = vpop.permute.xlu0 %3689
      %3691 = vrot.lane.b32.xlu0 %v2916, 126
      %v3692 = vpop.permute.xlu0 %3691
      %3693 = vrot.lane.b32.xlu0 %v2917, 126
      %v3694 = vpop.permute.xlu0 %3693
      %3695 = vrot.lane.b32.xlu0 %v2919, 126
      %v3696 = vpop.permute.xlu0 %3695
      %3697 = vrot.lane.b32.xlu0 %v2920, 126
      %v3698 = vpop.permute.xlu0 %3697
      %3699 = vrot.lane.b32.xlu0 %v2922, 126
      %v3700 = vpop.permute.xlu0 %3699
      %3701 = vrot.lane.b32.xlu0 %v2923, 126
      %v3702 = vpop.permute.xlu0 %3701
      %3703 = vrot.lane.b32.xlu0 %v2925, 126
      %v3704 = vpop.permute.xlu0 %3703
      %3705 = vrot.lane.b32.xlu0 %v2926, 126
      %v3706 = vpop.permute.xlu0 %3705
      %3707 = vrot.lane.b32.xlu0 %v2928, 126
      %v3708 = vpop.permute.xlu0 %3707
      %3709 = vrot.lane.b32.xlu0 %v2929, 126
      %v3710 = vpop.permute.xlu0 %3709
      %v3727 = vcombine.low %v3680, %v3688
      %v3728 = vcombine.high %v3680, %v3688
      %v3730 = vunpack.c.l.s4 1983009808
      %v3731 = vunpack.c.0.s8 %v3730
      %v3732 = vlaneseq
      %v3733 = vshrl.u32 %v3732, 7
      %v3734 = vsub.s32 %v3731, %v3733
      %v3735 = vrot.slane %v3727, %v3734
      %v3737 = vunpack.c.l.s4 1983009808
      %v3738 = vunpack.c.0.s8 %v3737
      %v3739 = vlaneseq
      %v3740 = vshrl.u32 %v3739, 7
      %v3741 = vsub.s32 %v3738, %v3740
      %v3742 = vrot.slane %v3728, %v3741
      %v3743 = vcombine.low %v3684, %v3692
      %v3744 = vcombine.high %v3684, %v3692
      %v3746 = vunpack.c.l.s4 1983009808
      %v3747 = vunpack.c.0.s8 %v3746
      %v3748 = vlaneseq
      %v3749 = vshrl.u32 %v3748, 7
      %v3750 = vsub.s32 %v3747, %v3749
      %v3751 = vrot.slane %v3743, %v3750
      %v3753 = vunpack.c.l.s4 1983009808
      %v3754 = vunpack.c.0.s8 %v3753
      %v3755 = vlaneseq
      %v3756 = vshrl.u32 %v3755, 7
      %v3757 = vsub.s32 %v3754, %v3756
      %v3758 = vrot.slane %v3744, %v3757
      %v3759 = vcombine.low %v3696, %v3704
      %v3760 = vcombine.high %v3696, %v3704
      %v3762 = vunpack.c.l.s4 1983009808
      %v3763 = vunpack.c.0.s8 %v3762
      %v3764 = vlaneseq
      %v3765 = vshrl.u32 %v3764, 7
      %v3766 = vsub.s32 %v3763, %v3765
      %v3767 = vrot.slane %v3759, %v3766
      %v3769 = vunpack.c.l.s4 1983009808
      %v3770 = vunpack.c.0.s8 %v3769
      %v3771 = vlaneseq
      %v3772 = vshrl.u32 %v3771, 7
      %v3773 = vsub.s32 %v3770, %v3772
      %v3774 = vrot.slane %v3760, %v3773
      %v3775 = vcombine.low %v3700, %v3708
      %v3776 = vcombine.high %v3700, %v3708
      %v3778 = vunpack.c.l.s4 1983009808
      %v3779 = vunpack.c.0.s8 %v3778
      %v3780 = vlaneseq
      %v3781 = vshrl.u32 %v3780, 7
      %v3782 = vsub.s32 %v3779, %v3781
      %v3783 = vrot.slane %v3775, %v3782
      %v3785 = vunpack.c.l.s4 1983009808
      %v3786 = vunpack.c.0.s8 %v3785
      %v3787 = vlaneseq
      %v3788 = vshrl.u32 %v3787, 7
      %v3789 = vsub.s32 %v3786, %v3788
      %v3790 = vrot.slane %v3776, %v3789
      %v3791 = vcombine.low %v3735, %v3751
      %v3792 = vcombine.high %v3735, %v3751
      %v3794 = vunpack.c.l.s4 1934713408
      %v3795 = vunpack.c.0.s8 %v3794
      %v3796 = vlaneseq
      %v3797 = vshrl.u32 %v3796, 7
      %v3798 = vsub.s32 %v3795, %v3797
      %v3799 = vrot.slane %v3791, %v3798
      %v3801 = vunpack.c.l.s4 1934713408
      %v3802 = vunpack.c.0.s8 %v3801
      %v3803 = vlaneseq
      %v3804 = vshrl.u32 %v3803, 7
      %v3805 = vsub.s32 %v3802, %v3804
      %v3806 = vrot.slane %v3792, %v3805
      %v3807 = vcombine.low %v3742, %v3758
      %v3808 = vcombine.high %v3742, %v3758
      %v3810 = vunpack.c.l.s4 1934713408
      %v3811 = vunpack.c.0.s8 %v3810
      %v3812 = vlaneseq
      %v3813 = vshrl.u32 %v3812, 7
      %v3814 = vsub.s32 %v3811, %v3813
      %v3815 = vrot.slane %v3807, %v3814
      %v3817 = vunpack.c.l.s4 1934713408
      %v3818 = vunpack.c.0.s8 %v3817
      %v3819 = vlaneseq
      %v3820 = vshrl.u32 %v3819, 7
      %v3821 = vsub.s32 %v3818, %v3820
      %v3822 = vrot.slane %v3808, %v3821
      %v3823 = vcombine.low %v3767, %v3783
      %v3824 = vcombine.high %v3767, %v3783
      %v3826 = vunpack.c.l.s4 1934713408
      %v3827 = vunpack.c.0.s8 %v3826
      %v3828 = vlaneseq
      %v3829 = vshrl.u32 %v3828, 7
      %v3830 = vsub.s32 %v3827, %v3829
      %v3831 = vrot.slane %v3823, %v3830
      %v3833 = vunpack.c.l.s4 1934713408
      %v3834 = vunpack.c.0.s8 %v3833
      %v3835 = vlaneseq
      %v3836 = vshrl.u32 %v3835, 7
      %v3837 = vsub.s32 %v3834, %v3836
      %v3838 = vrot.slane %v3824, %v3837
      %v3839 = vcombine.low %v3774, %v3790
      %v3840 = vcombine.high %v3774, %v3790
      %v3842 = vunpack.c.l.s4 1934713408
      %v3843 = vunpack.c.0.s8 %v3842
      %v3844 = vlaneseq
      %v3845 = vshrl.u32 %v3844, 7
      %v3846 = vsub.s32 %v3843, %v3845
      %v3847 = vrot.slane %v3839, %v3846
      %v3849 = vunpack.c.l.s4 1934713408
      %v3850 = vunpack.c.0.s8 %v3849
      %v3851 = vlaneseq
      %v3852 = vshrl.u32 %v3851, 7
      %v3853 = vsub.s32 %v3850, %v3852
      %v3854 = vrot.slane %v3840, %v3853
      %v3855 = vcombine.low %v3799, %v3831
      %v3856 = vcombine.high %v3799, %v3831
      %v3857 = vcombine.low %v3806, %v3838
      %v3858 = vcombine.high %v3806, %v3838
      %v3859 = vcombine.low %v3815, %v3847
      %v3860 = vcombine.high %v3815, %v3847
      %v3861 = vcombine.low %v3822, %v3854
      %v3862 = vcombine.high %v3822, %v3854
      %v3863 = vcombine.low %v3682, %v3690
      %v3864 = vcombine.high %v3682, %v3690
      %v3866 = vunpack.c.l.s4 1983009808
      %v3867 = vunpack.c.0.s8 %v3866
      %v3868 = vlaneseq
      %v3869 = vshrl.u32 %v3868, 7
      %v3870 = vsub.s32 %v3867, %v3869
      %v3871 = vrot.slane %v3863, %v3870
      %v3873 = vunpack.c.l.s4 1983009808
      %v3874 = vunpack.c.0.s8 %v3873
      %v3875 = vlaneseq
      %v3876 = vshrl.u32 %v3875, 7
      %v3877 = vsub.s32 %v3874, %v3876
      %v3878 = vrot.slane %v3864, %v3877
      %v3879 = vcombine.low %v3686, %v3694
      %v3880 = vcombine.high %v3686, %v3694
      %v3882 = vunpack.c.l.s4 1983009808
      %v3883 = vunpack.c.0.s8 %v3882
      %v3884 = vlaneseq
      %v3885 = vshrl.u32 %v3884, 7
      %v3886 = vsub.s32 %v3883, %v3885
      %v3887 = vrot.slane %v3879, %v3886
      %v3889 = vunpack.c.l.s4 1983009808
      %v3890 = vunpack.c.0.s8 %v3889
      %v3891 = vlaneseq
      %v3892 = vshrl.u32 %v3891, 7
      %v3893 = vsub.s32 %v3890, %v3892
      %v3894 = vrot.slane %v3880, %v3893
      %v3895 = vcombine.low %v3698, %v3706
      %v3896 = vcombine.high %v3698, %v3706
      %v3898 = vunpack.c.l.s4 1983009808
      %v3899 = vunpack.c.0.s8 %v3898
      %v3900 = vlaneseq
      %v3901 = vshrl.u32 %v3900, 7
      %v3902 = vsub.s32 %v3899, %v3901
      %v3903 = vrot.slane %v3895, %v3902
      %v3905 = vunpack.c.l.s4 1983009808
      %v3906 = vunpack.c.0.s8 %v3905
      %v3907 = vlaneseq
      %v3908 = vshrl.u32 %v3907, 7
      %v3909 = vsub.s32 %v3906, %v3908
      %v3910 = vrot.slane %v3896, %v3909
      %v3911 = vcombine.low %v3702, %v3710
      %v3912 = vcombine.high %v3702, %v3710
      %v3914 = vunpack.c.l.s4 1983009808
      %v3915 = vunpack.c.0.s8 %v3914
      %v3916 = vlaneseq
      %v3917 = vshrl.u32 %v3916, 7
      %v3918 = vsub.s32 %v3915, %v3917
      %v3919 = vrot.slane %v3911, %v3918
      %v3921 = vunpack.c.l.s4 1983009808
      %v3922 = vunpack.c.0.s8 %v3921
      %v3923 = vlaneseq
      %v3924 = vshrl.u32 %v3923, 7
      %v3925 = vsub.s32 %v3922, %v3924
      %v3926 = vrot.slane %v3912, %v3925
      %v3927 = vcombine.low %v3871, %v3887
      %v3928 = vcombine.high %v3871, %v3887
      %v3930 = vunpack.c.l.s4 1934713408
      %v3931 = vunpack.c.0.s8 %v3930
      %v3932 = vlaneseq
      %v3933 = vshrl.u32 %v3932, 7
      %v3934 = vsub.s32 %v3931, %v3933
      %v3935 = vrot.slane %v3927, %v3934
      %v3937 = vunpack.c.l.s4 1934713408
      %v3938 = vunpack.c.0.s8 %v3937
      %v3939 = vlaneseq
      %v3940 = vshrl.u32 %v3939, 7
      %v3941 = vsub.s32 %v3938, %v3940
      %v3942 = vrot.slane %v3928, %v3941
      %v3943 = vcombine.low %v3878, %v3894
      %v3944 = vcombine.high %v3878, %v3894
      %v3946 = vunpack.c.l.s4 1934713408
      %v3947 = vunpack.c.0.s8 %v3946
      %v3948 = vlaneseq
      %v3949 = vshrl.u32 %v3948, 7
      %v3950 = vsub.s32 %v3947, %v3949
      %v3951 = vrot.slane %v3943, %v3950
      %v3953 = vunpack.c.l.s4 1934713408
      %v3954 = vunpack.c.0.s8 %v3953
      %v3955 = vlaneseq
      %v3956 = vshrl.u32 %v3955, 7
      %v3957 = vsub.s32 %v3954, %v3956
      %v3958 = vrot.slane %v3944, %v3957
      %v3959 = vcombine.low %v3903, %v3919
      %v3960 = vcombine.high %v3903, %v3919
      %v3962 = vunpack.c.l.s4 1934713408
      %v3963 = vunpack.c.0.s8 %v3962
      %v3964 = vlaneseq
      %v3965 = vshrl.u32 %v3964, 7
      %v3966 = vsub.s32 %v3963, %v3965
      %v3967 = vrot.slane %v3959, %v3966
      %v3969 = vunpack.c.l.s4 1934713408
      %v3970 = vunpack.c.0.s8 %v3969
      %v3971 = vlaneseq
      %v3972 = vshrl.u32 %v3971, 7
      %v3973 = vsub.s32 %v3970, %v3972
      %v3974 = vrot.slane %v3960, %v3973
      %v3975 = vcombine.low %v3910, %v3926
      %v3976 = vcombine.high %v3910, %v3926
      %v3978 = vunpack.c.l.s4 1934713408
      %v3979 = vunpack.c.0.s8 %v3978
      %v3980 = vlaneseq
      %v3981 = vshrl.u32 %v3980, 7
      %v3982 = vsub.s32 %v3979, %v3981
      %v3983 = vrot.slane %v3975, %v3982
      %v3985 = vunpack.c.l.s4 1934713408
      %v3986 = vunpack.c.0.s8 %v3985
      %v3987 = vlaneseq
      %v3988 = vshrl.u32 %v3987, 7
      %v3989 = vsub.s32 %v3986, %v3988
      %v3990 = vrot.slane %v3976, %v3989
      %v3991 = vcombine.low %v3935, %v3967
      %v3992 = vcombine.high %v3935, %v3967
      %v3993 = vcombine.low %v3942, %v3974
      %v3994 = vcombine.high %v3942, %v3974
      %v3995 = vcombine.low %v3951, %v3983
      %v3996 = vcombine.high %v3951, %v3983
      %v3997 = vcombine.low %v3958, %v3990
      %v3998 = vcombine.high %v3958, %v3990
      %4000 = vrot.lane.b32.xlu0 %v3856, 16
      %v4001 = vpop.permute.xlu0 %4000
      %4004 = vrot.lane.b32.xlu0 %v3857, 32
      %v4005 = vpop.permute.xlu0 %4004
      %4008 = vrot.lane.b32.xlu0 %v3858, 48
      %v4009 = vpop.permute.xlu0 %4008
      %4012 = vrot.lane.b32.xlu0 %v3859, 64
      %v4013 = vpop.permute.xlu0 %4012
      %4016 = vrot.lane.b32.xlu0 %v3860, 80
      %v4017 = vpop.permute.xlu0 %4016
      %4020 = vrot.lane.b32.xlu0 %v3861, 96
      %v4021 = vpop.permute.xlu0 %4020
      %4024 = vrot.lane.b32.xlu0 %v3862, 112
      %v4025 = vpop.permute.xlu0 %4024
      %4028 = vrot.lane.b32.xlu0 %v3992, 16
      %v4029 = vpop.permute.xlu0 %4028
      %4032 = vrot.lane.b32.xlu0 %v3993, 32
      %v4033 = vpop.permute.xlu0 %4032
      %4036 = vrot.lane.b32.xlu0 %v3994, 48
      %v4037 = vpop.permute.xlu0 %4036
      %4040 = vrot.lane.b32.xlu0 %v3995, 64
      %v4041 = vpop.permute.xlu0 %4040
      %4044 = vrot.lane.b32.xlu0 %v3996, 80
      %v4045 = vpop.permute.xlu0 %4044
      %4048 = vrot.lane.b32.xlu0 %v3997, 96
      %v4049 = vpop.permute.xlu0 %4048
      %4052 = vrot.lane.b32.xlu0 %v3998, 112
      %v4053 = vpop.permute.xlu0 %4052
      %v4055 = vsel %vm546, %v3855, %v4001
      %v4056 = vsel %vm548, %v4055, %v4005
      %v4057 = vsel %vm550, %v4056, %v4009
      %v4058 = vsel %vm552, %v4057, %v4013
      %v4059 = vsel %vm554, %v4058, %v4017
      %v4060 = vsel %vm556, %v4059, %v4021
      %v4061 = vsel %vm558, %v4060, %v4025
      %v4062 = vsel %vm546, %v3991, %v4029
      %v4063 = vsel %vm548, %v4062, %v4033
      %v4064 = vsel %vm550, %v4063, %v4037
      %v4065 = vsel %vm552, %v4064, %v4041
      %v4066 = vsel %vm554, %v4065, %v4045
      %v4067 = vsel %vm556, %v4066, %v4049
      %v4068 = vsel %vm558, %v4067, %v4053
      %v4077 = vrot.slane %v2907, 1
      %v4078 = vrot.slane %v2908, 1
      %v4079 = vsel %vm1020, %v4077, %v4078
      %v4080 = vrot.slane %v2909, 1
      %v4081 = vsel %vm1020, %v4078, %v4080
      %v4082 = vrot.slane %v2910, 1
      %v4083 = vrot.slane %v2911, 1
      %v4084 = vsel %vm1020, %v4082, %v4083
      %v4085 = vrot.slane %v2912, 1
      %v4086 = vsel %vm1020, %v4083, %v4085
      %v4087 = vrot.slane %v2913, 1
      %v4088 = vrot.slane %v2914, 1
      %v4089 = vsel %vm1020, %v4087, %v4088
      %v4090 = vrot.slane %v2915, 1
      %v4091 = vsel %vm1020, %v4088, %v4090
      %v4092 = vrot.slane %v2916, 1
      %v4093 = vrot.slane %v2917, 1
      %v4094 = vsel %vm1020, %v4092, %v4093
      %v4095 = vrot.slane %v2918, 1
      %v4096 = vsel %vm1020, %v4093, %v4095
      %v4097 = vrot.slane %v2919, 1
      %v4098 = vrot.slane %v2920, 1
      %v4099 = vsel %vm1020, %v4097, %v4098
      %v4100 = vrot.slane %v2921, 1
      %v4101 = vsel %vm1020, %v4098, %v4100
      %v4102 = vrot.slane %v2922, 1
      %v4103 = vrot.slane %v2923, 1
      %v4104 = vsel %vm1020, %v4102, %v4103
      %v4105 = vrot.slane %v2924, 1
      %v4106 = vsel %vm1020, %v4103, %v4105
      %v4107 = vrot.slane %v2925, 1
      %v4108 = vrot.slane %v2926, 1
      %v4109 = vsel %vm1020, %v4107, %v4108
      %v4110 = vrot.slane %v2927, 1
      %v4111 = vsel %vm1020, %v4108, %v4110
      %v4112 = vrot.slane %v2928, 1
      %v4113 = vrot.slane %v2929, 1
      %v4114 = vsel %vm1020, %v4112, %v4113
      %v4115 = vrot.slane %v2930, 1
      %v4116 = vsel %vm1020, %v4113, %v4115
      %v4133 = vcombine.low %v4079, %v4089
      %v4134 = vcombine.high %v4079, %v4089
      %v4136 = vunpack.c.l.s4 1983009808
      %v4137 = vunpack.c.0.s8 %v4136
      %v4138 = vlaneseq
      %v4139 = vshrl.u32 %v4138, 7
      %v4140 = vsub.s32 %v4137, %v4139
      %v4141 = vrot.slane %v4133, %v4140
      %v4143 = vunpack.c.l.s4 1983009808
      %v4144 = vunpack.c.0.s8 %v4143
      %v4145 = vlaneseq
      %v4146 = vshrl.u32 %v4145, 7
      %v4147 = vsub.s32 %v4144, %v4146
      %v4148 = vrot.slane %v4134, %v4147
      %v4149 = vcombine.low %v4084, %v4094
      %v4150 = vcombine.high %v4084, %v4094
      %v4152 = vunpack.c.l.s4 1983009808
      %v4153 = vunpack.c.0.s8 %v4152
      %v4154 = vlaneseq
      %v4155 = vshrl.u32 %v4154, 7
      %v4156 = vsub.s32 %v4153, %v4155
      %v4157 = vrot.slane %v4149, %v4156
      %v4159 = vunpack.c.l.s4 1983009808
      %v4160 = vunpack.c.0.s8 %v4159
      %v4161 = vlaneseq
      %v4162 = vshrl.u32 %v4161, 7
      %v4163 = vsub.s32 %v4160, %v4162
      %v4164 = vrot.slane %v4150, %v4163
      %v4165 = vcombine.low %v4099, %v4109
      %v4166 = vcombine.high %v4099, %v4109
      %v4168 = vunpack.c.l.s4 1983009808
      %v4169 = vunpack.c.0.s8 %v4168
      %v4170 = vlaneseq
      %v4171 = vshrl.u32 %v4170, 7
      %v4172 = vsub.s32 %v4169, %v4171
      %v4173 = vrot.slane %v4165, %v4172
      %v4175 = vunpack.c.l.s4 1983009808
      %v4176 = vunpack.c.0.s8 %v4175
      %v4177 = vlaneseq
      %v4178 = vshrl.u32 %v4177, 7
      %v4179 = vsub.s32 %v4176, %v4178
      %v4180 = vrot.slane %v4166, %v4179
      %v4181 = vcombine.low %v4104, %v4114
      %v4182 = vcombine.high %v4104, %v4114
      %v4184 = vunpack.c.l.s4 1983009808
      %v4185 = vunpack.c.0.s8 %v4184
      %v4186 = vlaneseq
      %v4187 = vshrl.u32 %v4186, 7
      %v4188 = vsub.s32 %v4185, %v4187
      %v4189 = vrot.slane %v4181, %v4188
      %v4191 = vunpack.c.l.s4 1983009808
      %v4192 = vunpack.c.0.s8 %v4191
      %v4193 = vlaneseq
      %v4194 = vshrl.u32 %v4193, 7
      %v4195 = vsub.s32 %v4192, %v4194
      %v4196 = vrot.slane %v4182, %v4195
      %v4197 = vcombine.low %v4141, %v4157
      %v4198 = vcombine.high %v4141, %v4157
      %v4200 = vunpack.c.l.s4 1934713408
      %v4201 = vunpack.c.0.s8 %v4200
      %v4202 = vlaneseq
      %v4203 = vshrl.u32 %v4202, 7
      %v4204 = vsub.s32 %v4201, %v4203
      %v4205 = vrot.slane %v4197, %v4204
      %v4207 = vunpack.c.l.s4 1934713408
      %v4208 = vunpack.c.0.s8 %v4207
      %v4209 = vlaneseq
      %v4210 = vshrl.u32 %v4209, 7
      %v4211 = vsub.s32 %v4208, %v4210
      %v4212 = vrot.slane %v4198, %v4211
      %v4213 = vcombine.low %v4148, %v4164
      %v4214 = vcombine.high %v4148, %v4164
      %v4216 = vunpack.c.l.s4 1934713408
      %v4217 = vunpack.c.0.s8 %v4216
      %v4218 = vlaneseq
      %v4219 = vshrl.u32 %v4218, 7
      %v4220 = vsub.s32 %v4217, %v4219
      %v4221 = vrot.slane %v4213, %v4220
      %v4223 = vunpack.c.l.s4 1934713408
      %v4224 = vunpack.c.0.s8 %v4223
      %v4225 = vlaneseq
      %v4226 = vshrl.u32 %v4225, 7
      %v4227 = vsub.s32 %v4224, %v4226
      %v4228 = vrot.slane %v4214, %v4227
      %v4229 = vcombine.low %v4173, %v4189
      %v4230 = vcombine.high %v4173, %v4189
      %v4232 = vunpack.c.l.s4 1934713408
      %v4233 = vunpack.c.0.s8 %v4232
      %v4234 = vlaneseq
      %v4235 = vshrl.u32 %v4234, 7
      %v4236 = vsub.s32 %v4233, %v4235
      %v4237 = vrot.slane %v4229, %v4236
      %v4239 = vunpack.c.l.s4 1934713408
      %v4240 = vunpack.c.0.s8 %v4239
      %v4241 = vlaneseq
      %v4242 = vshrl.u32 %v4241, 7
      %v4243 = vsub.s32 %v4240, %v4242
      %v4244 = vrot.slane %v4230, %v4243
      %v4245 = vcombine.low %v4180, %v4196
      %v4246 = vcombine.high %v4180, %v4196
      %v4248 = vunpack.c.l.s4 1934713408
      %v4249 = vunpack.c.0.s8 %v4248
      %v4250 = vlaneseq
      %v4251 = vshrl.u32 %v4250, 7
      %v4252 = vsub.s32 %v4249, %v4251
      %v4253 = vrot.slane %v4245, %v4252
      %v4255 = vunpack.c.l.s4 1934713408
      %v4256 = vunpack.c.0.s8 %v4255
      %v4257 = vlaneseq
      %v4258 = vshrl.u32 %v4257, 7
      %v4259 = vsub.s32 %v4256, %v4258
      %v4260 = vrot.slane %v4246, %v4259
      %v4261 = vcombine.low %v4205, %v4237
      %v4262 = vcombine.high %v4205, %v4237
      %v4263 = vcombine.low %v4212, %v4244
      %v4264 = vcombine.high %v4212, %v4244
      %v4265 = vcombine.low %v4221, %v4253
      %v4266 = vcombine.high %v4221, %v4253
      %v4267 = vcombine.low %v4228, %v4260
      %v4268 = vcombine.high %v4228, %v4260
      %v4269 = vcombine.low %v4081, %v4091
      %v4270 = vcombine.high %v4081, %v4091
      %v4272 = vunpack.c.l.s4 1983009808
      %v4273 = vunpack.c.0.s8 %v4272
      %v4274 = vlaneseq
      %v4275 = vshrl.u32 %v4274, 7
      %v4276 = vsub.s32 %v4273, %v4275
      %v4277 = vrot.slane %v4269, %v4276
      %v4279 = vunpack.c.l.s4 1983009808
      %v4280 = vunpack.c.0.s8 %v4279
      %v4281 = vlaneseq
      %v4282 = vshrl.u32 %v4281, 7
      %v4283 = vsub.s32 %v4280, %v4282
      %v4284 = vrot.slane %v4270, %v4283
      %v4285 = vcombine.low %v4086, %v4096
      %v4286 = vcombine.high %v4086, %v4096
      %v4288 = vunpack.c.l.s4 1983009808
      %v4289 = vunpack.c.0.s8 %v4288
      %v4290 = vlaneseq
      %v4291 = vshrl.u32 %v4290, 7
      %v4292 = vsub.s32 %v4289, %v4291
      %v4293 = vrot.slane %v4285, %v4292
      %v4295 = vunpack.c.l.s4 1983009808
      %v4296 = vunpack.c.0.s8 %v4295
      %v4297 = vlaneseq
      %v4298 = vshrl.u32 %v4297, 7
      %v4299 = vsub.s32 %v4296, %v4298
      %v4300 = vrot.slane %v4286, %v4299
      %v4301 = vcombine.low %v4101, %v4111
      %v4302 = vcombine.high %v4101, %v4111
      %v4304 = vunpack.c.l.s4 1983009808
      %v4305 = vunpack.c.0.s8 %v4304
      %v4306 = vlaneseq
      %v4307 = vshrl.u32 %v4306, 7
      %v4308 = vsub.s32 %v4305, %v4307
      %v4309 = vrot.slane %v4301, %v4308
      %v4311 = vunpack.c.l.s4 1983009808
      %v4312 = vunpack.c.0.s8 %v4311
      %v4313 = vlaneseq
      %v4314 = vshrl.u32 %v4313, 7
      %v4315 = vsub.s32 %v4312, %v4314
      %v4316 = vrot.slane %v4302, %v4315
      %v4317 = vcombine.low %v4106, %v4116
      %v4318 = vcombine.high %v4106, %v4116
      %v4320 = vunpack.c.l.s4 1983009808
      %v4321 = vunpack.c.0.s8 %v4320
      %v4322 = vlaneseq
      %v4323 = vshrl.u32 %v4322, 7
      %v4324 = vsub.s32 %v4321, %v4323
      %v4325 = vrot.slane %v4317, %v4324
      %v4327 = vunpack.c.l.s4 1983009808
      %v4328 = vunpack.c.0.s8 %v4327
      %v4329 = vlaneseq
      %v4330 = vshrl.u32 %v4329, 7
      %v4331 = vsub.s32 %v4328, %v4330
      %v4332 = vrot.slane %v4318, %v4331
      %v4333 = vcombine.low %v4277, %v4293
      %v4334 = vcombine.high %v4277, %v4293
      %v4336 = vunpack.c.l.s4 1934713408
      %v4337 = vunpack.c.0.s8 %v4336
      %v4338 = vlaneseq
      %v4339 = vshrl.u32 %v4338, 7
      %v4340 = vsub.s32 %v4337, %v4339
      %v4341 = vrot.slane %v4333, %v4340
      %v4343 = vunpack.c.l.s4 1934713408
      %v4344 = vunpack.c.0.s8 %v4343
      %v4345 = vlaneseq
      %v4346 = vshrl.u32 %v4345, 7
      %v4347 = vsub.s32 %v4344, %v4346
      %v4348 = vrot.slane %v4334, %v4347
      %v4349 = vcombine.low %v4284, %v4300
      %v4350 = vcombine.high %v4284, %v4300
      %v4352 = vunpack.c.l.s4 1934713408
      %v4353 = vunpack.c.0.s8 %v4352
      %v4354 = vlaneseq
      %v4355 = vshrl.u32 %v4354, 7
      %v4356 = vsub.s32 %v4353, %v4355
      %v4357 = vrot.slane %v4349, %v4356
      %v4359 = vunpack.c.l.s4 1934713408
      %v4360 = vunpack.c.0.s8 %v4359
      %v4361 = vlaneseq
      %v4362 = vshrl.u32 %v4361, 7
      %v4363 = vsub.s32 %v4360, %v4362
      %v4364 = vrot.slane %v4350, %v4363
      %v4365 = vcombine.low %v4309, %v4325
      %v4366 = vcombine.high %v4309, %v4325
      %v4368 = vunpack.c.l.s4 1934713408
      %v4369 = vunpack.c.0.s8 %v4368
      %v4370 = vlaneseq
      %v4371 = vshrl.u32 %v4370, 7
      %v4372 = vsub.s32 %v4369, %v4371
      %v4373 = vrot.slane %v4365, %v4372
      %v4375 = vunpack.c.l.s4 1934713408
      %v4376 = vunpack.c.0.s8 %v4375
      %v4377 = vlaneseq
      %v4378 = vshrl.u32 %v4377, 7
      %v4379 = vsub.s32 %v4376, %v4378
      %v4380 = vrot.slane %v4366, %v4379
      %v4381 = vcombine.low %v4316, %v4332
      %v4382 = vcombine.high %v4316, %v4332
      %v4384 = vunpack.c.l.s4 1934713408
      %v4385 = vunpack.c.0.s8 %v4384
      %v4386 = vlaneseq
      %v4387 = vshrl.u32 %v4386, 7
      %v4388 = vsub.s32 %v4385, %v4387
      %v4389 = vrot.slane %v4381, %v4388
      %v4391 = vunpack.c.l.s4 1934713408
      %v4392 = vunpack.c.0.s8 %v4391
      %v4393 = vlaneseq
      %v4394 = vshrl.u32 %v4393, 7
      %v4395 = vsub.s32 %v4392, %v4394
      %v4396 = vrot.slane %v4382, %v4395
      %v4397 = vcombine.low %v4341, %v4373
      %v4398 = vcombine.high %v4341, %v4373
      %v4399 = vcombine.low %v4348, %v4380
      %v4400 = vcombine.high %v4348, %v4380
      %v4401 = vcombine.low %v4357, %v4389
      %v4402 = vcombine.high %v4357, %v4389
      %v4403 = vcombine.low %v4364, %v4396
      %v4404 = vcombine.high %v4364, %v4396
      %4406 = vrot.lane.b32.xlu0 %v4262, 16
      %v4407 = vpop.permute.xlu0 %4406
      %4410 = vrot.lane.b32.xlu0 %v4263, 32
      %v4411 = vpop.permute.xlu0 %4410
      %4414 = vrot.lane.b32.xlu0 %v4264, 48
      %v4415 = vpop.permute.xlu0 %4414
      %4418 = vrot.lane.b32.xlu0 %v4265, 64
      %v4419 = vpop.permute.xlu0 %4418
      %4422 = vrot.lane.b32.xlu0 %v4266, 80
      %v4423 = vpop.permute.xlu0 %4422
      %4426 = vrot.lane.b32.xlu0 %v4267, 96
      %v4427 = vpop.permute.xlu0 %4426
      %4430 = vrot.lane.b32.xlu0 %v4268, 112
      %v4431 = vpop.permute.xlu0 %4430
      %4434 = vrot.lane.b32.xlu0 %v4398, 16
      %v4435 = vpop.permute.xlu0 %4434
      %4438 = vrot.lane.b32.xlu0 %v4399, 32
      %v4439 = vpop.permute.xlu0 %4438
      %4442 = vrot.lane.b32.xlu0 %v4400, 48
      %v4443 = vpop.permute.xlu0 %4442
      %4446 = vrot.lane.b32.xlu0 %v4401, 64
      %v4447 = vpop.permute.xlu0 %4446
      %4450 = vrot.lane.b32.xlu0 %v4402, 80
      %v4451 = vpop.permute.xlu0 %4450
      %4454 = vrot.lane.b32.xlu0 %v4403, 96
      %v4455 = vpop.permute.xlu0 %4454
      %4458 = vrot.lane.b32.xlu0 %v4404, 112
      %v4459 = vpop.permute.xlu0 %4458
      %v4461 = vsel %vm546, %v4261, %v4407
      %v4462 = vsel %vm548, %v4461, %v4411
      %v4463 = vsel %vm550, %v4462, %v4415
      %v4464 = vsel %vm552, %v4463, %v4419
      %v4465 = vsel %vm554, %v4464, %v4423
      %v4466 = vsel %vm556, %v4465, %v4427
      %v4467 = vsel %vm558, %v4466, %v4431
      %v4468 = vsel %vm546, %v4397, %v4435
      %v4469 = vsel %vm548, %v4468, %v4439
      %v4470 = vsel %vm550, %v4469, %v4443
      %v4471 = vsel %vm552, %v4470, %v4447
      %v4472 = vsel %vm554, %v4471, %v4451
      %v4473 = vsel %vm556, %v4472, %v4455
      %v4474 = vsel %vm558, %v4473, %v4459
      %4475 = vrot.lane.b32.xlu0 %v4079, 127
      %v4476 = vpop.permute.xlu0 %4475
      %4477 = vrot.lane.b32.xlu0 %v4081, 127
      %v4478 = vpop.permute.xlu0 %4477
      %4479 = vrot.lane.b32.xlu0 %v4084, 127
      %v4480 = vpop.permute.xlu0 %4479
      %4481 = vrot.lane.b32.xlu0 %v4086, 127
      %v4482 = vpop.permute.xlu0 %4481
      %4483 = vrot.lane.b32.xlu0 %v4089, 127
      %v4484 = vpop.permute.xlu0 %4483
      %4485 = vrot.lane.b32.xlu0 %v4091, 127
      %v4486 = vpop.permute.xlu0 %4485
      %4487 = vrot.lane.b32.xlu0 %v4094, 127
      %v4488 = vpop.permute.xlu0 %4487
      %4489 = vrot.lane.b32.xlu0 %v4096, 127
      %v4490 = vpop.permute.xlu0 %4489
      %4491 = vrot.lane.b32.xlu0 %v4099, 127
      %v4492 = vpop.permute.xlu0 %4491
      %4493 = vrot.lane.b32.xlu0 %v4101, 127
      %v4494 = vpop.permute.xlu0 %4493
      %4495 = vrot.lane.b32.xlu0 %v4104, 127
      %v4496 = vpop.permute.xlu0 %4495
      %4497 = vrot.lane.b32.xlu0 %v4106, 127
      %v4498 = vpop.permute.xlu0 %4497
      %4499 = vrot.lane.b32.xlu0 %v4109, 127
      %v4500 = vpop.permute.xlu0 %4499
      %4501 = vrot.lane.b32.xlu0 %v4111, 127
      %v4502 = vpop.permute.xlu0 %4501
      %4503 = vrot.lane.b32.xlu0 %v4114, 127
      %v4504 = vpop.permute.xlu0 %4503
      %4505 = vrot.lane.b32.xlu0 %v4116, 127
      %v4506 = vpop.permute.xlu0 %4505
      %v4523 = vcombine.low %v4476, %v4484
      %v4524 = vcombine.high %v4476, %v4484
      %v4526 = vunpack.c.l.s4 1983009808
      %v4527 = vunpack.c.0.s8 %v4526
      %v4528 = vlaneseq
      %v4529 = vshrl.u32 %v4528, 7
      %v4530 = vsub.s32 %v4527, %v4529
      %v4531 = vrot.slane %v4523, %v4530
      %v4533 = vunpack.c.l.s4 1983009808
      %v4534 = vunpack.c.0.s8 %v4533
      %v4535 = vlaneseq
      %v4536 = vshrl.u32 %v4535, 7
      %v4537 = vsub.s32 %v4534, %v4536
      %v4538 = vrot.slane %v4524, %v4537
      %v4539 = vcombine.low %v4480, %v4488
      %v4540 = vcombine.high %v4480, %v4488
      %v4542 = vunpack.c.l.s4 1983009808
      %v4543 = vunpack.c.0.s8 %v4542
      %v4544 = vlaneseq
      %v4545 = vshrl.u32 %v4544, 7
      %v4546 = vsub.s32 %v4543, %v4545
      %v4547 = vrot.slane %v4539, %v4546
      %v4549 = vunpack.c.l.s4 1983009808
      %v4550 = vunpack.c.0.s8 %v4549
      %v4551 = vlaneseq
      %v4552 = vshrl.u32 %v4551, 7
      %v4553 = vsub.s32 %v4550, %v4552
      %v4554 = vrot.slane %v4540, %v4553
      %v4555 = vcombine.low %v4492, %v4500
      %v4556 = vcombine.high %v4492, %v4500
      %v4558 = vunpack.c.l.s4 1983009808
      %v4559 = vunpack.c.0.s8 %v4558
      %v4560 = vlaneseq
      %v4561 = vshrl.u32 %v4560, 7
      %v4562 = vsub.s32 %v4559, %v4561
      %v4563 = vrot.slane %v4555, %v4562
      %v4565 = vunpack.c.l.s4 1983009808
      %v4566 = vunpack.c.0.s8 %v4565
      %v4567 = vlaneseq
      %v4568 = vshrl.u32 %v4567, 7
      %v4569 = vsub.s32 %v4566, %v4568
      %v4570 = vrot.slane %v4556, %v4569
      %v4571 = vcombine.low %v4496, %v4504
      %v4572 = vcombine.high %v4496, %v4504
      %v4574 = vunpack.c.l.s4 1983009808
      %v4575 = vunpack.c.0.s8 %v4574
      %v4576 = vlaneseq
      %v4577 = vshrl.u32 %v4576, 7
      %v4578 = vsub.s32 %v4575, %v4577
      %v4579 = vrot.slane %v4571, %v4578
      %v4581 = vunpack.c.l.s4 1983009808
      %v4582 = vunpack.c.0.s8 %v4581
      %v4583 = vlaneseq
      %v4584 = vshrl.u32 %v4583, 7
      %v4585 = vsub.s32 %v4582, %v4584
      %v4586 = vrot.slane %v4572, %v4585
      %v4587 = vcombine.low %v4531, %v4547
      %v4588 = vcombine.high %v4531, %v4547
      %v4590 = vunpack.c.l.s4 1934713408
      %v4591 = vunpack.c.0.s8 %v4590
      %v4592 = vlaneseq
      %v4593 = vshrl.u32 %v4592, 7
      %v4594 = vsub.s32 %v4591, %v4593
      %v4595 = vrot.slane %v4587, %v4594
      %v4597 = vunpack.c.l.s4 1934713408
      %v4598 = vunpack.c.0.s8 %v4597
      %v4599 = vlaneseq
      %v4600 = vshrl.u32 %v4599, 7
      %v4601 = vsub.s32 %v4598, %v4600
      %v4602 = vrot.slane %v4588, %v4601
      %v4603 = vcombine.low %v4538, %v4554
      %v4604 = vcombine.high %v4538, %v4554
      %v4606 = vunpack.c.l.s4 1934713408
      %v4607 = vunpack.c.0.s8 %v4606
      %v4608 = vlaneseq
      %v4609 = vshrl.u32 %v4608, 7
      %v4610 = vsub.s32 %v4607, %v4609
      %v4611 = vrot.slane %v4603, %v4610
      %v4613 = vunpack.c.l.s4 1934713408
      %v4614 = vunpack.c.0.s8 %v4613
      %v4615 = vlaneseq
      %v4616 = vshrl.u32 %v4615, 7
      %v4617 = vsub.s32 %v4614, %v4616
      %v4618 = vrot.slane %v4604, %v4617
      %v4619 = vcombine.low %v4563, %v4579
      %v4620 = vcombine.high %v4563, %v4579
      %v4622 = vunpack.c.l.s4 1934713408
      %v4623 = vunpack.c.0.s8 %v4622
      %v4624 = vlaneseq
      %v4625 = vshrl.u32 %v4624, 7
      %v4626 = vsub.s32 %v4623, %v4625
      %v4627 = vrot.slane %v4619, %v4626
      %v4629 = vunpack.c.l.s4 1934713408
      %v4630 = vunpack.c.0.s8 %v4629
      %v4631 = vlaneseq
      %v4632 = vshrl.u32 %v4631, 7
      %v4633 = vsub.s32 %v4630, %v4632
      %v4634 = vrot.slane %v4620, %v4633
      %v4635 = vcombine.low %v4570, %v4586
      %v4636 = vcombine.high %v4570, %v4586
      %v4638 = vunpack.c.l.s4 1934713408
      %v4639 = vunpack.c.0.s8 %v4638
      %v4640 = vlaneseq
      %v4641 = vshrl.u32 %v4640, 7
      %v4642 = vsub.s32 %v4639, %v4641
      %v4643 = vrot.slane %v4635, %v4642
      %v4645 = vunpack.c.l.s4 1934713408
      %v4646 = vunpack.c.0.s8 %v4645
      %v4647 = vlaneseq
      %v4648 = vshrl.u32 %v4647, 7
      %v4649 = vsub.s32 %v4646, %v4648
      %v4650 = vrot.slane %v4636, %v4649
      %v4651 = vcombine.low %v4595, %v4627
      %v4652 = vcombine.high %v4595, %v4627
      %v4653 = vcombine.low %v4602, %v4634
      %v4654 = vcombine.high %v4602, %v4634
      %v4655 = vcombine.low %v4611, %v4643
      %v4656 = vcombine.high %v4611, %v4643
      %v4657 = vcombine.low %v4618, %v4650
      %v4658 = vcombine.high %v4618, %v4650
      %v4659 = vcombine.low %v4478, %v4486
      %v4660 = vcombine.high %v4478, %v4486
      %v4662 = vunpack.c.l.s4 1983009808
      %v4663 = vunpack.c.0.s8 %v4662
      %v4664 = vlaneseq
      %v4665 = vshrl.u32 %v4664, 7
      %v4666 = vsub.s32 %v4663, %v4665
      %v4667 = vrot.slane %v4659, %v4666
      %v4669 = vunpack.c.l.s4 1983009808
      %v4670 = vunpack.c.0.s8 %v4669
      %v4671 = vlaneseq
      %v4672 = vshrl.u32 %v4671, 7
      %v4673 = vsub.s32 %v4670, %v4672
      %v4674 = vrot.slane %v4660, %v4673
      %v4675 = vcombine.low %v4482, %v4490
      %v4676 = vcombine.high %v4482, %v4490
      %v4678 = vunpack.c.l.s4 1983009808
      %v4679 = vunpack.c.0.s8 %v4678
      %v4680 = vlaneseq
      %v4681 = vshrl.u32 %v4680, 7
      %v4682 = vsub.s32 %v4679, %v4681
      %v4683 = vrot.slane %v4675, %v4682
      %v4685 = vunpack.c.l.s4 1983009808
      %v4686 = vunpack.c.0.s8 %v4685
      %v4687 = vlaneseq
      %v4688 = vshrl.u32 %v4687, 7
      %v4689 = vsub.s32 %v4686, %v4688
      %v4690 = vrot.slane %v4676, %v4689
      %v4691 = vcombine.low %v4494, %v4502
      %v4692 = vcombine.high %v4494, %v4502
      %v4694 = vunpack.c.l.s4 1983009808
      %v4695 = vunpack.c.0.s8 %v4694
      %v4696 = vlaneseq
      %v4697 = vshrl.u32 %v4696, 7
      %v4698 = vsub.s32 %v4695, %v4697
      %v4699 = vrot.slane %v4691, %v4698
      %v4701 = vunpack.c.l.s4 1983009808
      %v4702 = vunpack.c.0.s8 %v4701
      %v4703 = vlaneseq
      %v4704 = vshrl.u32 %v4703, 7
      %v4705 = vsub.s32 %v4702, %v4704
      %v4706 = vrot.slane %v4692, %v4705
      %v4707 = vcombine.low %v4498, %v4506
      %v4708 = vcombine.high %v4498, %v4506
      %v4710 = vunpack.c.l.s4 1983009808
      %v4711 = vunpack.c.0.s8 %v4710
      %v4712 = vlaneseq
      %v4713 = vshrl.u32 %v4712, 7
      %v4714 = vsub.s32 %v4711, %v4713
      %v4715 = vrot.slane %v4707, %v4714
      %v4717 = vunpack.c.l.s4 1983009808
      %v4718 = vunpack.c.0.s8 %v4717
      %v4719 = vlaneseq
      %v4720 = vshrl.u32 %v4719, 7
      %v4721 = vsub.s32 %v4718, %v4720
      %v4722 = vrot.slane %v4708, %v4721
      %v4723 = vcombine.low %v4667, %v4683
      %v4724 = vcombine.high %v4667, %v4683
      %v4726 = vunpack.c.l.s4 1934713408
      %v4727 = vunpack.c.0.s8 %v4726
      %v4728 = vlaneseq
      %v4729 = vshrl.u32 %v4728, 7
      %v4730 = vsub.s32 %v4727, %v4729
      %v4731 = vrot.slane %v4723, %v4730
      %v4733 = vunpack.c.l.s4 1934713408
      %v4734 = vunpack.c.0.s8 %v4733
      %v4735 = vlaneseq
      %v4736 = vshrl.u32 %v4735, 7
      %v4737 = vsub.s32 %v4734, %v4736
      %v4738 = vrot.slane %v4724, %v4737
      %v4739 = vcombine.low %v4674, %v4690
      %v4740 = vcombine.high %v4674, %v4690
      %v4742 = vunpack.c.l.s4 1934713408
      %v4743 = vunpack.c.0.s8 %v4742
      %v4744 = vlaneseq
      %v4745 = vshrl.u32 %v4744, 7
      %v4746 = vsub.s32 %v4743, %v4745
      %v4747 = vrot.slane %v4739, %v4746
      %v4749 = vunpack.c.l.s4 1934713408
      %v4750 = vunpack.c.0.s8 %v4749
      %v4751 = vlaneseq
      %v4752 = vshrl.u32 %v4751, 7
      %v4753 = vsub.s32 %v4750, %v4752
      %v4754 = vrot.slane %v4740, %v4753
      %v4755 = vcombine.low %v4699, %v4715
      %v4756 = vcombine.high %v4699, %v4715
      %v4758 = vunpack.c.l.s4 1934713408
      %v4759 = vunpack.c.0.s8 %v4758
      %v4760 = vlaneseq
      %v4761 = vshrl.u32 %v4760, 7
      %v4762 = vsub.s32 %v4759, %v4761
      %v4763 = vrot.slane %v4755, %v4762
      %v4765 = vunpack.c.l.s4 1934713408
      %v4766 = vunpack.c.0.s8 %v4765
      %v4767 = vlaneseq
      %v4768 = vshrl.u32 %v4767, 7
      %v4769 = vsub.s32 %v4766, %v4768
      %v4770 = vrot.slane %v4756, %v4769
      %v4771 = vcombine.low %v4706, %v4722
      %v4772 = vcombine.high %v4706, %v4722
      %v4774 = vunpack.c.l.s4 1934713408
      %v4775 = vunpack.c.0.s8 %v4774
      %v4776 = vlaneseq
      %v4777 = vshrl.u32 %v4776, 7
      %v4778 = vsub.s32 %v4775, %v4777
      %v4779 = vrot.slane %v4771, %v4778
      %v4781 = vunpack.c.l.s4 1934713408
      %v4782 = vunpack.c.0.s8 %v4781
      %v4783 = vlaneseq
      %v4784 = vshrl.u32 %v4783, 7
      %v4785 = vsub.s32 %v4782, %v4784
      %v4786 = vrot.slane %v4772, %v4785
      %v4787 = vcombine.low %v4731, %v4763
      %v4788 = vcombine.high %v4731, %v4763
      %v4789 = vcombine.low %v4738, %v4770
      %v4790 = vcombine.high %v4738, %v4770
      %v4791 = vcombine.low %v4747, %v4779
      %v4792 = vcombine.high %v4747, %v4779
      %v4793 = vcombine.low %v4754, %v4786
      %v4794 = vcombine.high %v4754, %v4786
      %4796 = vrot.lane.b32.xlu0 %v4652, 16
      %v4797 = vpop.permute.xlu0 %4796
      %4800 = vrot.lane.b32.xlu0 %v4653, 32
      %v4801 = vpop.permute.xlu0 %4800
      %4804 = vrot.lane.b32.xlu0 %v4654, 48
      %v4805 = vpop.permute.xlu0 %4804
      %4808 = vrot.lane.b32.xlu0 %v4655, 64
      %v4809 = vpop.permute.xlu0 %4808
      %4812 = vrot.lane.b32.xlu0 %v4656, 80
      %v4813 = vpop.permute.xlu0 %4812
      %4816 = vrot.lane.b32.xlu0 %v4657, 96
      %v4817 = vpop.permute.xlu0 %4816
      %4820 = vrot.lane.b32.xlu0 %v4658, 112
      %v4821 = vpop.permute.xlu0 %4820
      %4824 = vrot.lane.b32.xlu0 %v4788, 16
      %v4825 = vpop.permute.xlu0 %4824
      %4828 = vrot.lane.b32.xlu0 %v4789, 32
      %v4829 = vpop.permute.xlu0 %4828
      %4832 = vrot.lane.b32.xlu0 %v4790, 48
      %v4833 = vpop.permute.xlu0 %4832
      %4836 = vrot.lane.b32.xlu0 %v4791, 64
      %v4837 = vpop.permute.xlu0 %4836
      %4840 = vrot.lane.b32.xlu0 %v4792, 80
      %v4841 = vpop.permute.xlu0 %4840
      %4844 = vrot.lane.b32.xlu0 %v4793, 96
      %v4845 = vpop.permute.xlu0 %4844
      %4848 = vrot.lane.b32.xlu0 %v4794, 112
      %v4849 = vpop.permute.xlu0 %4848
      %v4851 = vsel %vm546, %v4651, %v4797
      %v4852 = vsel %vm548, %v4851, %v4801
      %v4853 = vsel %vm550, %v4852, %v4805
      %v4854 = vsel %vm552, %v4853, %v4809
      %v4855 = vsel %vm554, %v4854, %v4813
      %v4856 = vsel %vm556, %v4855, %v4817
      %v4857 = vsel %vm558, %v4856, %v4821
      %v4858 = vsel %vm546, %v4787, %v4825
      %v4859 = vsel %vm548, %v4858, %v4829
      %v4860 = vsel %vm550, %v4859, %v4833
      %v4861 = vsel %vm552, %v4860, %v4837
      %v4862 = vsel %vm554, %v4861, %v4841
      %v4863 = vsel %vm556, %v4862, %v4845
      %v4864 = vsel %vm558, %v4863, %v4849
      %4865 = vrot.lane.b32.xlu0 %v4079, 126
      %v4866 = vpop.permute.xlu0 %4865
      %4867 = vrot.lane.b32.xlu0 %v4081, 126
      %v4868 = vpop.permute.xlu0 %4867
      %4869 = vrot.lane.b32.xlu0 %v4084, 126
      %v4870 = vpop.permute.xlu0 %4869
      %4871 = vrot.lane.b32.xlu0 %v4086, 126
      %v4872 = vpop.permute.xlu0 %4871
      %4873 = vrot.lane.b32.xlu0 %v4089, 126
      %v4874 = vpop.permute.xlu0 %4873
      %4875 = vrot.lane.b32.xlu0 %v4091, 126
      %v4876 = vpop.permute.xlu0 %4875
      %4877 = vrot.lane.b32.xlu0 %v4094, 126
      %v4878 = vpop.permute.xlu0 %4877
      %4879 = vrot.lane.b32.xlu0 %v4096, 126
      %v4880 = vpop.permute.xlu0 %4879
      %4881 = vrot.lane.b32.xlu0 %v4099, 126
      %v4882 = vpop.permute.xlu0 %4881
      %4883 = vrot.lane.b32.xlu0 %v4101, 126
      %v4884 = vpop.permute.xlu0 %4883
      %4885 = vrot.lane.b32.xlu0 %v4104, 126
      %v4886 = vpop.permute.xlu0 %4885
      %4887 = vrot.lane.b32.xlu0 %v4106, 126
      %v4888 = vpop.permute.xlu0 %4887
      %4889 = vrot.lane.b32.xlu0 %v4109, 126
      %v4890 = vpop.permute.xlu0 %4889
      %4891 = vrot.lane.b32.xlu0 %v4111, 126
      %v4892 = vpop.permute.xlu0 %4891
      %4893 = vrot.lane.b32.xlu0 %v4114, 126
      %v4894 = vpop.permute.xlu0 %4893
      %4895 = vrot.lane.b32.xlu0 %v4116, 126
      %v4896 = vpop.permute.xlu0 %4895
      %v4913 = vcombine.low %v4866, %v4874
      %v4914 = vcombine.high %v4866, %v4874
      %v4916 = vunpack.c.l.s4 1983009808
      %v4917 = vunpack.c.0.s8 %v4916
      %v4918 = vlaneseq
      %v4919 = vshrl.u32 %v4918, 7
      %v4920 = vsub.s32 %v4917, %v4919
      %v4921 = vrot.slane %v4913, %v4920
      %v4923 = vunpack.c.l.s4 1983009808
      %v4924 = vunpack.c.0.s8 %v4923
      %v4925 = vlaneseq
      %v4926 = vshrl.u32 %v4925, 7
      %v4927 = vsub.s32 %v4924, %v4926
      %v4928 = vrot.slane %v4914, %v4927
      %v4929 = vcombine.low %v4870, %v4878
      %v4930 = vcombine.high %v4870, %v4878
      %v4932 = vunpack.c.l.s4 1983009808
      %v4933 = vunpack.c.0.s8 %v4932
      %v4934 = vlaneseq
      %v4935 = vshrl.u32 %v4934, 7
      %v4936 = vsub.s32 %v4933, %v4935
      %v4937 = vrot.slane %v4929, %v4936
      %v4939 = vunpack.c.l.s4 1983009808
      %v4940 = vunpack.c.0.s8 %v4939
      %v4941 = vlaneseq
      %v4942 = vshrl.u32 %v4941, 7
      %v4943 = vsub.s32 %v4940, %v4942
      %v4944 = vrot.slane %v4930, %v4943
      %v4945 = vcombine.low %v4882, %v4890
      %v4946 = vcombine.high %v4882, %v4890
      %v4948 = vunpack.c.l.s4 1983009808
      %v4949 = vunpack.c.0.s8 %v4948
      %v4950 = vlaneseq
      %v4951 = vshrl.u32 %v4950, 7
      %v4952 = vsub.s32 %v4949, %v4951
      %v4953 = vrot.slane %v4945, %v4952
      %v4955 = vunpack.c.l.s4 1983009808
      %v4956 = vunpack.c.0.s8 %v4955
      %v4957 = vlaneseq
      %v4958 = vshrl.u32 %v4957, 7
      %v4959 = vsub.s32 %v4956, %v4958
      %v4960 = vrot.slane %v4946, %v4959
      %v4961 = vcombine.low %v4886, %v4894
      %v4962 = vcombine.high %v4886, %v4894
      %v4964 = vunpack.c.l.s4 1983009808
      %v4965 = vunpack.c.0.s8 %v4964
      %v4966 = vlaneseq
      %v4967 = vshrl.u32 %v4966, 7
      %v4968 = vsub.s32 %v4965, %v4967
      %v4969 = vrot.slane %v4961, %v4968
      %v4971 = vunpack.c.l.s4 1983009808
      %v4972 = vunpack.c.0.s8 %v4971
      %v4973 = vlaneseq
      %v4974 = vshrl.u32 %v4973, 7
      %v4975 = vsub.s32 %v4972, %v4974
      %v4976 = vrot.slane %v4962, %v4975
      %v4977 = vcombine.low %v4921, %v4937
      %v4978 = vcombine.high %v4921, %v4937
      %v4980 = vunpack.c.l.s4 1934713408
      %v4981 = vunpack.c.0.s8 %v4980
      %v4982 = vlaneseq
      %v4983 = vshrl.u32 %v4982, 7
      %v4984 = vsub.s32 %v4981, %v4983
      %v4985 = vrot.slane %v4977, %v4984
      %v4987 = vunpack.c.l.s4 1934713408
      %v4988 = vunpack.c.0.s8 %v4987
      %v4989 = vlaneseq
      %v4990 = vshrl.u32 %v4989, 7
      %v4991 = vsub.s32 %v4988, %v4990
      %v4992 = vrot.slane %v4978, %v4991
      %v4993 = vcombine.low %v4928, %v4944
      %v4994 = vcombine.high %v4928, %v4944
      %v4996 = vunpack.c.l.s4 1934713408
      %v4997 = vunpack.c.0.s8 %v4996
      %v4998 = vlaneseq
      %v4999 = vshrl.u32 %v4998, 7
      %v5000 = vsub.s32 %v4997, %v4999
      %v5001 = vrot.slane %v4993, %v5000
      %v5003 = vunpack.c.l.s4 1934713408
      %v5004 = vunpack.c.0.s8 %v5003
      %v5005 = vlaneseq
      %v5006 = vshrl.u32 %v5005, 7
      %v5007 = vsub.s32 %v5004, %v5006
      %v5008 = vrot.slane %v4994, %v5007
      %v5009 = vcombine.low %v4953, %v4969
      %v5010 = vcombine.high %v4953, %v4969
      %v5012 = vunpack.c.l.s4 1934713408
      %v5013 = vunpack.c.0.s8 %v5012
      %v5014 = vlaneseq
      %v5015 = vshrl.u32 %v5014, 7
      %v5016 = vsub.s32 %v5013, %v5015
      %v5017 = vrot.slane %v5009, %v5016
      %v5019 = vunpack.c.l.s4 1934713408
      %v5020 = vunpack.c.0.s8 %v5019
      %v5021 = vlaneseq
      %v5022 = vshrl.u32 %v5021, 7
      %v5023 = vsub.s32 %v5020, %v5022
      %v5024 = vrot.slane %v5010, %v5023
      %v5025 = vcombine.low %v4960, %v4976
      %v5026 = vcombine.high %v4960, %v4976
      %v5028 = vunpack.c.l.s4 1934713408
      %v5029 = vunpack.c.0.s8 %v5028
      %v5030 = vlaneseq
      %v5031 = vshrl.u32 %v5030, 7
      %v5032 = vsub.s32 %v5029, %v5031
      %v5033 = vrot.slane %v5025, %v5032
      %v5035 = vunpack.c.l.s4 1934713408
      %v5036 = vunpack.c.0.s8 %v5035
      %v5037 = vlaneseq
      %v5038 = vshrl.u32 %v5037, 7
      %v5039 = vsub.s32 %v5036, %v5038
      %v5040 = vrot.slane %v5026, %v5039
      %v5041 = vcombine.low %v4985, %v5017
      %v5042 = vcombine.high %v4985, %v5017
      %v5043 = vcombine.low %v4992, %v5024
      %v5044 = vcombine.high %v4992, %v5024
      %v5045 = vcombine.low %v5001, %v5033
      %v5046 = vcombine.high %v5001, %v5033
      %v5047 = vcombine.low %v5008, %v5040
      %v5048 = vcombine.high %v5008, %v5040
      %v5049 = vcombine.low %v4868, %v4876
      %v5050 = vcombine.high %v4868, %v4876
      %v5052 = vunpack.c.l.s4 1983009808
      %v5053 = vunpack.c.0.s8 %v5052
      %v5054 = vlaneseq
      %v5055 = vshrl.u32 %v5054, 7
      %v5056 = vsub.s32 %v5053, %v5055
      %v5057 = vrot.slane %v5049, %v5056
      %v5059 = vunpack.c.l.s4 1983009808
      %v5060 = vunpack.c.0.s8 %v5059
      %v5061 = vlaneseq
      %v5062 = vshrl.u32 %v5061, 7
      %v5063 = vsub.s32 %v5060, %v5062
      %v5064 = vrot.slane %v5050, %v5063
      %v5065 = vcombine.low %v4872, %v4880
      %v5066 = vcombine.high %v4872, %v4880
      %v5068 = vunpack.c.l.s4 1983009808
      %v5069 = vunpack.c.0.s8 %v5068
      %v5070 = vlaneseq
      %v5071 = vshrl.u32 %v5070, 7
      %v5072 = vsub.s32 %v5069, %v5071
      %v5073 = vrot.slane %v5065, %v5072
      %v5075 = vunpack.c.l.s4 1983009808
      %v5076 = vunpack.c.0.s8 %v5075
      %v5077 = vlaneseq
      %v5078 = vshrl.u32 %v5077, 7
      %v5079 = vsub.s32 %v5076, %v5078
      %v5080 = vrot.slane %v5066, %v5079
      %v5081 = vcombine.low %v4884, %v4892
      %v5082 = vcombine.high %v4884, %v4892
      %v5084 = vunpack.c.l.s4 1983009808
      %v5085 = vunpack.c.0.s8 %v5084
      %v5086 = vlaneseq
      %v5087 = vshrl.u32 %v5086, 7
      %v5088 = vsub.s32 %v5085, %v5087
      %v5089 = vrot.slane %v5081, %v5088
      %v5091 = vunpack.c.l.s4 1983009808
      %v5092 = vunpack.c.0.s8 %v5091
      %v5093 = vlaneseq
      %v5094 = vshrl.u32 %v5093, 7
      %v5095 = vsub.s32 %v5092, %v5094
      %v5096 = vrot.slane %v5082, %v5095
      %v5097 = vcombine.low %v4888, %v4896
      %v5098 = vcombine.high %v4888, %v4896
      %v5100 = vunpack.c.l.s4 1983009808
      %v5101 = vunpack.c.0.s8 %v5100
      %v5102 = vlaneseq
      %v5103 = vshrl.u32 %v5102, 7
      %v5104 = vsub.s32 %v5101, %v5103
      %v5105 = vrot.slane %v5097, %v5104
      %v5107 = vunpack.c.l.s4 1983009808
      %v5108 = vunpack.c.0.s8 %v5107
      %v5109 = vlaneseq
      %v5110 = vshrl.u32 %v5109, 7
      %v5111 = vsub.s32 %v5108, %v5110
      %v5112 = vrot.slane %v5098, %v5111
      %v5113 = vcombine.low %v5057, %v5073
      %v5114 = vcombine.high %v5057, %v5073
      %v5116 = vunpack.c.l.s4 1934713408
      %v5117 = vunpack.c.0.s8 %v5116
      %v5118 = vlaneseq
      %v5119 = vshrl.u32 %v5118, 7
      %v5120 = vsub.s32 %v5117, %v5119
      %v5121 = vrot.slane %v5113, %v5120
      %v5123 = vunpack.c.l.s4 1934713408
      %v5124 = vunpack.c.0.s8 %v5123
      %v5125 = vlaneseq
      %v5126 = vshrl.u32 %v5125, 7
      %v5127 = vsub.s32 %v5124, %v5126
      %v5128 = vrot.slane %v5114, %v5127
      %v5129 = vcombine.low %v5064, %v5080
      %v5130 = vcombine.high %v5064, %v5080
      %v5132 = vunpack.c.l.s4 1934713408
      %v5133 = vunpack.c.0.s8 %v5132
      %v5134 = vlaneseq
      %v5135 = vshrl.u32 %v5134, 7
      %v5136 = vsub.s32 %v5133, %v5135
      %v5137 = vrot.slane %v5129, %v5136
      %v5139 = vunpack.c.l.s4 1934713408
      %v5140 = vunpack.c.0.s8 %v5139
      %v5141 = vlaneseq
      %v5142 = vshrl.u32 %v5141, 7
      %v5143 = vsub.s32 %v5140, %v5142
      %v5144 = vrot.slane %v5130, %v5143
      %v5145 = vcombine.low %v5089, %v5105
      %v5146 = vcombine.high %v5089, %v5105
      %v5148 = vunpack.c.l.s4 1934713408
      %v5149 = vunpack.c.0.s8 %v5148
      %v5150 = vlaneseq
      %v5151 = vshrl.u32 %v5150, 7
      %v5152 = vsub.s32 %v5149, %v5151
      %v5153 = vrot.slane %v5145, %v5152
      %v5155 = vunpack.c.l.s4 1934713408
      %v5156 = vunpack.c.0.s8 %v5155
      %v5157 = vlaneseq
      %v5158 = vshrl.u32 %v5157, 7
      %v5159 = vsub.s32 %v5156, %v5158
      %v5160 = vrot.slane %v5146, %v5159
      %v5161 = vcombine.low %v5096, %v5112
      %v5162 = vcombine.high %v5096, %v5112
      %v5164 = vunpack.c.l.s4 1934713408
      %v5165 = vunpack.c.0.s8 %v5164
      %v5166 = vlaneseq
      %v5167 = vshrl.u32 %v5166, 7
      %v5168 = vsub.s32 %v5165, %v5167
      %v5169 = vrot.slane %v5161, %v5168
      %v5171 = vunpack.c.l.s4 1934713408
      %v5172 = vunpack.c.0.s8 %v5171
      %v5173 = vlaneseq
      %v5174 = vshrl.u32 %v5173, 7
      %v5175 = vsub.s32 %v5172, %v5174
      %v5176 = vrot.slane %v5162, %v5175
      %v5177 = vcombine.low %v5121, %v5153
      %v5178 = vcombine.high %v5121, %v5153
      %v5179 = vcombine.low %v5128, %v5160
      %v5180 = vcombine.high %v5128, %v5160
      %v5181 = vcombine.low %v5137, %v5169
      %v5182 = vcombine.high %v5137, %v5169
      %v5183 = vcombine.low %v5144, %v5176
      %v5184 = vcombine.high %v5144, %v5176
      %5186 = vrot.lane.b32.xlu0 %v5042, 16
      %v5187 = vpop.permute.xlu0 %5186
      %5190 = vrot.lane.b32.xlu0 %v5043, 32
      %v5191 = vpop.permute.xlu0 %5190
      %5194 = vrot.lane.b32.xlu0 %v5044, 48
      %v5195 = vpop.permute.xlu0 %5194
      %5198 = vrot.lane.b32.xlu0 %v5045, 64
      %v5199 = vpop.permute.xlu0 %5198
      %5202 = vrot.lane.b32.xlu0 %v5046, 80
      %v5203 = vpop.permute.xlu0 %5202
      %5206 = vrot.lane.b32.xlu0 %v5047, 96
      %v5207 = vpop.permute.xlu0 %5206
      %5210 = vrot.lane.b32.xlu0 %v5048, 112
      %v5211 = vpop.permute.xlu0 %5210
      %5214 = vrot.lane.b32.xlu0 %v5178, 16
      %v5215 = vpop.permute.xlu0 %5214
      %5218 = vrot.lane.b32.xlu0 %v5179, 32
      %v5219 = vpop.permute.xlu0 %5218
      %5222 = vrot.lane.b32.xlu0 %v5180, 48
      %v5223 = vpop.permute.xlu0 %5222
      %5226 = vrot.lane.b32.xlu0 %v5181, 64
      %v5227 = vpop.permute.xlu0 %5226
      %5230 = vrot.lane.b32.xlu0 %v5182, 80
      %v5231 = vpop.permute.xlu0 %5230
      %5234 = vrot.lane.b32.xlu0 %v5183, 96
      %v5235 = vpop.permute.xlu0 %5234
      %5238 = vrot.lane.b32.xlu0 %v5184, 112
      %v5239 = vpop.permute.xlu0 %5238
      %v5241 = vsel %vm546, %v5041, %v5187
      %v5242 = vsel %vm548, %v5241, %v5191
      %v5243 = vsel %vm550, %v5242, %v5195
      %v5244 = vsel %vm552, %v5243, %v5199
      %v5245 = vsel %vm554, %v5244, %v5203
      %v5246 = vsel %vm556, %v5245, %v5207
      %v5247 = vsel %vm558, %v5246, %v5211
      %v5248 = vsel %vm546, %v5177, %v5215
      %v5249 = vsel %vm548, %v5248, %v5219
      %v5250 = vsel %vm550, %v5249, %v5223
      %v5251 = vsel %vm552, %v5250, %v5227
      %v5252 = vsel %vm554, %v5251, %v5231
      %v5253 = vsel %vm556, %v5252, %v5235
      %v5254 = vsel %vm558, %v5253, %v5239
      %v5255 = vrot.slane %v2907, 2
      %v5256 = vrot.slane %v2908, 2
      %v5257 = vsel %vm1690, %v5255, %v5256
      %v5258 = vrot.slane %v2909, 2
      %v5259 = vsel %vm1690, %v5256, %v5258
      %v5260 = vrot.slane %v2910, 2
      %v5261 = vrot.slane %v2911, 2
      %v5262 = vsel %vm1690, %v5260, %v5261
      %v5263 = vrot.slane %v2912, 2
      %v5264 = vsel %vm1690, %v5261, %v5263
      %v5265 = vrot.slane %v2913, 2
      %v5266 = vrot.slane %v2914, 2
      %v5267 = vsel %vm1690, %v5265, %v5266
      %v5268 = vrot.slane %v2915, 2
      %v5269 = vsel %vm1690, %v5266, %v5268
      %v5270 = vrot.slane %v2916, 2
      %v5271 = vrot.slane %v2917, 2
      %v5272 = vsel %vm1690, %v5270, %v5271
      %v5273 = vrot.slane %v2918, 2
      %v5274 = vsel %vm1690, %v5271, %v5273
      %v5275 = vrot.slane %v2919, 2
      %v5276 = vrot.slane %v2920, 2
      %v5277 = vsel %vm1690, %v5275, %v5276
      %v5278 = vrot.slane %v2921, 2
      %v5279 = vsel %vm1690, %v5276, %v5278
      %v5280 = vrot.slane %v2922, 2
      %v5281 = vrot.slane %v2923, 2
      %v5282 = vsel %vm1690, %v5280, %v5281
      %v5283 = vrot.slane %v2924, 2
      %v5284 = vsel %vm1690, %v5281, %v5283
      %v5285 = vrot.slane %v2925, 2
      %v5286 = vrot.slane %v2926, 2
      %v5287 = vsel %vm1690, %v5285, %v5286
      %v5288 = vrot.slane %v2927, 2
      %v5289 = vsel %vm1690, %v5286, %v5288
      %v5290 = vrot.slane %v2928, 2
      %v5291 = vrot.slane %v2929, 2
      %v5292 = vsel %vm1690, %v5290, %v5291
      %v5293 = vrot.slane %v2930, 2
      %v5294 = vsel %vm1690, %v5291, %v5293
      %v5311 = vcombine.low %v5257, %v5267
      %v5312 = vcombine.high %v5257, %v5267
      %v5314 = vunpack.c.l.s4 1983009808
      %v5315 = vunpack.c.0.s8 %v5314
      %v5316 = vlaneseq
      %v5317 = vshrl.u32 %v5316, 7
      %v5318 = vsub.s32 %v5315, %v5317
      %v5319 = vrot.slane %v5311, %v5318
      %v5321 = vunpack.c.l.s4 1983009808
      %v5322 = vunpack.c.0.s8 %v5321
      %v5323 = vlaneseq
      %v5324 = vshrl.u32 %v5323, 7
      %v5325 = vsub.s32 %v5322, %v5324
      %v5326 = vrot.slane %v5312, %v5325
      %v5327 = vcombine.low %v5262, %v5272
      %v5328 = vcombine.high %v5262, %v5272
      %v5330 = vunpack.c.l.s4 1983009808
      %v5331 = vunpack.c.0.s8 %v5330
      %v5332 = vlaneseq
      %v5333 = vshrl.u32 %v5332, 7
      %v5334 = vsub.s32 %v5331, %v5333
      %v5335 = vrot.slane %v5327, %v5334
      %v5337 = vunpack.c.l.s4 1983009808
      %v5338 = vunpack.c.0.s8 %v5337
      %v5339 = vlaneseq
      %v5340 = vshrl.u32 %v5339, 7
      %v5341 = vsub.s32 %v5338, %v5340
      %v5342 = vrot.slane %v5328, %v5341
      %v5343 = vcombine.low %v5277, %v5287
      %v5344 = vcombine.high %v5277, %v5287
      %v5346 = vunpack.c.l.s4 1983009808
      %v5347 = vunpack.c.0.s8 %v5346
      %v5348 = vlaneseq
      %v5349 = vshrl.u32 %v5348, 7
      %v5350 = vsub.s32 %v5347, %v5349
      %v5351 = vrot.slane %v5343, %v5350
      %v5353 = vunpack.c.l.s4 1983009808
      %v5354 = vunpack.c.0.s8 %v5353
      %v5355 = vlaneseq
      %v5356 = vshrl.u32 %v5355, 7
      %v5357 = vsub.s32 %v5354, %v5356
      %v5358 = vrot.slane %v5344, %v5357
      %v5359 = vcombine.low %v5282, %v5292
      %v5360 = vcombine.high %v5282, %v5292
      %v5362 = vunpack.c.l.s4 1983009808
      %v5363 = vunpack.c.0.s8 %v5362
      %v5364 = vlaneseq
      %v5365 = vshrl.u32 %v5364, 7
      %v5366 = vsub.s32 %v5363, %v5365
      %v5367 = vrot.slane %v5359, %v5366
      %v5369 = vunpack.c.l.s4 1983009808
      %v5370 = vunpack.c.0.s8 %v5369
      %v5371 = vlaneseq
      %v5372 = vshrl.u32 %v5371, 7
      %v5373 = vsub.s32 %v5370, %v5372
      %v5374 = vrot.slane %v5360, %v5373
      %v5375 = vcombine.low %v5319, %v5335
      %v5376 = vcombine.high %v5319, %v5335
      %v5378 = vunpack.c.l.s4 1934713408
      %v5379 = vunpack.c.0.s8 %v5378
      %v5380 = vlaneseq
      %v5381 = vshrl.u32 %v5380, 7
      %v5382 = vsub.s32 %v5379, %v5381
      %v5383 = vrot.slane %v5375, %v5382
      %v5385 = vunpack.c.l.s4 1934713408
      %v5386 = vunpack.c.0.s8 %v5385
      %v5387 = vlaneseq
      %v5388 = vshrl.u32 %v5387, 7
      %v5389 = vsub.s32 %v5386, %v5388
      %v5390 = vrot.slane %v5376, %v5389
      %v5391 = vcombine.low %v5326, %v5342
      %v5392 = vcombine.high %v5326, %v5342
      %v5394 = vunpack.c.l.s4 1934713408
      %v5395 = vunpack.c.0.s8 %v5394
      %v5396 = vlaneseq
      %v5397 = vshrl.u32 %v5396, 7
      %v5398 = vsub.s32 %v5395, %v5397
      %v5399 = vrot.slane %v5391, %v5398
      %v5401 = vunpack.c.l.s4 1934713408
      %v5402 = vunpack.c.0.s8 %v5401
      %v5403 = vlaneseq
      %v5404 = vshrl.u32 %v5403, 7
      %v5405 = vsub.s32 %v5402, %v5404
      %v5406 = vrot.slane %v5392, %v5405
      %v5407 = vcombine.low %v5351, %v5367
      %v5408 = vcombine.high %v5351, %v5367
      %v5410 = vunpack.c.l.s4 1934713408
      %v5411 = vunpack.c.0.s8 %v5410
      %v5412 = vlaneseq
      %v5413 = vshrl.u32 %v5412, 7
      %v5414 = vsub.s32 %v5411, %v5413
      %v5415 = vrot.slane %v5407, %v5414
      %v5417 = vunpack.c.l.s4 1934713408
      %v5418 = vunpack.c.0.s8 %v5417
      %v5419 = vlaneseq
      %v5420 = vshrl.u32 %v5419, 7
      %v5421 = vsub.s32 %v5418, %v5420
      %v5422 = vrot.slane %v5408, %v5421
      %v5423 = vcombine.low %v5358, %v5374
      %v5424 = vcombine.high %v5358, %v5374
      %v5426 = vunpack.c.l.s4 1934713408
      %v5427 = vunpack.c.0.s8 %v5426
      %v5428 = vlaneseq
      %v5429 = vshrl.u32 %v5428, 7
      %v5430 = vsub.s32 %v5427, %v5429
      %v5431 = vrot.slane %v5423, %v5430
      %v5433 = vunpack.c.l.s4 1934713408
      %v5434 = vunpack.c.0.s8 %v5433
      %v5435 = vlaneseq
      %v5436 = vshrl.u32 %v5435, 7
      %v5437 = vsub.s32 %v5434, %v5436
      %v5438 = vrot.slane %v5424, %v5437
      %v5439 = vcombine.low %v5383, %v5415
      %v5440 = vcombine.high %v5383, %v5415
      %v5441 = vcombine.low %v5390, %v5422
      %v5442 = vcombine.high %v5390, %v5422
      %v5443 = vcombine.low %v5399, %v5431
      %v5444 = vcombine.high %v5399, %v5431
      %v5445 = vcombine.low %v5406, %v5438
      %v5446 = vcombine.high %v5406, %v5438
      %v5447 = vcombine.low %v5259, %v5269
      %v5448 = vcombine.high %v5259, %v5269
      %v5450 = vunpack.c.l.s4 1983009808
      %v5451 = vunpack.c.0.s8 %v5450
      %v5452 = vlaneseq
      %v5453 = vshrl.u32 %v5452, 7
      %v5454 = vsub.s32 %v5451, %v5453
      %v5455 = vrot.slane %v5447, %v5454
      %v5457 = vunpack.c.l.s4 1983009808
      %v5458 = vunpack.c.0.s8 %v5457
      %v5459 = vlaneseq
      %v5460 = vshrl.u32 %v5459, 7
      %v5461 = vsub.s32 %v5458, %v5460
      %v5462 = vrot.slane %v5448, %v5461
      %v5463 = vcombine.low %v5264, %v5274
      %v5464 = vcombine.high %v5264, %v5274
      %v5466 = vunpack.c.l.s4 1983009808
      %v5467 = vunpack.c.0.s8 %v5466
      %v5468 = vlaneseq
      %v5469 = vshrl.u32 %v5468, 7
      %v5470 = vsub.s32 %v5467, %v5469
      %v5471 = vrot.slane %v5463, %v5470
      %v5473 = vunpack.c.l.s4 1983009808
      %v5474 = vunpack.c.0.s8 %v5473
      %v5475 = vlaneseq
      %v5476 = vshrl.u32 %v5475, 7
      %v5477 = vsub.s32 %v5474, %v5476
      %v5478 = vrot.slane %v5464, %v5477
      %v5479 = vcombine.low %v5279, %v5289
      %v5480 = vcombine.high %v5279, %v5289
      %v5482 = vunpack.c.l.s4 1983009808
      %v5483 = vunpack.c.0.s8 %v5482
      %v5484 = vlaneseq
      %v5485 = vshrl.u32 %v5484, 7
      %v5486 = vsub.s32 %v5483, %v5485
      %v5487 = vrot.slane %v5479, %v5486
      %v5489 = vunpack.c.l.s4 1983009808
      %v5490 = vunpack.c.0.s8 %v5489
      %v5491 = vlaneseq
      %v5492 = vshrl.u32 %v5491, 7
      %v5493 = vsub.s32 %v5490, %v5492
      %v5494 = vrot.slane %v5480, %v5493
      %v5495 = vcombine.low %v5284, %v5294
      %v5496 = vcombine.high %v5284, %v5294
      %v5498 = vunpack.c.l.s4 1983009808
      %v5499 = vunpack.c.0.s8 %v5498
      %v5500 = vlaneseq
      %v5501 = vshrl.u32 %v5500, 7
      %v5502 = vsub.s32 %v5499, %v5501
      %v5503 = vrot.slane %v5495, %v5502
      %v5505 = vunpack.c.l.s4 1983009808
      %v5506 = vunpack.c.0.s8 %v5505
      %v5507 = vlaneseq
      %v5508 = vshrl.u32 %v5507, 7
      %v5509 = vsub.s32 %v5506, %v5508
      %v5510 = vrot.slane %v5496, %v5509
      %v5511 = vcombine.low %v5455, %v5471
      %v5512 = vcombine.high %v5455, %v5471
      %v5514 = vunpack.c.l.s4 1934713408
      %v5515 = vunpack.c.0.s8 %v5514
      %v5516 = vlaneseq
      %v5517 = vshrl.u32 %v5516, 7
      %v5518 = vsub.s32 %v5515, %v5517
      %v5519 = vrot.slane %v5511, %v5518
      %v5521 = vunpack.c.l.s4 1934713408
      %v5522 = vunpack.c.0.s8 %v5521
      %v5523 = vlaneseq
      %v5524 = vshrl.u32 %v5523, 7
      %v5525 = vsub.s32 %v5522, %v5524
      %v5526 = vrot.slane %v5512, %v5525
      %v5527 = vcombine.low %v5462, %v5478
      %v5528 = vcombine.high %v5462, %v5478
      %v5530 = vunpack.c.l.s4 1934713408
      %v5531 = vunpack.c.0.s8 %v5530
      %v5532 = vlaneseq
      %v5533 = vshrl.u32 %v5532, 7
      %v5534 = vsub.s32 %v5531, %v5533
      %v5535 = vrot.slane %v5527, %v5534
      %v5537 = vunpack.c.l.s4 1934713408
      %v5538 = vunpack.c.0.s8 %v5537
      %v5539 = vlaneseq
      %v5540 = vshrl.u32 %v5539, 7
      %v5541 = vsub.s32 %v5538, %v5540
      %v5542 = vrot.slane %v5528, %v5541
      %v5543 = vcombine.low %v5487, %v5503
      %v5544 = vcombine.high %v5487, %v5503
      %v5546 = vunpack.c.l.s4 1934713408
      %v5547 = vunpack.c.0.s8 %v5546
      %v5548 = vlaneseq
      %v5549 = vshrl.u32 %v5548, 7
      %v5550 = vsub.s32 %v5547, %v5549
      %v5551 = vrot.slane %v5543, %v5550
      %v5553 = vunpack.c.l.s4 1934713408
      %v5554 = vunpack.c.0.s8 %v5553
      %v5555 = vlaneseq
      %v5556 = vshrl.u32 %v5555, 7
      %v5557 = vsub.s32 %v5554, %v5556
      %v5558 = vrot.slane %v5544, %v5557
      %v5559 = vcombine.low %v5494, %v5510
      %v5560 = vcombine.high %v5494, %v5510
      %v5562 = vunpack.c.l.s4 1934713408
      %v5563 = vunpack.c.0.s8 %v5562
      %v5564 = vlaneseq
      %v5565 = vshrl.u32 %v5564, 7
      %v5566 = vsub.s32 %v5563, %v5565
      %v5567 = vrot.slane %v5559, %v5566
      %v5569 = vunpack.c.l.s4 1934713408
      %v5570 = vunpack.c.0.s8 %v5569
      %v5571 = vlaneseq
      %v5572 = vshrl.u32 %v5571, 7
      %v5573 = vsub.s32 %v5570, %v5572
      %v5574 = vrot.slane %v5560, %v5573
      %v5575 = vcombine.low %v5519, %v5551
      %v5576 = vcombine.high %v5519, %v5551
      %v5577 = vcombine.low %v5526, %v5558
      %v5578 = vcombine.high %v5526, %v5558
      %v5579 = vcombine.low %v5535, %v5567
      %v5580 = vcombine.high %v5535, %v5567
      %v5581 = vcombine.low %v5542, %v5574
      %v5582 = vcombine.high %v5542, %v5574
      %5584 = vrot.lane.b32.xlu0 %v5440, 16
      %v5585 = vpop.permute.xlu0 %5584
      %5588 = vrot.lane.b32.xlu0 %v5441, 32
      %v5589 = vpop.permute.xlu0 %5588
      %5592 = vrot.lane.b32.xlu0 %v5442, 48
      %v5593 = vpop.permute.xlu0 %5592
      %5596 = vrot.lane.b32.xlu0 %v5443, 64
      %v5597 = vpop.permute.xlu0 %5596
      %5600 = vrot.lane.b32.xlu0 %v5444, 80
      %v5601 = vpop.permute.xlu0 %5600
      %5604 = vrot.lane.b32.xlu0 %v5445, 96
      %v5605 = vpop.permute.xlu0 %5604
      %5608 = vrot.lane.b32.xlu0 %v5446, 112
      %v5609 = vpop.permute.xlu0 %5608
      %5612 = vrot.lane.b32.xlu0 %v5576, 16
      %v5613 = vpop.permute.xlu0 %5612
      %5616 = vrot.lane.b32.xlu0 %v5577, 32
      %v5617 = vpop.permute.xlu0 %5616
      %5620 = vrot.lane.b32.xlu0 %v5578, 48
      %v5621 = vpop.permute.xlu0 %5620
      %5624 = vrot.lane.b32.xlu0 %v5579, 64
      %v5625 = vpop.permute.xlu0 %5624
      %5628 = vrot.lane.b32.xlu0 %v5580, 80
      %v5629 = vpop.permute.xlu0 %5628
      %5632 = vrot.lane.b32.xlu0 %v5581, 96
      %v5633 = vpop.permute.xlu0 %5632
      %5636 = vrot.lane.b32.xlu0 %v5582, 112
      %v5637 = vpop.permute.xlu0 %5636
      %v5639 = vsel %vm546, %v5439, %v5585
      %v5640 = vsel %vm548, %v5639, %v5589
      %v5641 = vsel %vm550, %v5640, %v5593
      %v5642 = vsel %vm552, %v5641, %v5597
      %v5643 = vsel %vm554, %v5642, %v5601
      %v5644 = vsel %vm556, %v5643, %v5605
      %v5645 = vsel %vm558, %v5644, %v5609
      %v5646 = vsel %vm546, %v5575, %v5613
      %v5647 = vsel %vm548, %v5646, %v5617
      %v5648 = vsel %vm550, %v5647, %v5621
      %v5649 = vsel %vm552, %v5648, %v5625
      %v5650 = vsel %vm554, %v5649, %v5629
      %v5651 = vsel %vm556, %v5650, %v5633
      %v5652 = vsel %vm558, %v5651, %v5637
      %5653 = vrot.lane.b32.xlu0 %v5257, 127
      %v5654 = vpop.permute.xlu0 %5653
      %5655 = vrot.lane.b32.xlu0 %v5259, 127
      %v5656 = vpop.permute.xlu0 %5655
      %5657 = vrot.lane.b32.xlu0 %v5262, 127
      %v5658 = vpop.permute.xlu0 %5657
      %5659 = vrot.lane.b32.xlu0 %v5264, 127
      %v5660 = vpop.permute.xlu0 %5659
      %5661 = vrot.lane.b32.xlu0 %v5267, 127
      %v5662 = vpop.permute.xlu0 %5661
      %5663 = vrot.lane.b32.xlu0 %v5269, 127
      %v5664 = vpop.permute.xlu0 %5663
      %5665 = vrot.lane.b32.xlu0 %v5272, 127
      %v5666 = vpop.permute.xlu0 %5665
      %5667 = vrot.lane.b32.xlu0 %v5274, 127
      %v5668 = vpop.permute.xlu0 %5667
      %5669 = vrot.lane.b32.xlu0 %v5277, 127
      %v5670 = vpop.permute.xlu0 %5669
      %5671 = vrot.lane.b32.xlu0 %v5279, 127
      %v5672 = vpop.permute.xlu0 %5671
      %5673 = vrot.lane.b32.xlu0 %v5282, 127
      %v5674 = vpop.permute.xlu0 %5673
      %5675 = vrot.lane.b32.xlu0 %v5284, 127
      %v5676 = vpop.permute.xlu0 %5675
      %5677 = vrot.lane.b32.xlu0 %v5287, 127
      %v5678 = vpop.permute.xlu0 %5677
      %5679 = vrot.lane.b32.xlu0 %v5289, 127
      %v5680 = vpop.permute.xlu0 %5679
      %5681 = vrot.lane.b32.xlu0 %v5292, 127
      %v5682 = vpop.permute.xlu0 %5681
      %5683 = vrot.lane.b32.xlu0 %v5294, 127
      %v5684 = vpop.permute.xlu0 %5683
      %v5701 = vcombine.low %v5654, %v5662
      %v5702 = vcombine.high %v5654, %v5662
      %v5704 = vunpack.c.l.s4 1983009808
      %v5705 = vunpack.c.0.s8 %v5704
      %v5706 = vlaneseq
      %v5707 = vshrl.u32 %v5706, 7
      %v5708 = vsub.s32 %v5705, %v5707
      %v5709 = vrot.slane %v5701, %v5708
      %v5711 = vunpack.c.l.s4 1983009808
      %v5712 = vunpack.c.0.s8 %v5711
      %v5713 = vlaneseq
      %v5714 = vshrl.u32 %v5713, 7
      %v5715 = vsub.s32 %v5712, %v5714
      %v5716 = vrot.slane %v5702, %v5715
      %v5717 = vcombine.low %v5658, %v5666
      %v5718 = vcombine.high %v5658, %v5666
      %v5720 = vunpack.c.l.s4 1983009808
      %v5721 = vunpack.c.0.s8 %v5720
      %v5722 = vlaneseq
      %v5723 = vshrl.u32 %v5722, 7
      %v5724 = vsub.s32 %v5721, %v5723
      %v5725 = vrot.slane %v5717, %v5724
      %v5727 = vunpack.c.l.s4 1983009808
      %v5728 = vunpack.c.0.s8 %v5727
      %v5729 = vlaneseq
      %v5730 = vshrl.u32 %v5729, 7
      %v5731 = vsub.s32 %v5728, %v5730
      %v5732 = vrot.slane %v5718, %v5731
      %v5733 = vcombine.low %v5670, %v5678
      %v5734 = vcombine.high %v5670, %v5678
      %v5736 = vunpack.c.l.s4 1983009808
      %v5737 = vunpack.c.0.s8 %v5736
      %v5738 = vlaneseq
      %v5739 = vshrl.u32 %v5738, 7
      %v5740 = vsub.s32 %v5737, %v5739
      %v5741 = vrot.slane %v5733, %v5740
      %v5743 = vunpack.c.l.s4 1983009808
      %v5744 = vunpack.c.0.s8 %v5743
      %v5745 = vlaneseq
      %v5746 = vshrl.u32 %v5745, 7
      %v5747 = vsub.s32 %v5744, %v5746
      %v5748 = vrot.slane %v5734, %v5747
      %v5749 = vcombine.low %v5674, %v5682
      %v5750 = vcombine.high %v5674, %v5682
      %v5752 = vunpack.c.l.s4 1983009808
      %v5753 = vunpack.c.0.s8 %v5752
      %v5754 = vlaneseq
      %v5755 = vshrl.u32 %v5754, 7
      %v5756 = vsub.s32 %v5753, %v5755
      %v5757 = vrot.slane %v5749, %v5756
      %v5759 = vunpack.c.l.s4 1983009808
      %v5760 = vunpack.c.0.s8 %v5759
      %v5761 = vlaneseq
      %v5762 = vshrl.u32 %v5761, 7
      %v5763 = vsub.s32 %v5760, %v5762
      %v5764 = vrot.slane %v5750, %v5763
      %v5765 = vcombine.low %v5709, %v5725
      %v5766 = vcombine.high %v5709, %v5725
      %v5768 = vunpack.c.l.s4 1934713408
      %v5769 = vunpack.c.0.s8 %v5768
      %v5770 = vlaneseq
      %v5771 = vshrl.u32 %v5770, 7
      %v5772 = vsub.s32 %v5769, %v5771
      %v5773 = vrot.slane %v5765, %v5772
      %v5775 = vunpack.c.l.s4 1934713408
      %v5776 = vunpack.c.0.s8 %v5775
      %v5777 = vlaneseq
      %v5778 = vshrl.u32 %v5777, 7
      %v5779 = vsub.s32 %v5776, %v5778
      %v5780 = vrot.slane %v5766, %v5779
      %v5781 = vcombine.low %v5716, %v5732
      %v5782 = vcombine.high %v5716, %v5732
      %v5784 = vunpack.c.l.s4 1934713408
      %v5785 = vunpack.c.0.s8 %v5784
      %v5786 = vlaneseq
      %v5787 = vshrl.u32 %v5786, 7
      %v5788 = vsub.s32 %v5785, %v5787
      %v5789 = vrot.slane %v5781, %v5788
      %v5791 = vunpack.c.l.s4 1934713408
      %v5792 = vunpack.c.0.s8 %v5791
      %v5793 = vlaneseq
      %v5794 = vshrl.u32 %v5793, 7
      %v5795 = vsub.s32 %v5792, %v5794
      %v5796 = vrot.slane %v5782, %v5795
      %v5797 = vcombine.low %v5741, %v5757
      %v5798 = vcombine.high %v5741, %v5757
      %v5800 = vunpack.c.l.s4 1934713408
      %v5801 = vunpack.c.0.s8 %v5800
      %v5802 = vlaneseq
      %v5803 = vshrl.u32 %v5802, 7
      %v5804 = vsub.s32 %v5801, %v5803
      %v5805 = vrot.slane %v5797, %v5804
      %v5807 = vunpack.c.l.s4 1934713408
      %v5808 = vunpack.c.0.s8 %v5807
      %v5809 = vlaneseq
      %v5810 = vshrl.u32 %v5809, 7
      %v5811 = vsub.s32 %v5808, %v5810
      %v5812 = vrot.slane %v5798, %v5811
      %v5813 = vcombine.low %v5748, %v5764
      %v5814 = vcombine.high %v5748, %v5764
      %v5816 = vunpack.c.l.s4 1934713408
      %v5817 = vunpack.c.0.s8 %v5816
      %v5818 = vlaneseq
      %v5819 = vshrl.u32 %v5818, 7
      %v5820 = vsub.s32 %v5817, %v5819
      %v5821 = vrot.slane %v5813, %v5820
      %v5823 = vunpack.c.l.s4 1934713408
      %v5824 = vunpack.c.0.s8 %v5823
      %v5825 = vlaneseq
      %v5826 = vshrl.u32 %v5825, 7
      %v5827 = vsub.s32 %v5824, %v5826
      %v5828 = vrot.slane %v5814, %v5827
      %v5829 = vcombine.low %v5773, %v5805
      %v5830 = vcombine.high %v5773, %v5805
      %v5831 = vcombine.low %v5780, %v5812
      %v5832 = vcombine.high %v5780, %v5812
      %v5833 = vcombine.low %v5789, %v5821
      %v5834 = vcombine.high %v5789, %v5821
      %v5835 = vcombine.low %v5796, %v5828
      %v5836 = vcombine.high %v5796, %v5828
      %v5837 = vcombine.low %v5656, %v5664
      %v5838 = vcombine.high %v5656, %v5664
      %v5840 = vunpack.c.l.s4 1983009808
      %v5841 = vunpack.c.0.s8 %v5840
      %v5842 = vlaneseq
      %v5843 = vshrl.u32 %v5842, 7
      %v5844 = vsub.s32 %v5841, %v5843
      %v5845 = vrot.slane %v5837, %v5844
      %v5847 = vunpack.c.l.s4 1983009808
      %v5848 = vunpack.c.0.s8 %v5847
      %v5849 = vlaneseq
      %v5850 = vshrl.u32 %v5849, 7
      %v5851 = vsub.s32 %v5848, %v5850
      %v5852 = vrot.slane %v5838, %v5851
      %v5853 = vcombine.low %v5660, %v5668
      %v5854 = vcombine.high %v5660, %v5668
      %v5856 = vunpack.c.l.s4 1983009808
      %v5857 = vunpack.c.0.s8 %v5856
      %v5858 = vlaneseq
      %v5859 = vshrl.u32 %v5858, 7
      %v5860 = vsub.s32 %v5857, %v5859
      %v5861 = vrot.slane %v5853, %v5860
      %v5863 = vunpack.c.l.s4 1983009808
      %v5864 = vunpack.c.0.s8 %v5863
      %v5865 = vlaneseq
      %v5866 = vshrl.u32 %v5865, 7
      %v5867 = vsub.s32 %v5864, %v5866
      %v5868 = vrot.slane %v5854, %v5867
      %v5869 = vcombine.low %v5672, %v5680
      %v5870 = vcombine.high %v5672, %v5680
      %v5872 = vunpack.c.l.s4 1983009808
      %v5873 = vunpack.c.0.s8 %v5872
      %v5874 = vlaneseq
      %v5875 = vshrl.u32 %v5874, 7
      %v5876 = vsub.s32 %v5873, %v5875
      %v5877 = vrot.slane %v5869, %v5876
      %v5879 = vunpack.c.l.s4 1983009808
      %v5880 = vunpack.c.0.s8 %v5879
      %v5881 = vlaneseq
      %v5882 = vshrl.u32 %v5881, 7
      %v5883 = vsub.s32 %v5880, %v5882
      %v5884 = vrot.slane %v5870, %v5883
      %v5885 = vcombine.low %v5676, %v5684
      %v5886 = vcombine.high %v5676, %v5684
      %v5888 = vunpack.c.l.s4 1983009808
      %v5889 = vunpack.c.0.s8 %v5888
      %v5890 = vlaneseq
      %v5891 = vshrl.u32 %v5890, 7
      %v5892 = vsub.s32 %v5889, %v5891
      %v5893 = vrot.slane %v5885, %v5892
      %v5895 = vunpack.c.l.s4 1983009808
      %v5896 = vunpack.c.0.s8 %v5895
      %v5897 = vlaneseq
      %v5898 = vshrl.u32 %v5897, 7
      %v5899 = vsub.s32 %v5896, %v5898
      %v5900 = vrot.slane %v5886, %v5899
      %v5901 = vcombine.low %v5845, %v5861
      %v5902 = vcombine.high %v5845, %v5861
      %v5904 = vunpack.c.l.s4 1934713408
      %v5905 = vunpack.c.0.s8 %v5904
      %v5906 = vlaneseq
      %v5907 = vshrl.u32 %v5906, 7
      %v5908 = vsub.s32 %v5905, %v5907
      %v5909 = vrot.slane %v5901, %v5908
      %v5911 = vunpack.c.l.s4 1934713408
      %v5912 = vunpack.c.0.s8 %v5911
      %v5913 = vlaneseq
      %v5914 = vshrl.u32 %v5913, 7
      %v5915 = vsub.s32 %v5912, %v5914
      %v5916 = vrot.slane %v5902, %v5915
      %v5917 = vcombine.low %v5852, %v5868
      %v5918 = vcombine.high %v5852, %v5868
      %v5920 = vunpack.c.l.s4 1934713408
      %v5921 = vunpack.c.0.s8 %v5920
      %v5922 = vlaneseq
      %v5923 = vshrl.u32 %v5922, 7
      %v5924 = vsub.s32 %v5921, %v5923
      %v5925 = vrot.slane %v5917, %v5924
      %v5927 = vunpack.c.l.s4 1934713408
      %v5928 = vunpack.c.0.s8 %v5927
      %v5929 = vlaneseq
      %v5930 = vshrl.u32 %v5929, 7
      %v5931 = vsub.s32 %v5928, %v5930
      %v5932 = vrot.slane %v5918, %v5931
      %v5933 = vcombine.low %v5877, %v5893
      %v5934 = vcombine.high %v5877, %v5893
      %v5936 = vunpack.c.l.s4 1934713408
      %v5937 = vunpack.c.0.s8 %v5936
      %v5938 = vlaneseq
      %v5939 = vshrl.u32 %v5938, 7
      %v5940 = vsub.s32 %v5937, %v5939
      %v5941 = vrot.slane %v5933, %v5940
      %v5943 = vunpack.c.l.s4 1934713408
      %v5944 = vunpack.c.0.s8 %v5943
      %v5945 = vlaneseq
      %v5946 = vshrl.u32 %v5945, 7
      %v5947 = vsub.s32 %v5944, %v5946
      %v5948 = vrot.slane %v5934, %v5947
      %v5949 = vcombine.low %v5884, %v5900
      %v5950 = vcombine.high %v5884, %v5900
      %v5952 = vunpack.c.l.s4 1934713408
      %v5953 = vunpack.c.0.s8 %v5952
      %v5954 = vlaneseq
      %v5955 = vshrl.u32 %v5954, 7
      %v5956 = vsub.s32 %v5953, %v5955
      %v5957 = vrot.slane %v5949, %v5956
      %v5959 = vunpack.c.l.s4 1934713408
      %v5960 = vunpack.c.0.s8 %v5959
      %v5961 = vlaneseq
      %v5962 = vshrl.u32 %v5961, 7
      %v5963 = vsub.s32 %v5960, %v5962
      %v5964 = vrot.slane %v5950, %v5963
      %v5965 = vcombine.low %v5909, %v5941
      %v5966 = vcombine.high %v5909, %v5941
      %v5967 = vcombine.low %v5916, %v5948
      %v5968 = vcombine.high %v5916, %v5948
      %v5969 = vcombine.low %v5925, %v5957
      %v5970 = vcombine.high %v5925, %v5957
      %v5971 = vcombine.low %v5932, %v5964
      %v5972 = vcombine.high %v5932, %v5964
      %5974 = vrot.lane.b32.xlu0 %v5830, 16
      %v5975 = vpop.permute.xlu0 %5974
      %5978 = vrot.lane.b32.xlu0 %v5831, 32
      %v5979 = vpop.permute.xlu0 %5978
      %5982 = vrot.lane.b32.xlu0 %v5832, 48
      %v5983 = vpop.permute.xlu0 %5982
      %5986 = vrot.lane.b32.xlu0 %v5833, 64
      %v5987 = vpop.permute.xlu0 %5986
      %5990 = vrot.lane.b32.xlu0 %v5834, 80
      %v5991 = vpop.permute.xlu0 %5990
      %5994 = vrot.lane.b32.xlu0 %v5835, 96
      %v5995 = vpop.permute.xlu0 %5994
      %5998 = vrot.lane.b32.xlu0 %v5836, 112
      %v5999 = vpop.permute.xlu0 %5998
      %6002 = vrot.lane.b32.xlu0 %v5966, 16
      %v6003 = vpop.permute.xlu0 %6002
      %6006 = vrot.lane.b32.xlu0 %v5967, 32
      %v6007 = vpop.permute.xlu0 %6006
      %6010 = vrot.lane.b32.xlu0 %v5968, 48
      %v6011 = vpop.permute.xlu0 %6010
      %6014 = vrot.lane.b32.xlu0 %v5969, 64
      %v6015 = vpop.permute.xlu0 %6014
      %6018 = vrot.lane.b32.xlu0 %v5970, 80
      %v6019 = vpop.permute.xlu0 %6018
      %6022 = vrot.lane.b32.xlu0 %v5971, 96
      %v6023 = vpop.permute.xlu0 %6022
      %6026 = vrot.lane.b32.xlu0 %v5972, 112
      %v6027 = vpop.permute.xlu0 %6026
      %v6029 = vsel %vm546, %v5829, %v5975
      %v6030 = vsel %vm548, %v6029, %v5979
      %v6031 = vsel %vm550, %v6030, %v5983
      %v6032 = vsel %vm552, %v6031, %v5987
      %v6033 = vsel %vm554, %v6032, %v5991
      %v6034 = vsel %vm556, %v6033, %v5995
      %v6035 = vsel %vm558, %v6034, %v5999
      %v6036 = vsel %vm546, %v5965, %v6003
      %v6037 = vsel %vm548, %v6036, %v6007
      %v6038 = vsel %vm550, %v6037, %v6011
      %v6039 = vsel %vm552, %v6038, %v6015
      %v6040 = vsel %vm554, %v6039, %v6019
      %v6041 = vsel %vm556, %v6040, %v6023
      %v6042 = vsel %vm558, %v6041, %v6027
      %6043 = vrot.lane.b32.xlu0 %v5257, 126
      %v6044 = vpop.permute.xlu0 %6043
      %6045 = vrot.lane.b32.xlu0 %v5259, 126
      %v6046 = vpop.permute.xlu0 %6045
      %6047 = vrot.lane.b32.xlu0 %v5262, 126
      %v6048 = vpop.permute.xlu0 %6047
      %6049 = vrot.lane.b32.xlu0 %v5264, 126
      %v6050 = vpop.permute.xlu0 %6049
      %6051 = vrot.lane.b32.xlu0 %v5267, 126
      %v6052 = vpop.permute.xlu0 %6051
      %6053 = vrot.lane.b32.xlu0 %v5269, 126
      %v6054 = vpop.permute.xlu0 %6053
      %6055 = vrot.lane.b32.xlu0 %v5272, 126
      %v6056 = vpop.permute.xlu0 %6055
      %6057 = vrot.lane.b32.xlu0 %v5274, 126
      %v6058 = vpop.permute.xlu0 %6057
      %6059 = vrot.lane.b32.xlu0 %v5277, 126
      %v6060 = vpop.permute.xlu0 %6059
      %6061 = vrot.lane.b32.xlu0 %v5279, 126
      %v6062 = vpop.permute.xlu0 %6061
      %6063 = vrot.lane.b32.xlu0 %v5282, 126
      %v6064 = vpop.permute.xlu0 %6063
      %6065 = vrot.lane.b32.xlu0 %v5284, 126
      %v6066 = vpop.permute.xlu0 %6065
      %6067 = vrot.lane.b32.xlu0 %v5287, 126
      %v6068 = vpop.permute.xlu0 %6067
      %6069 = vrot.lane.b32.xlu0 %v5289, 126
      %v6070 = vpop.permute.xlu0 %6069
      %6071 = vrot.lane.b32.xlu0 %v5292, 126
      %v6072 = vpop.permute.xlu0 %6071
      %6073 = vrot.lane.b32.xlu0 %v5294, 126
      %v6074 = vpop.permute.xlu0 %6073
      %v6091 = vcombine.low %v6044, %v6052
      %v6092 = vcombine.high %v6044, %v6052
      %v6094 = vunpack.c.l.s4 1983009808
      %v6095 = vunpack.c.0.s8 %v6094
      %v6096 = vlaneseq
      %v6097 = vshrl.u32 %v6096, 7
      %v6098 = vsub.s32 %v6095, %v6097
      %v6099 = vrot.slane %v6091, %v6098
      %v6101 = vunpack.c.l.s4 1983009808
      %v6102 = vunpack.c.0.s8 %v6101
      %v6103 = vlaneseq
      %v6104 = vshrl.u32 %v6103, 7
      %v6105 = vsub.s32 %v6102, %v6104
      %v6106 = vrot.slane %v6092, %v6105
      %v6107 = vcombine.low %v6048, %v6056
      %v6108 = vcombine.high %v6048, %v6056
      %v6110 = vunpack.c.l.s4 1983009808
      %v6111 = vunpack.c.0.s8 %v6110
      %v6112 = vlaneseq
      %v6113 = vshrl.u32 %v6112, 7
      %v6114 = vsub.s32 %v6111, %v6113
      %v6115 = vrot.slane %v6107, %v6114
      %v6117 = vunpack.c.l.s4 1983009808
      %v6118 = vunpack.c.0.s8 %v6117
      %v6119 = vlaneseq
      %v6120 = vshrl.u32 %v6119, 7
      %v6121 = vsub.s32 %v6118, %v6120
      %v6122 = vrot.slane %v6108, %v6121
      %v6123 = vcombine.low %v6060, %v6068
      %v6124 = vcombine.high %v6060, %v6068
      %v6126 = vunpack.c.l.s4 1983009808
      %v6127 = vunpack.c.0.s8 %v6126
      %v6128 = vlaneseq
      %v6129 = vshrl.u32 %v6128, 7
      %v6130 = vsub.s32 %v6127, %v6129
      %v6131 = vrot.slane %v6123, %v6130
      %v6133 = vunpack.c.l.s4 1983009808
      %v6134 = vunpack.c.0.s8 %v6133
      %v6135 = vlaneseq
      %v6136 = vshrl.u32 %v6135, 7
      %v6137 = vsub.s32 %v6134, %v6136
      %v6138 = vrot.slane %v6124, %v6137
      %v6139 = vcombine.low %v6064, %v6072
      %v6140 = vcombine.high %v6064, %v6072
      %v6142 = vunpack.c.l.s4 1983009808
      %v6143 = vunpack.c.0.s8 %v6142
      %v6144 = vlaneseq
      %v6145 = vshrl.u32 %v6144, 7
      %v6146 = vsub.s32 %v6143, %v6145
      %v6147 = vrot.slane %v6139, %v6146
      %v6149 = vunpack.c.l.s4 1983009808
      %v6150 = vunpack.c.0.s8 %v6149
      %v6151 = vlaneseq
      %v6152 = vshrl.u32 %v6151, 7
      %v6153 = vsub.s32 %v6150, %v6152
      %v6154 = vrot.slane %v6140, %v6153
      %v6155 = vcombine.low %v6099, %v6115
      %v6156 = vcombine.high %v6099, %v6115
      %v6158 = vunpack.c.l.s4 1934713408
      %v6159 = vunpack.c.0.s8 %v6158
      %v6160 = vlaneseq
      %v6161 = vshrl.u32 %v6160, 7
      %v6162 = vsub.s32 %v6159, %v6161
      %v6163 = vrot.slane %v6155, %v6162
      %v6165 = vunpack.c.l.s4 1934713408
      %v6166 = vunpack.c.0.s8 %v6165
      %v6167 = vlaneseq
      %v6168 = vshrl.u32 %v6167, 7
      %v6169 = vsub.s32 %v6166, %v6168
      %v6170 = vrot.slane %v6156, %v6169
      %v6171 = vcombine.low %v6106, %v6122
      %v6172 = vcombine.high %v6106, %v6122
      %v6174 = vunpack.c.l.s4 1934713408
      %v6175 = vunpack.c.0.s8 %v6174
      %v6176 = vlaneseq
      %v6177 = vshrl.u32 %v6176, 7
      %v6178 = vsub.s32 %v6175, %v6177
      %v6179 = vrot.slane %v6171, %v6178
      %v6181 = vunpack.c.l.s4 1934713408
      %v6182 = vunpack.c.0.s8 %v6181
      %v6183 = vlaneseq
      %v6184 = vshrl.u32 %v6183, 7
      %v6185 = vsub.s32 %v6182, %v6184
      %v6186 = vrot.slane %v6172, %v6185
      %v6187 = vcombine.low %v6131, %v6147
      %v6188 = vcombine.high %v6131, %v6147
      %v6190 = vunpack.c.l.s4 1934713408
      %v6191 = vunpack.c.0.s8 %v6190
      %v6192 = vlaneseq
      %v6193 = vshrl.u32 %v6192, 7
      %v6194 = vsub.s32 %v6191, %v6193
      %v6195 = vrot.slane %v6187, %v6194
      %v6197 = vunpack.c.l.s4 1934713408
      %v6198 = vunpack.c.0.s8 %v6197
      %v6199 = vlaneseq
      %v6200 = vshrl.u32 %v6199, 7
      %v6201 = vsub.s32 %v6198, %v6200
      %v6202 = vrot.slane %v6188, %v6201
      %v6203 = vcombine.low %v6138, %v6154
      %v6204 = vcombine.high %v6138, %v6154
      %v6206 = vunpack.c.l.s4 1934713408
      %v6207 = vunpack.c.0.s8 %v6206
      %v6208 = vlaneseq
      %v6209 = vshrl.u32 %v6208, 7
      %v6210 = vsub.s32 %v6207, %v6209
      %v6211 = vrot.slane %v6203, %v6210
      %v6213 = vunpack.c.l.s4 1934713408
      %v6214 = vunpack.c.0.s8 %v6213
      %v6215 = vlaneseq
      %v6216 = vshrl.u32 %v6215, 7
      %v6217 = vsub.s32 %v6214, %v6216
      %v6218 = vrot.slane %v6204, %v6217
      %v6219 = vcombine.low %v6163, %v6195
      %v6220 = vcombine.high %v6163, %v6195
      %v6221 = vcombine.low %v6170, %v6202
      %v6222 = vcombine.high %v6170, %v6202
      %v6223 = vcombine.low %v6179, %v6211
      %v6224 = vcombine.high %v6179, %v6211
      %v6225 = vcombine.low %v6186, %v6218
      %v6226 = vcombine.high %v6186, %v6218
      %v6227 = vcombine.low %v6046, %v6054
      %v6228 = vcombine.high %v6046, %v6054
      %v6230 = vunpack.c.l.s4 1983009808
      %v6231 = vunpack.c.0.s8 %v6230
      %v6232 = vlaneseq
      %v6233 = vshrl.u32 %v6232, 7
      %v6234 = vsub.s32 %v6231, %v6233
      %v6235 = vrot.slane %v6227, %v6234
      %v6237 = vunpack.c.l.s4 1983009808
      %v6238 = vunpack.c.0.s8 %v6237
      %v6239 = vlaneseq
      %v6240 = vshrl.u32 %v6239, 7
      %v6241 = vsub.s32 %v6238, %v6240
      %v6242 = vrot.slane %v6228, %v6241
      %v6243 = vcombine.low %v6050, %v6058
      %v6244 = vcombine.high %v6050, %v6058
      %v6246 = vunpack.c.l.s4 1983009808
      %v6247 = vunpack.c.0.s8 %v6246
      %v6248 = vlaneseq
      %v6249 = vshrl.u32 %v6248, 7
      %v6250 = vsub.s32 %v6247, %v6249
      %v6251 = vrot.slane %v6243, %v6250
      %v6253 = vunpack.c.l.s4 1983009808
      %v6254 = vunpack.c.0.s8 %v6253
      %v6255 = vlaneseq
      %v6256 = vshrl.u32 %v6255, 7
      %v6257 = vsub.s32 %v6254, %v6256
      %v6258 = vrot.slane %v6244, %v6257
      %v6259 = vcombine.low %v6062, %v6070
      %v6260 = vcombine.high %v6062, %v6070
      %v6262 = vunpack.c.l.s4 1983009808
      %v6263 = vunpack.c.0.s8 %v6262
      %v6264 = vlaneseq
      %v6265 = vshrl.u32 %v6264, 7
      %v6266 = vsub.s32 %v6263, %v6265
      %v6267 = vrot.slane %v6259, %v6266
      %v6269 = vunpack.c.l.s4 1983009808
      %v6270 = vunpack.c.0.s8 %v6269
      %v6271 = vlaneseq
      %v6272 = vshrl.u32 %v6271, 7
      %v6273 = vsub.s32 %v6270, %v6272
      %v6274 = vrot.slane %v6260, %v6273
      %v6275 = vcombine.low %v6066, %v6074
      %v6276 = vcombine.high %v6066, %v6074
      %v6278 = vunpack.c.l.s4 1983009808
      %v6279 = vunpack.c.0.s8 %v6278
      %v6280 = vlaneseq
      %v6281 = vshrl.u32 %v6280, 7
      %v6282 = vsub.s32 %v6279, %v6281
      %v6283 = vrot.slane %v6275, %v6282
      %v6285 = vunpack.c.l.s4 1983009808
      %v6286 = vunpack.c.0.s8 %v6285
      %v6287 = vlaneseq
      %v6288 = vshrl.u32 %v6287, 7
      %v6289 = vsub.s32 %v6286, %v6288
      %v6290 = vrot.slane %v6276, %v6289
      %v6291 = vcombine.low %v6235, %v6251
      %v6292 = vcombine.high %v6235, %v6251
      %v6294 = vunpack.c.l.s4 1934713408
      %v6295 = vunpack.c.0.s8 %v6294
      %v6296 = vlaneseq
      %v6297 = vshrl.u32 %v6296, 7
      %v6298 = vsub.s32 %v6295, %v6297
      %v6299 = vrot.slane %v6291, %v6298
      %v6301 = vunpack.c.l.s4 1934713408
      %v6302 = vunpack.c.0.s8 %v6301
      %v6303 = vlaneseq
      %v6304 = vshrl.u32 %v6303, 7
      %v6305 = vsub.s32 %v6302, %v6304
      %v6306 = vrot.slane %v6292, %v6305
      %v6307 = vcombine.low %v6242, %v6258
      %v6308 = vcombine.high %v6242, %v6258
      %v6310 = vunpack.c.l.s4 1934713408
      %v6311 = vunpack.c.0.s8 %v6310
      %v6312 = vlaneseq
      %v6313 = vshrl.u32 %v6312, 7
      %v6314 = vsub.s32 %v6311, %v6313
      %v6315 = vrot.slane %v6307, %v6314
      %v6317 = vunpack.c.l.s4 1934713408
      %v6318 = vunpack.c.0.s8 %v6317
      %v6319 = vlaneseq
      %v6320 = vshrl.u32 %v6319, 7
      %v6321 = vsub.s32 %v6318, %v6320
      %v6322 = vrot.slane %v6308, %v6321
      %v6323 = vcombine.low %v6267, %v6283
      %v6324 = vcombine.high %v6267, %v6283
      %v6326 = vunpack.c.l.s4 1934713408
      %v6327 = vunpack.c.0.s8 %v6326
      %v6328 = vlaneseq
      %v6329 = vshrl.u32 %v6328, 7
      %v6330 = vsub.s32 %v6327, %v6329
      %v6331 = vrot.slane %v6323, %v6330
      %v6333 = vunpack.c.l.s4 1934713408
      %v6334 = vunpack.c.0.s8 %v6333
      %v6335 = vlaneseq
      %v6336 = vshrl.u32 %v6335, 7
      %v6337 = vsub.s32 %v6334, %v6336
      %v6338 = vrot.slane %v6324, %v6337
      %v6339 = vcombine.low %v6274, %v6290
      %v6340 = vcombine.high %v6274, %v6290
      %v6342 = vunpack.c.l.s4 1934713408
      %v6343 = vunpack.c.0.s8 %v6342
      %v6344 = vlaneseq
      %v6345 = vshrl.u32 %v6344, 7
      %v6346 = vsub.s32 %v6343, %v6345
      %v6347 = vrot.slane %v6339, %v6346
      %v6349 = vunpack.c.l.s4 1934713408
      %v6350 = vunpack.c.0.s8 %v6349
      %v6351 = vlaneseq
      %v6352 = vshrl.u32 %v6351, 7
      %v6353 = vsub.s32 %v6350, %v6352
      %v6354 = vrot.slane %v6340, %v6353
      %v6355 = vcombine.low %v6299, %v6331
      %v6356 = vcombine.high %v6299, %v6331
      %v6357 = vcombine.low %v6306, %v6338
      %v6358 = vcombine.high %v6306, %v6338
      %v6359 = vcombine.low %v6315, %v6347
      %v6360 = vcombine.high %v6315, %v6347
      %v6361 = vcombine.low %v6322, %v6354
      %v6362 = vcombine.high %v6322, %v6354
      %6364 = vrot.lane.b32.xlu0 %v6220, 16
      %v6365 = vpop.permute.xlu0 %6364
      %6368 = vrot.lane.b32.xlu0 %v6221, 32
      %v6369 = vpop.permute.xlu0 %6368
      %6372 = vrot.lane.b32.xlu0 %v6222, 48
      %v6373 = vpop.permute.xlu0 %6372
      %6376 = vrot.lane.b32.xlu0 %v6223, 64
      %v6377 = vpop.permute.xlu0 %6376
      %6380 = vrot.lane.b32.xlu0 %v6224, 80
      %v6381 = vpop.permute.xlu0 %6380
      %6384 = vrot.lane.b32.xlu0 %v6225, 96
      %v6385 = vpop.permute.xlu0 %6384
      %6388 = vrot.lane.b32.xlu0 %v6226, 112
      %v6389 = vpop.permute.xlu0 %6388
      %6392 = vrot.lane.b32.xlu0 %v6356, 16
      %v6393 = vpop.permute.xlu0 %6392
      %6396 = vrot.lane.b32.xlu0 %v6357, 32
      %v6397 = vpop.permute.xlu0 %6396
      %6400 = vrot.lane.b32.xlu0 %v6358, 48
      %v6401 = vpop.permute.xlu0 %6400
      %6404 = vrot.lane.b32.xlu0 %v6359, 64
      %v6405 = vpop.permute.xlu0 %6404
      %6408 = vrot.lane.b32.xlu0 %v6360, 80
      %v6409 = vpop.permute.xlu0 %6408
      %6412 = vrot.lane.b32.xlu0 %v6361, 96
      %v6413 = vpop.permute.xlu0 %6412
      %6416 = vrot.lane.b32.xlu0 %v6362, 112
      %v6417 = vpop.permute.xlu0 %6416
      %v6419 = vsel %vm546, %v6219, %v6365
      %v6420 = vsel %vm548, %v6419, %v6369
      %v6421 = vsel %vm550, %v6420, %v6373
      %v6422 = vsel %vm552, %v6421, %v6377
      %v6423 = vsel %vm554, %v6422, %v6381
      %v6424 = vsel %vm556, %v6423, %v6385
      %v6425 = vsel %vm558, %v6424, %v6389
      %v6426 = vsel %vm546, %v6355, %v6393
      %v6427 = vsel %vm548, %v6426, %v6397
      %v6428 = vsel %vm550, %v6427, %v6401
      %v6429 = vsel %vm552, %v6428, %v6405
      %v6430 = vsel %vm554, %v6429, %v6409
      %v6431 = vsel %vm556, %v6430, %v6413
      %v6432 = vsel %vm558, %v6431, %v6417
      %v6433 = vld [vmem:[%s3] sm:$0xff]
      %v6434 = vld [vmem:[%s4] sm:$0xff]
      %6436 = vset.pattern.permute.xlu0 0
      %6437 = vperm.xlu0 %6436, %v6434
      %v6438 = vpop.permute.xlu0 %6437
      %vm6440 = vcmask 588800
      %v6442 = vsel %vm6440, %v6433, 0
      %6444 = vmatprep.subr.mxu0 0.0
      %6445 = vmatpush1.msra.mxu0 0.0
      %6446 = vmatprep.subr.mxu0 0.0
      %6447 = vmatpush1.msra.mxu0 0.0
      %6448 = vmatprep.subr.mxu0 0.0
      %6449 = vmatpush1.msra.mxu0 0.0
      %6450 = vmatprep.subr.mxu0 0.0
      %6451 = vmatpush1.msra.mxu0 0.0
      %6452 = vmatprep.subr.mxu0 0.0
      %6453 = vmatpush1.msra.mxu0 0.0
      %6454 = vmatprep.subr.mxu0 0.0
      %6455 = vmatpush1.msra.mxu0 0.0
      %6456 = vmatprep.subr.mxu0 0.0
      %6457 = vmatpush1.msra.mxu0 0.0
      %6458 = vmatprep.subr.mxu0 %v6432
      %6459 = vmatpush1.msra.mxu0 %v6425
      %6460 = vmatprep.subr.mxu0 %v6042
      %6461 = vmatpush1.msra.mxu0 %v6035
      %6462 = vmatprep.subr.mxu0 %v5652
      %6463 = vmatpush1.msra.mxu0 %v5645
      %6464 = vmatprep.subr.mxu0 %v5254
      %6465 = vmatpush1.msra.mxu0 %v5247
      %6466 = vmatprep.subr.mxu0 %v4864
      %6467 = vmatpush1.msra.mxu0 %v4857
      %6468 = vmatprep.subr.mxu0 %v4474
      %6469 = vmatpush1.msra.mxu0 %v4467
      %6470 = vmatprep.subr.mxu0 %v4068
      %6471 = vmatpush1.msra.mxu0 %v4061
      %6472 = vmatprep.subr.mxu0 %v3678
      %6473 = vmatpush1.msra.mxu0 %v3671
      %6474 = vmatprep.subr.mxu0 %v3272
      %6475 = vmatpush1.msra.mxu0 %v3265
      %6476 = vmatprep.subr.mxu0 0.0
      %6477 = vmatpush2.msra.mxu0 0.0
      %6478 = vmatprep.subr.mxu0 0.0
      %6479 = vmatpush2.msra.mxu0 0.0
      %6480 = vmatprep.subr.mxu0 0.0
      %6481 = vmatpush2.msra.mxu0 0.0
      %6482 = vmatprep.subr.mxu0 0.0
      %6483 = vmatpush2.msra.mxu0 0.0
      %6484 = vmatprep.subr.mxu0 0.0
      %6485 = vmatpush2.msra.mxu0 0.0
      %6486 = vmatprep.subr.mxu0 0.0
      %6487 = vmatpush2.msra.mxu0 0.0
      %6488 = vmatprep.subr.mxu0 0.0
      %6489 = vmatpush2.msra.mxu0 0.0
      %6490 = vmatprep.subr.mxu0 0.0
      %6491 = vmatpush2.msra.mxu0 0.0
      %6492 = vmatprep.subr.mxu0 0.0
      %6493 = vmatpush2.msra.mxu0 0.0
      %6494 = vmatprep.subr.mxu0 0.0
      %6495 = vmatpush2.msra.mxu0 0.0
      %6496 = vmatprep.subr.mxu0 0.0
      %6497 = vmatpush2.msra.mxu0 0.0
      %6498 = vmatprep.subr.mxu0 0.0
      %6499 = vmatpush2.msra.mxu0 0.0
      %6500 = vmatprep.subr.mxu0 0.0
      %6501 = vmatpush2.msra.mxu0 0.0
      %6502 = vmatprep.subr.mxu0 0.0
      %6503 = vmatpush2.msra.mxu0 0.0
      %6504 = vmatprep.subr.mxu0 0.0
      %6505 = vmatpush2.msra.mxu0 0.0
      %6506 = vmatprep.subr.mxu0 0.0
      %6507 = vmatpush2.msra.mxu0 0.0
      %6508 = vmatprep.mubr.f32.mxu0 0.0
      %6509 = vmatmul.mubr.f32.gmra.mxu0 %v6442
      %v6510 = vpop.f32.mrf.mxu0
      %v6511 = vadd.f32 %v6438, %v6510
      %v6512 = vpop.f32.mrf.mxu0
      %v6513 = vadd.f32 %v6438, %v6512
      %6514 = vdwg.mxu0
      %v6515 = vmax.f32 %v6511, 0.0
      %v6516 = vmax.f32 %v6513, 0.0
      %v6517 = vadd.f32 %v6515, %v6516
      %6518 = vadd.xlane.f32.xlu0 %v6517
      %v6519 = vpop.xlane.xlu0 %6518
      %v6520 = vrcp.pop 256.0
      %v6521 = vmul.f32 %v6519, %v6520
      %v6522 = vld [vmem:[%s5] sm:$0xff]
      %v6523 = vmul.f32 %v6522, %v6521
      %v6524 = vsel %vm548, %v6523, 0.0
      %v6525 = vrot.slane %v6524, 4
      %v6526 = vadd.f32 %v6524, %v6525
      %v6527 = vrot.slane %v6526, 2
      %v6528 = vadd.f32 %v6526, %v6527
      %v6529 = vrot.slane %v6528, 1
      %v6530 = vadd.f32 %v6528, %v6529
      %v6531 = vld [vmem:[%s6] sm:$0x1]
      %v6532 = vadd.f32 %v6530, %v6531
      %v6533 = vmax.f32 %v6532, 0.0
      %vm6534 = vcmask 253952
      %6535 = vst.msk [vmem:[%s274] sm:$0x1] %vm6534, %v6533
      %p6536 = scmp.lt.s32.totalorder %s18, 3
      %s6537 = scalar_select %p6536, %s18, 3
      %s6538 = scalar_lea.vmem %s7, %s6537
      // Predicated region
      $region49: #{two_views_top_breast_classifier.1} parent=47 // pred_check
        %p6539 = pneg %p188
      $region50: #{two_views_top_breast_classifier.1} parent=47 // pred_check_branch
        %6541 = sbr.rel (%p6539) target = $region52
      $region51: #{two_views_top_breast_classifier.1} parent=47 // pred_region
        _
      $region52: #{two_views_top_breast_classifier.1} parent=47 // pred_fallthru
        _
    $region48: #{two_views_top_breast_classifier.1} parent=5 // pred_fallthru
      _
    %p6542 = scmp.le.s32.totalorder 2, %s13
    // Predicated region
    $region53: #{two_views_top_breast_classifier.1} parent=5 // pred_check
      %p6543 = pneg %p6542
    $region54: #{two_views_top_breast_classifier.1} parent=5 // pred_check_branch
      %6545 = sbr.rel (%p6543) target = $region56
    $region55: #{two_views_top_breast_classifier.1} parent=5 // pred_region
      %s6546 = ssub.s32 %s13, 2
      // Predicated region
      $region57: #{two_views_top_breast_classifier.1} parent=55 // pred_check
        %p6547 = pneg %p194
      $region58: #{two_views_top_breast_classifier.1} parent=55 // pred_check_branch
        %6549 = sbr.rel (%p6547) target = $region60
      $region59: #{two_views_top_breast_classifier.1} parent=55 // pred_region
        %p6550 = scmp.lt.s32.totalorder %s19, 3
        %s6551 = scalar_select %p6550, %s19, 3
        %s6552 = scalar_lea.vmem %s7, %s6551
      $region60: #{two_views_top_breast_classifier.1} parent=55 // pred_fallthru
        _
    $region56: #{two_views_top_breast_classifier.1} parent=5 // pred_fallthru
      _
  $region6: #{two_views_top_breast_classifier.1} parent=0 // loop_footer
    %s17 = sadd.s32 1, %s13
  $region7: #{two_views_top_breast_classifier.1} parent=0 // loop_footer_branch
    %12 = sbr.rel target = $region3
  $region8: #{two_views_top_breast_classifier.1} parent=0 // loop_exit
    _

</llo_original>
